<compile_context>
chip_gen: v5e
topology: v5e:2x2
jax: 0.10.0
libtpu: 0.0.40
codegen_flags: <defaults>
</compile_context>

<pallas_src>
import numpy as np
import jax
import jax.numpy as jnp
from jax.experimental import pallas as pl
from jax.experimental.pallas import tpu as pltpu

# ------------------------- configuration ----------------------------------------
NUM_M = 3        # number of streams (num_m)
N_CLASSES = 4    # n_classes
BATCH = 2
C_IN = 4
H = W = 16
HIDDEN = 8       # conv output channels of the shared image model
K = 3            # conv kernel size (padding=1 -> 'same')

PH, PW = H + 2, W + 2            # padded spatial dims
IMG_LANES = PH * PW              # 324 flattened padded pixels per image
MB = NUM_M * BATCH               # 6 images total (m-major, then b)
TOT = MB * IMG_LANES             # 1944 lanes carrying every image
XP_LANES = 2048                  # input lanes rounded up (zero tail)
MAX_SHIFT = (K - 1) * (PW + 1)   # 38 = largest tap offset dy*PW+dx
assert XP_LANES - TOT >= MAX_SHIFT


# ------------------------- fused Pallas kernel ----------------------------------
# Single grid step; every operand is a whole-array VMEM block.
#
# xp_ref  : (C, XP_LANES)     channel-first input, per-image flattened padded 18x18
#                             blocks concatenated on lanes, zero tail to XP_LANES
# wc_ref  : (9, HID, C)       conv weight per tap, t = dy*3+dx
# bc_ref  : (HID, 1)          conv bias (column -> broadcasts over lanes)
# sel_ref : (MB, TOT)         pool/mask matrix: 1/(H*W) at valid conv-output lanes
# wf_ref  : (NC, HID)         image-model FC weight (native torch layout)
# bf_ref  : (1, NC)           image-model FC bias
# wh_ref  : (NC, M*NC)        head weight (native torch layout)
# bh_ref  : (1, NC)           head bias
# out_ref : (B, NC)
def ms_fused_kernel(xp_ref, wc_ref, bc_ref, sel_ref, wf_ref, bf_ref,
                    wh_ref, bh_ref, out_ref):
    B, NC = out_ref.shape
    n_img, tot = sel_ref.shape
    M = n_img // B
    nt = (((1,), (1,)), ((), ()))          # A @ B.T (contract last dims of both)

    x = xp_ref[...]                        # (C, XP_LANES), lane-dense

    # 3x3 'same' conv as 9 accumulated tap matmuls.  The long axis (all images'
    # padded pixels) stays on lanes, so every intermediate is lane-dense.  Reads
    # that bleed past an image's 324-lane block only affect lanes that sel masks.
    h = None
    for dy in range(K):
        for dx in range(K):
            t = dy * K + dx
            off = dy * PW + dx
            xs = x[:, off:off + tot]                                        # (C, TOT)
            p = jnp.dot(wc_ref[t], xs, preferred_element_type=jnp.float32)  # (HID, TOT)
            h = p if h is None else h + p
    h = jnp.maximum(h + bc_ref[...], 0.0)   # conv bias + ReLU, (HID, TOT)

    # Masked global-average pool for all images with ONE matmul against the
    # prep-time 0 / 1/(H*W) selection matrix; result is already (image, HID).
    pooled = jax.lax.dot_general(sel_ref[...], h, nt,
                                 preferred_element_type=jnp.float32)        # (MB, HID)

    # Shared image-model FC for all streams at once, then ReLU (the reference's
    # stack + F.relu is elementwise, so the order is interchangeable).
    logits = jax.lax.dot_general(pooled, wf_ref[...], nt,
                                 preferred_element_type=jnp.float32) + bf_ref[...]
    r = jnp.maximum(logits, 0.0)            # (MB, NC), rows i = m*B + b

    # torch.stack(dim=1).view(-1, M*NC): concatenate each stream's (B, NC) rows
    # along lanes -> (B, M*NC); then one head matmul instead of M dependent ones.
    rcat = jnp.concatenate([r[m * B:(m + 1) * B, :] for m in range(M)], axis=1)
    out = jax.lax.dot_general(rcat, wh_ref[...], nt,
                              preferred_element_type=jnp.float32) + bh_ref[...]
    out_ref[...] = out


def ms_fused_call(xp, wc9, bc, sel, wf, bf, wh, bh, batch, n_classes):
    vmem = pltpu.MemorySpace.VMEM
    return pl.pallas_call(
        ms_fused_kernel,
        out_shape=jax.ShapeDtypeStruct((batch, n_classes), jnp.float32),
        in_specs=[pl.BlockSpec(memory_space=vmem)] * 8,
        out_specs=pl.BlockSpec(memory_space=vmem),
    )(xp, wc9, bc, sel, wf, bf, wh, bh)


# ------------------------- one-time parameter preprocessing ---------------------
def prepare_params(params):
    """Runs once per parameter set (NOT per forward)."""
    # conv weight (HID, C, 3, 3) -> per-tap (9, HID, C), t = dy*3+dx
    wc9 = jnp.transpose(params["conv_w"], (2, 3, 0, 1)).reshape(K * K, HIDDEN, C_IN)
    bc = params["conv_b"].reshape(HIDDEN, 1)

    # pooling / masking matrix: 1/(H*W) at the H*W valid conv-output lanes of each
    # image's padded block, 0 at border / cross-image-contaminated lanes.
    blk = np.zeros((IMG_LANES,), np.float32)
    yy, xx = np.meshgrid(np.arange(H), np.arange(W), indexing="ij")
    blk[(yy * PW + xx).reshape(-1)] = 1.0 / float(H * W)
    sel = np.zeros((MB, TOT), np.float32)
    for i in range(MB):
        sel[i, i * IMG_LANES:(i + 1) * IMG_LANES] = blk

    return {
        "wc9": wc9,
        "bc": bc,
        "sel": jnp.asarray(sel),
        "wf": params["img_fc_w"],                        # (NC, HID) torch layout
        "bf": params["img_fc_b"].reshape(1, N_CLASSES),
        "wh": params["head_w"],                          # (NC, M*NC) torch layout
        "bh": params["head_b"].reshape(1, N_CLASSES),
    }


# ------------------------- forward wrapper (jit-able) ---------------------------
def ms_no_flow_shared_forward(x_streams, prep):
    """x_streams: (num_m, B, C, H, W) in NCHW per stream (PyTorch convention)."""
    M, B, C, Hh, Ww = x_streams.shape
    # channel-first, (m, b)-major image blocks, flattened padded spatial on lanes
    x = jnp.transpose(x_streams, (2, 0, 1, 3, 4)).reshape(C, M * B, Hh, Ww)
    xp = jnp.pad(x, ((0, 0), (0, 0), (1, 1), (1, 1))).reshape(C, M * B * PH * PW)
    xp = jnp.pad(xp, ((0, 0), (0, XP_LANES - xp.shape[1])))       # zero tail
    return ms_fused_call(xp, prep["wc9"], prep["bc"], prep["sel"], prep["wf"],
                         prep["bf"], prep["wh"], prep["bh"], B, N_CLASSES)


# ------------------------- pure-JAX reference -----------------------------------
def extract_patches_nhwc(x_nhwc):
    """im2col for 3x3 'same' conv; column order is (dy, dx, c)."""
    N, Hh, Ww, C = x_nhwc.shape
    xpad = jnp.pad(x_nhwc, ((0, 0), (1, 1), (1, 1), (0, 0)))
    cols = []
    for dy in range(K):
        for dx in range(K):
            cols.append(xpad[:, dy:dy + Hh, dx:dx + Ww, :])
    p = jnp.concatenate(cols, axis=-1)
    return p.reshape(N, Hh * Ww, K * K * C)


def reference_forward(x_streams, params):
    M, B, C, Hh, Ww = x_streams.shape
    x = jnp.transpose(x_streams.reshape(M * B, C, Hh, Ww), (0, 2, 3, 1))
    patches = extract_patches_nhwc(x)
    wc = jnp.transpose(params["conv_w"], (2, 3, 1, 0)).reshape(K * K * C, HIDDEN)
    h = jnp.maximum(patches @ wc + params["conv_b"], 0.0)
    pooled = h.mean(axis=1)
    logits = pooled @ params["img_fc_w"].T + params["img_fc_b"]
    y = jnp.transpose(logits.reshape(M, B, N_CLASSES), (1, 0, 2)).reshape(B, M * N_CLASSES)
    y = jnp.maximum(y, 0.0)
    return y @ params["head_w"].T + params["head_b"]


def init_params(key):
    ks = jax.random.split(key, 6)

    def u(k, shape, fan_in):
        bound = 1.0 / jnp.sqrt(fan_in)
        return jax.random.uniform(k, shape, jnp.float32, -bound, bound)

    fc_in = NUM_M * N_CLASSES
    return {
        # shared image model (Conv2d + Linear), PyTorch weight layouts
        "conv_w": u(ks[0], (HIDDEN, C_IN, K, K), C_IN * K * K),
        "conv_b": u(ks[1], (HIDDEN,), C_IN * K * K),
        "img_fc_w": u(ks[2], (N_CLASSES, HIDDEN), HIDDEN),
        "img_fc_b": u(ks[3], (N_CLASSES,), HIDDEN),
        # Linear_layer: nn.Linear(num_m * n_classes, n_classes)
        "head_w": u(ks[4], (N_CLASSES, fc_in), fc_in),
        "head_b": u(ks[5], (N_CLASSES,), fc_in),
    }


if __name__ == "__main__":
    key = jax.random.PRNGKey(0)
    k_params, k_x = jax.random.split(key)
    params = init_params(k_params)
    prep = prepare_params(params)            # one-time weight preprocessing

    # x is a "list" of num_m streams, each (B, C, H, W) -> stored as one array
    x_streams = jax.random.normal(k_x, (NUM_M, BATCH, C_IN, H, W), jnp.float32)

    forward = jax.jit(ms_no_flow_shared_forward)
    out = jax.block_until_ready(forward(x_streams, prep))

    ref = reference_forward(x_streams, params)
    assert out.shape == (BATCH, N_CLASSES)
    assert jnp.allclose(out, ref, atol=1e-4, rtol=1e-4)

    print("KERNEL_OK")
</pallas_src>

<mosaic_0001>
module attributes {stable_mosaic.version = 11 : i64} {
  func.func @ms_fused_kernel(%arg0: memref<4x2048xf32, #tpu.memory_space<vmem>>, %arg1: memref<9x8x4xf32, #tpu.memory_space<vmem>>, %arg2: memref<8x1xf32, #tpu.memory_space<vmem>>, %arg3: memref<6x1944xf32, #tpu.memory_space<vmem>>, %arg4: memref<4x8xf32, #tpu.memory_space<vmem>>, %arg5: memref<1x4xf32, #tpu.memory_space<vmem>>, %arg6: memref<4x12xf32, #tpu.memory_space<vmem>>, %arg7: memref<1x4xf32, #tpu.memory_space<vmem>>, %arg8: memref<2x4xf32, #tpu.memory_space<vmem>>) attributes {dimension_semantics = [], scalar_prefetch = 0 : i64, scratch_operands = 0 : i64, tpu.core_type = #tpu.core_type<tc>} {
    %c0 = arith.constant 0 : index
    %c0_0 = arith.constant 0 : index
    %0 = vector.load %arg0[%c0, %c0_0] : memref<4x2048xf32, #tpu.memory_space<vmem>>, vector<4x2048xf32>
    %1 = vector.extract_strided_slice %0 {offsets = [0, 0], sizes = [4, 1944], strides = [1, 1]} : vector<4x2048xf32> to vector<4x1944xf32>
    %c0_1 = arith.constant 0 : index
    %c0_2 = arith.constant 0 : index
    %c0_3 = arith.constant 0 : index
    %2 = vector.load %arg1[%c0_1, %c0_2, %c0_3] : memref<9x8x4xf32, #tpu.memory_space<vmem>>, vector<1x8x4xf32>
    %3 = vector.shape_cast %2 : vector<1x8x4xf32> to vector<8x4xf32>
    %cst = arith.constant dense<0.000000e+00> : vector<8x1944xf32>
    %4 = tpu.matmul %3, %1, %cst {dimension_numbers = #tpu.dot_dimension_numbers<[1], [0], [0], [1], [0, 0, 1, 1], [], []>} : vector<8x4xf32>, vector<4x1944xf32>, vector<8x1944xf32> -> vector<8x1944xf32>
    %5 = vector.extract_strided_slice %0 {offsets = [0, 1], sizes = [4, 1944], strides = [1, 1]} : vector<4x2048xf32> to vector<4x1944xf32>
    %c1 = arith.constant 1 : index
    %c0_4 = arith.constant 0 : index
    %c0_5 = arith.constant 0 : index
    %6 = vector.load %arg1[%c1, %c0_4, %c0_5] : memref<9x8x4xf32, #tpu.memory_space<vmem>>, vector<1x8x4xf32>
    %7 = vector.shape_cast %6 : vector<1x8x4xf32> to vector<8x4xf32>
    %cst_6 = arith.constant dense<0.000000e+00> : vector<8x1944xf32>
    %8 = tpu.matmul %7, %5, %cst_6 {dimension_numbers = #tpu.dot_dimension_numbers<[1], [0], [0], [1], [0, 0, 1, 1], [], []>} : vector<8x4xf32>, vector<4x1944xf32>, vector<8x1944xf32> -> vector<8x1944xf32>
    %9 = arith.addf %4, %8 : vector<8x1944xf32>
    %10 = vector.extract_strided_slice %0 {offsets = [0, 2], sizes = [4, 1944], strides = [1, 1]} : vector<4x2048xf32> to vector<4x1944xf32>
    %c2 = arith.constant 2 : index
    %c0_7 = arith.constant 0 : index
    %c0_8 = arith.constant 0 : index
    %11 = vector.load %arg1[%c2, %c0_7, %c0_8] : memref<9x8x4xf32, #tpu.memory_space<vmem>>, vector<1x8x4xf32>
    %12 = vector.shape_cast %11 : vector<1x8x4xf32> to vector<8x4xf32>
    %cst_9 = arith.constant dense<0.000000e+00> : vector<8x1944xf32>
    %13 = tpu.matmul %12, %10, %cst_9 {dimension_numbers = #tpu.dot_dimension_numbers<[1], [0], [0], [1], [0, 0, 1, 1], [], []>} : vector<8x4xf32>, vector<4x1944xf32>, vector<8x1944xf32> -> vector<8x1944xf32>
    %14 = arith.addf %9, %13 : vector<8x1944xf32>
    %15 = vector.extract_strided_slice %0 {offsets = [0, 18], sizes = [4, 1944], strides = [1, 1]} : vector<4x2048xf32> to vector<4x1944xf32>
    %c3 = arith.constant 3 : index
    %c0_10 = arith.constant 0 : index
    %c0_11 = arith.constant 0 : index
    %16 = vector.load %arg1[%c3, %c0_10, %c0_11] : memref<9x8x4xf32, #tpu.memory_space<vmem>>, vector<1x8x4xf32>
    %17 = vector.shape_cast %16 : vector<1x8x4xf32> to vector<8x4xf32>
    %cst_12 = arith.constant dense<0.000000e+00> : vector<8x1944xf32>
    %18 = tpu.matmul %17, %15, %cst_12 {dimension_numbers = #tpu.dot_dimension_numbers<[1], [0], [0], [1], [0, 0, 1, 1], [], []>} : vector<8x4xf32>, vector<4x1944xf32>, vector<8x1944xf32> -> vector<8x1944xf32>
    %19 = arith.addf %14, %18 : vector<8x1944xf32>
    %20 = vector.extract_strided_slice %0 {offsets = [0, 19], sizes = [4, 1944], strides = [1, 1]} : vector<4x2048xf32> to vector<4x1944xf32>
    %c4 = arith.constant 4 : index
    %c0_13 = arith.constant 0 : index
    %c0_14 = arith.constant 0 : index
    %21 = vector.load %arg1[%c4, %c0_13, %c0_14] : memref<9x8x4xf32, #tpu.memory_space<vmem>>, vector<1x8x4xf32>
    %22 = vector.shape_cast %21 : vector<1x8x4xf32> to vector<8x4xf32>
    %cst_15 = arith.constant dense<0.000000e+00> : vector<8x1944xf32>
    %23 = tpu.matmul %22, %20, %cst_15 {dimension_numbers = #tpu.dot_dimension_numbers<[1], [0], [0], [1], [0, 0, 1, 1], [], []>} : vector<8x4xf32>, vector<4x1944xf32>, vector<8x1944xf32> -> vector<8x1944xf32>
    %24 = arith.addf %19, %23 : vector<8x1944xf32>
    %25 = vector.extract_strided_slice %0 {offsets = [0, 20], sizes = [4, 1944], strides = [1, 1]} : vector<4x2048xf32> to vector<4x1944xf32>
    %c5 = arith.constant 5 : index
    %c0_16 = arith.constant 0 : index
    %c0_17 = arith.constant 0 : index
    %26 = vector.load %arg1[%c5, %c0_16, %c0_17] : memref<9x8x4xf32, #tpu.memory_space<vmem>>, vector<1x8x4xf32>
    %27 = vector.shape_cast %26 : vector<1x8x4xf32> to vector<8x4xf32>
    %cst_18 = arith.constant dense<0.000000e+00> : vector<8x1944xf32>
    %28 = tpu.matmul %27, %25, %cst_18 {dimension_numbers = #tpu.dot_dimension_numbers<[1], [0], [0], [1], [0, 0, 1, 1], [], []>} : vector<8x4xf32>, vector<4x1944xf32>, vector<8x1944xf32> -> vector<8x1944xf32>
    %29 = arith.addf %24, %28 : vector<8x1944xf32>
    %30 = vector.extract_strided_slice %0 {offsets = [0, 36], sizes = [4, 1944], strides = [1, 1]} : vector<4x2048xf32> to vector<4x1944xf32>
    %c6 = arith.constant 6 : index
    %c0_19 = arith.constant 0 : index
    %c0_20 = arith.constant 0 : index
    %31 = vector.load %arg1[%c6, %c0_19, %c0_20] : memref<9x8x4xf32, #tpu.memory_space<vmem>>, vector<1x8x4xf32>
    %32 = vector.shape_cast %31 : vector<1x8x4xf32> to vector<8x4xf32>
    %cst_21 = arith.constant dense<0.000000e+00> : vector<8x1944xf32>
    %33 = tpu.matmul %32, %30, %cst_21 {dimension_numbers = #tpu.dot_dimension_numbers<[1], [0], [0], [1], [0, 0, 1, 1], [], []>} : vector<8x4xf32>, vector<4x1944xf32>, vector<8x1944xf32> -> vector<8x1944xf32>
    %34 = arith.addf %29, %33 : vector<8x1944xf32>
    %35 = vector.extract_strided_slice %0 {offsets = [0, 37], sizes = [4, 1944], strides = [1, 1]} : vector<4x2048xf32> to vector<4x1944xf32>
    %c7 = arith.constant 7 : index
    %c0_22 = arith.constant 0 : index
    %c0_23 = arith.constant 0 : index
    %36 = vector.load %arg1[%c7, %c0_22, %c0_23] : memref<9x8x4xf32, #tpu.memory_space<vmem>>, vector<1x8x4xf32>
    %37 = vector.shape_cast %36 : vector<1x8x4xf32> to vector<8x4xf32>
    %cst_24 = arith.constant dense<0.000000e+00> : vector<8x1944xf32>
    %38 = tpu.matmul %37, %35, %cst_24 {dimension_numbers = #tpu.dot_dimension_numbers<[1], [0], [0], [1], [0, 0, 1, 1], [], []>} : vector<8x4xf32>, vector<4x1944xf32>, vector<8x1944xf32> -> vector<8x1944xf32>
    %39 = arith.addf %34, %38 : vector<8x1944xf32>
    %40 = vector.extract_strided_slice %0 {offsets = [0, 38], sizes = [4, 1944], strides = [1, 1]} : vector<4x2048xf32> to vector<4x1944xf32>
    %c8 = arith.constant 8 : index
    %c0_25 = arith.constant 0 : index
    %c0_26 = arith.constant 0 : index
    %41 = vector.load %arg1[%c8, %c0_25, %c0_26] : memref<9x8x4xf32, #tpu.memory_space<vmem>>, vector<1x8x4xf32>
    %42 = vector.shape_cast %41 : vector<1x8x4xf32> to vector<8x4xf32>
    %cst_27 = arith.constant dense<0.000000e+00> : vector<8x1944xf32>
    %43 = tpu.matmul %42, %40, %cst_27 {dimension_numbers = #tpu.dot_dimension_numbers<[1], [0], [0], [1], [0, 0, 1, 1], [], []>} : vector<8x4xf32>, vector<4x1944xf32>, vector<8x1944xf32> -> vector<8x1944xf32>
    %44 = arith.addf %39, %43 : vector<8x1944xf32>
    %c0_28 = arith.constant 0 : index
    %c0_29 = arith.constant 0 : index
    %45 = vector.load %arg2[%c0_28, %c0_29] : memref<8x1xf32, #tpu.memory_space<vmem>>, vector<8x1xf32>
    %46 = vector.broadcast %45 : vector<8x1xf32> to vector<8x1944xf32>
    %47 = arith.addf %44, %46 : vector<8x1944xf32>
    %cst_30 = arith.constant 0.000000e+00 : f32
    %48 = vector.broadcast %cst_30 : f32 to vector<8x1944xf32>
    %49 = arith.maximumf %47, %48 : vector<8x1944xf32>
    %c0_31 = arith.constant 0 : index
    %c0_32 = arith.constant 0 : index
    %50 = vector.load %arg3[%c0_31, %c0_32] : memref<6x1944xf32, #tpu.memory_space<vmem>>, vector<6x1944xf32>
    %cst_33 = arith.constant dense<0.000000e+00> : vector<6x8xf32>
    %51 = tpu.matmul %50, %49, %cst_33 {dimension_numbers = #tpu.dot_dimension_numbers<[1], [1], [0], [0], [0, 0, 1, 0], [], []>} : vector<6x1944xf32>, vector<8x1944xf32>, vector<6x8xf32> -> vector<6x8xf32>
    %c0_34 = arith.constant 0 : index
    %c0_35 = arith.constant 0 : index
    %52 = vector.load %arg4[%c0_34, %c0_35] : memref<4x8xf32, #tpu.memory_space<vmem>>, vector<4x8xf32>
    %cst_36 = arith.constant dense<0.000000e+00> : vector<6x4xf32>
    %53 = tpu.matmul %51, %52, %cst_36 {dimension_numbers = #tpu.dot_dimension_numbers<[1], [1], [0], [0], [0, 0, 1, 0], [], []>} : vector<6x8xf32>, vector<4x8xf32>, vector<6x4xf32> -> vector<6x4xf32>
    %c0_37 = arith.constant 0 : index
    %c0_38 = arith.constant 0 : index
    %54 = vector.load %arg5[%c0_37, %c0_38] : memref<1x4xf32, #tpu.memory_space<vmem>>, vector<1x4xf32>
    %55 = vector.broadcast %54 : vector<1x4xf32> to vector<6x4xf32>
    %56 = arith.addf %53, %55 : vector<6x4xf32>
    %cst_39 = arith.constant 0.000000e+00 : f32
    %57 = vector.broadcast %cst_39 : f32 to vector<6x4xf32>
    %58 = arith.maximumf %56, %57 : vector<6x4xf32>
    %59 = vector.extract_strided_slice %58 {offsets = [0, 0], sizes = [2, 4], strides = [1, 1]} : vector<6x4xf32> to vector<2x4xf32>
    %60 = vector.extract_strided_slice %58 {offsets = [2, 0], sizes = [2, 4], strides = [1, 1]} : vector<6x4xf32> to vector<2x4xf32>
    %61 = vector.extract_strided_slice %58 {offsets = [4, 0], sizes = [2, 4], strides = [1, 1]} : vector<6x4xf32> to vector<2x4xf32>
    %62 = tpu.concatenate %59, %60, %61 in 1 : vector<2x4xf32>, vector<2x4xf32>, vector<2x4xf32> -> vector<2x12xf32>
    %c0_40 = arith.constant 0 : index
    %c0_41 = arith.constant 0 : index
    %63 = vector.load %arg6[%c0_40, %c0_41] : memref<4x12xf32, #tpu.memory_space<vmem>>, vector<4x12xf32>
    %cst_42 = arith.constant dense<0.000000e+00> : vector<2x4xf32>
    %64 = tpu.matmul %62, %63, %cst_42 {dimension_numbers = #tpu.dot_dimension_numbers<[1], [1], [0], [0], [0, 0, 1, 0], [], []>} : vector<2x12xf32>, vector<4x12xf32>, vector<2x4xf32> -> vector<2x4xf32>
    %c0_43 = arith.constant 0 : index
    %c0_44 = arith.constant 0 : index
    %65 = vector.load %arg7[%c0_43, %c0_44] : memref<1x4xf32, #tpu.memory_space<vmem>>, vector<1x4xf32>
    %66 = vector.broadcast %65 : vector<1x4xf32> to vector<2x4xf32>
    %67 = arith.addf %64, %66 : vector<2x4xf32>
    %c0_45 = arith.constant 0 : index
    %c0_46 = arith.constant 0 : index
    %68 = vector.load %arg8[%c0_45, %c0_46] : memref<2x4xf32, #tpu.memory_space<vmem>>, vector<2x4xf32>
    tpu.vector_store %arg8[%c0_45, %c0_46], %67 {strides = array<i32>} : memref<2x4xf32, #tpu.memory_space<vmem>>, vector<2x4xf32>,
    return
  }
}

</mosaic_0001>

<llo_original>
// kernel: ms_no_flow_shared_forward.1
$region0: #{ms_no_flow_shared_forward.1}
  #allocation0 [shape = 'u32[]', space=smem, size = 0x4, offset = 0x4, fixed_abs, tag = 'smem constant byte address 0x4 - core index']
  #allocation1 [shape = 'u32[72,128]{1,0:T(1,128)}', space=vmem, size = 0x9000, scoped, tag = 'internal scratch']
  %s0 = inlined_call_operand.vmem [shape: f32[4,2048], index: 0, kind: input, shape index: {}]
  %s1 = inlined_call_operand.vmem [shape: f32[9,8,4], index: 1, kind: input, shape index: {}]
  %s2 = inlined_call_operand.vmem [shape: f32[8,1], index: 2, kind: input, shape index: {}]
  %s3 = inlined_call_operand.vmem [shape: f32[6,1944], index: 3, kind: input, shape index: {}]
  %s4 = inlined_call_operand.vmem [shape: f32[4,8], index: 4, kind: input, shape index: {}]
  %s5 = inlined_call_operand.vmem [shape: f32[1,4], index: 5, kind: input, shape index: {}]
  %s6 = inlined_call_operand.vmem [shape: f32[4,12], index: 6, kind: input, shape index: {}]
  %s7 = inlined_call_operand.vmem [shape: f32[1,4], index: 7, kind: input, shape index: {}]
  %s8 = inlined_call_operand.hbm [shape: f32[2,4], index: 8, kind: output, shape index: {}]
  %s9 = sld [smem:[#allocation0]]
  $region42: #{ms_no_flow_shared_forward.1} parent=0
    _
  %s11 = ssub.s32 1, %s9
  %s12 = scalar_select 0, %s11, %s9
  $region1: #{ms_no_flow_shared_forward.1} parent=0
    #allocation2 [shape = 'u8[1024]{0}', space=vmem, size = 0x400, scoped, tag = 'output window, operand 0, single buffered']
    #allocation3 [shape = 's32[1]{0}', space=sflag, size = 0x4, scoped, tag = 'scoped memory for ms_no_flow_shared_forward.1']
    %13 = vsyncpa [#allocation3], 0
    // Predicated region
    $region2: #{ms_no_flow_shared_forward.1} parent=1 // pred_check
      _
    $region3: #{ms_no_flow_shared_forward.1} parent=1 // pred_check_branch
      %15 = sbr.rel (0) target = $region5
    $region4: #{ms_no_flow_shared_forward.1} parent=1 // pred_region
      _
    $region5: #{ms_no_flow_shared_forward.1} parent=1 // pred_fallthru
      _
    // Predicated region
    $region6: #{ms_no_flow_shared_forward.1} parent=1 // pred_check
      _
    $region7: #{ms_no_flow_shared_forward.1} parent=1 // pred_check_branch
      %17 = sbr.rel (0) target = $region9
    $region8: #{ms_no_flow_shared_forward.1} parent=1 // pred_region
      _
    $region9: #{ms_no_flow_shared_forward.1} parent=1 // pred_fallthru
      _
    // Predicated region
    $region10: #{ms_no_flow_shared_forward.1} parent=1 // pred_check
      _
    $region11: #{ms_no_flow_shared_forward.1} parent=1 // pred_check_branch
      %19 = sbr.rel (0) target = $region13
    $region12: #{ms_no_flow_shared_forward.1} parent=1 // pred_region
      _
    $region13: #{ms_no_flow_shared_forward.1} parent=1 // pred_fallthru
      _
    // Predicated region
    $region14: #{ms_no_flow_shared_forward.1} parent=1 // pred_check
      _
    $region15: #{ms_no_flow_shared_forward.1} parent=1 // pred_check_branch
      %21 = sbr.rel (0) target = $region17
    $region16: #{ms_no_flow_shared_forward.1} parent=1 // pred_region
      _
    $region17: #{ms_no_flow_shared_forward.1} parent=1 // pred_fallthru
      _
    // Predicated region
    $region18: #{ms_no_flow_shared_forward.1} parent=1 // pred_check
      _
    $region19: #{ms_no_flow_shared_forward.1} parent=1 // pred_check_branch
      %23 = sbr.rel (0) target = $region21
    $region20: #{ms_no_flow_shared_forward.1} parent=1 // pred_region
      _
    $region21: #{ms_no_flow_shared_forward.1} parent=1 // pred_fallthru
      _
    // Predicated region
    $region22: #{ms_no_flow_shared_forward.1} parent=1 // pred_check
      _
    $region23: #{ms_no_flow_shared_forward.1} parent=1 // pred_check_branch
      %25 = sbr.rel (0) target = $region25
    $region24: #{ms_no_flow_shared_forward.1} parent=1 // pred_region
      _
    $region25: #{ms_no_flow_shared_forward.1} parent=1 // pred_fallthru
      _
    // Predicated region
    $region26: #{ms_no_flow_shared_forward.1} parent=1 // pred_check
      _
    $region27: #{ms_no_flow_shared_forward.1} parent=1 // pred_check_branch
      %27 = sbr.rel (0) target = $region29
    $region28: #{ms_no_flow_shared_forward.1} parent=1 // pred_region
      _
    $region29: #{ms_no_flow_shared_forward.1} parent=1 // pred_fallthru
      _
    // Predicated region
    $region30: #{ms_no_flow_shared_forward.1} parent=1 // pred_check
      _
    $region31: #{ms_no_flow_shared_forward.1} parent=1 // pred_check_branch
      %29 = sbr.rel (0) target = $region33
    $region32: #{ms_no_flow_shared_forward.1} parent=1 // pred_region
      _
    $region33: #{ms_no_flow_shared_forward.1} parent=1 // pred_fallthru
      _
    %v30 = vld [vmem:[%s0] sm:$0xff]
    %v31 = vld [vmem:[%s0 + $0x8] sm:$0xff]
    %v32 = vld [vmem:[%s0 + $0x10] sm:$0xff]
    %v33 = vld [vmem:[%s0 + $0x18] sm:$0xff]
    %v34 = vld [vmem:[%s0 + $0x20] sm:$0xff]
    %v35 = vld [vmem:[%s0 + $0x28] sm:$0xff]
    %v36 = vld [vmem:[%s0 + $0x30] sm:$0xff]
    %v37 = vld [vmem:[%s0 + $0x38] sm:$0xff]
    %v38 = vld [vmem:[%s1] sm:$0xff]
    %s39 = scalar_lea.vmem %s1, 8
    %v40 = vld [vmem:[%s39] sm:$0xff]
    %49 = vst [vmem:[#allocation1] ss:$2 sm:$0xff] %v30
    %s50 = scalar_lea.vmem [#allocation1], 16
    %51 = vst [vmem:[%s50] ss:$2 sm:$0xff] %v31
    %s52 = scalar_lea.vmem [#allocation1], 32
    %53 = vst [vmem:[%s52] ss:$2 sm:$0xff] %v32
    %s54 = scalar_lea.vmem [#allocation1], 48
    %55 = vst [vmem:[%s54] ss:$2 sm:$0xff] %v33
    %v56 = vld.sshfl [vmem:[#allocation1] sm:$0xff pattern:$0x75316420]
    %v57 = vld.sshfl [vmem:[#allocation1 + $0x8] sm:$0xff pattern:$0x75316420]
    %v58 = vld.sshfl [vmem:[#allocation1 + $0x10] sm:$0xff pattern:$0x75316420]
    %v59 = vld.sshfl [vmem:[#allocation1 + $0x18] sm:$0xff pattern:$0x75316420]
    %v60 = vld.sshfl [vmem:[#allocation1 + $0x20] sm:$0xff pattern:$0x75316420]
    %v61 = vld.sshfl [vmem:[#allocation1 + $0x28] sm:$0xff pattern:$0x75316420]
    %v62 = vld.sshfl [vmem:[#allocation1 + $0x30] sm:$0xff pattern:$0x75316420]
    %v63 = vld.sshfl [vmem:[#allocation1 + $0x38] sm:$0xff pattern:$0x75316420]
    %64 = vst [vmem:[#allocation1] ss:$2 sm:$0xff] %v34
    %65 = vst [vmem:[%s50] ss:$2 sm:$0xff] %v35
    %66 = vst [vmem:[%s52] ss:$2 sm:$0xff] %v36
    %67 = vst [vmem:[%s54] ss:$2 sm:$0xff] %v37
    %v68 = vld.sshfl [vmem:[#allocation1] sm:$0xff pattern:$0x75316420]
    %v69 = vld.sshfl [vmem:[#allocation1 + $0x8] sm:$0xff pattern:$0x75316420]
    %v70 = vld.sshfl [vmem:[#allocation1 + $0x10] sm:$0xff pattern:$0x75316420]
    %v71 = vld.sshfl [vmem:[#allocation1 + $0x18] sm:$0xff pattern:$0x75316420]
    %v72 = vld.sshfl [vmem:[#allocation1 + $0x20] sm:$0xff pattern:$0x75316420]
    %v73 = vld.sshfl [vmem:[#allocation1 + $0x28] sm:$0xff pattern:$0x75316420]
    %v74 = vld.sshfl [vmem:[#allocation1 + $0x30] sm:$0xff pattern:$0x75316420]
    %v75 = vld.sshfl [vmem:[#allocation1 + $0x38] sm:$0xff pattern:$0x75316420]
    %76 = vrot.lane.b32.xlu0 %v56, 127
    %v77 = vpop.permute.xlu0 %76
    %78 = vrot.lane.b32.xlu0 %v57, 127
    %v79 = vpop.permute.xlu0 %78
    %80 = vrot.lane.b32.xlu0 %v58, 127
    %v81 = vpop.permute.xlu0 %80
    %82 = vrot.lane.b32.xlu0 %v59, 127
    %v83 = vpop.permute.xlu0 %82
    %84 = vrot.lane.b32.xlu0 %v60, 127
    %v85 = vpop.permute.xlu0 %84
    %86 = vrot.lane.b32.xlu0 %v61, 127
    %v87 = vpop.permute.xlu0 %86
    %88 = vrot.lane.b32.xlu0 %v62, 127
    %v89 = vpop.permute.xlu0 %88
    %90 = vrot.lane.b32.xlu0 %v63, 127
    %v91 = vpop.permute.xlu0 %90
    %92 = vrot.lane.b32.xlu0 %v68, 127
    %v93 = vpop.permute.xlu0 %92
    %94 = vrot.lane.b32.xlu0 %v69, 127
    %v95 = vpop.permute.xlu0 %94
    %96 = vrot.lane.b32.xlu0 %v70, 127
    %v97 = vpop.permute.xlu0 %96
    %98 = vrot.lane.b32.xlu0 %v71, 127
    %v99 = vpop.permute.xlu0 %98
    %100 = vrot.lane.b32.xlu0 %v72, 127
    %v101 = vpop.permute.xlu0 %100
    %102 = vrot.lane.b32.xlu0 %v73, 127
    %v103 = vpop.permute.xlu0 %102
    %104 = vrot.lane.b32.xlu0 %v74, 127
    %v105 = vpop.permute.xlu0 %104
    %106 = vrot.lane.b32.xlu0 %v75, 127
    %v107 = vpop.permute.xlu0 %106
    %vm108 = vcmask 1039360
    %v109 = vsel %vm108, %v77, %v79
    %v110 = vsel %vm108, %v79, %v81
    %v111 = vsel %vm108, %v81, %v83
    %v112 = vsel %vm108, %v83, %v85
    %v113 = vsel %vm108, %v85, %v87
    %v114 = vsel %vm108, %v87, %v89
    %v115 = vsel %vm108, %v89, %v91
    %v116 = vsel %vm108, %v91, %v93
    %v117 = vsel %vm108, %v93, %v95
    %v118 = vsel %vm108, %v95, %v97
    %v119 = vsel %vm108, %v97, %v99
    %v120 = vsel %vm108, %v99, %v101
    %v121 = vsel %vm108, %v101, %v103
    %v122 = vsel %vm108, %v103, %v105
    %v123 = vsel %vm108, %v105, %v107
    %vm124 = vcmask 31744
    %v126 = vsel %vm124, %v40, 0
    %vm128 = vcmask 1043456
    %v129 = vsel %vm128, %v109, 0
    %v131 = vsel %vm128, %v110, 0
    %v133 = vsel %vm128, %v111, 0
    %v135 = vsel %vm128, %v112, 0
    %v137 = vsel %vm128, %v113, 0
    %v139 = vsel %vm128, %v114, 0
    %v141 = vsel %vm128, %v115, 0
    %v143 = vsel %vm128, %v116, 0
    %v145 = vsel %vm128, %v117, 0
    %v147 = vsel %vm128, %v118, 0
    %v149 = vsel %vm128, %v119, 0
    %v151 = vsel %vm128, %v120, 0
    %v153 = vsel %vm128, %v121, 0
    %v155 = vsel %vm128, %v122, 0
    %v157 = vsel %vm128, %v123, 0
    %v159 = vsel %vm128, %v107, 0
    %161 = vmatpush.msra.mxu0 0.0
    %162 = vmatpush.msra.mxu0 0.0
    %163 = vmatpush.msra.mxu0 0.0
    %164 = vmatpush.msra.mxu0 0.0
    %165 = vmatpush.msra.mxu0 0.0
    %166 = vmatpush.msra.mxu0 0.0
    %167 = vmatpush.msra.mxu0 0.0
    %168 = vmatpush.msra.mxu0 0.0
    %169 = vmatpush.msra.mxu0 0.0
    %170 = vmatpush.msra.mxu0 0.0
    %171 = vmatpush.msra.mxu0 0.0
    %172 = vmatpush.msra.mxu0 0.0
    %173 = vmatpush.msra.mxu0 0.0
    %174 = vmatpush.msra.mxu0 0.0
    %175 = vmatpush.msra.mxu0 0.0
    %176 = vmatpush.msra.mxu0 %v129
    %177 = vmatmul.f32.gmra.mxu0 %v126
    %v178 = vpop.f32.mrf.mxu0
    %v179 = vadd.f32 0.0, %v178
    %180 = vdwg.mxu0
    %181 = vmatpush.msra.mxu0 0.0
    %182 = vmatpush.msra.mxu0 0.0
    %183 = vmatpush.msra.mxu0 0.0
    %184 = vmatpush.msra.mxu0 0.0
    %185 = vmatpush.msra.mxu0 0.0
    %186 = vmatpush.msra.mxu0 0.0
    %187 = vmatpush.msra.mxu0 0.0
    %188 = vmatpush.msra.mxu0 0.0
    %189 = vmatpush.msra.mxu0 0.0
    %190 = vmatpush.msra.mxu0 0.0
    %191 = vmatpush.msra.mxu0 0.0
    %192 = vmatpush.msra.mxu0 0.0
    %193 = vmatpush.msra.mxu0 0.0
    %194 = vmatpush.msra.mxu0 0.0
    %195 = vmatpush.msra.mxu0 0.0
    %196 = vmatpush.msra.mxu0 %v131
    %197 = vmatmul.f32.gmra.mxu0 %v126
    %v198 = vpop.f32.mrf.mxu0
    %v199 = vadd.f32 0.0, %v198
    %200 = vdwg.mxu0
    %201 = vmatpush.msra.mxu0 0.0
    %202 = vmatpush.msra.mxu0 0.0
    %203 = vmatpush.msra.mxu0 0.0
    %204 = vmatpush.msra.mxu0 0.0
    %205 = vmatpush.msra.mxu0 0.0
    %206 = vmatpush.msra.mxu0 0.0
    %207 = vmatpush.msra.mxu0 0.0
    %208 = vmatpush.msra.mxu0 0.0
    %209 = vmatpush.msra.mxu0 0.0
    %210 = vmatpush.msra.mxu0 0.0
    %211 = vmatpush.msra.mxu0 0.0
    %212 = vmatpush.msra.mxu0 0.0
    %213 = vmatpush.msra.mxu0 0.0
    %214 = vmatpush.msra.mxu0 0.0
    %215 = vmatpush.msra.mxu0 0.0
    %216 = vmatpush.msra.mxu0 %v133
    %217 = vmatmul.f32.gmra.mxu0 %v126
    %v218 = vpop.f32.mrf.mxu0
    %v219 = vadd.f32 0.0, %v218
    %220 = vdwg.mxu0
    %221 = vmatpush.msra.mxu0 0.0
    %222 = vmatpush.msra.mxu0 0.0
    %223 = vmatpush.msra.mxu0 0.0
    %224 = vmatpush.msra.mxu0 0.0
    %225 = vmatpush.msra.mxu0 0.0
    %226 = vmatpush.msra.mxu0 0.0
    %227 = vmatpush.msra.mxu0 0.0
    %228 = vmatpush.msra.mxu0 0.0
    %229 = vmatpush.msra.mxu0 0.0
    %230 = vmatpush.msra.mxu0 0.0
    %231 = vmatpush.msra.mxu0 0.0
    %232 = vmatpush.msra.mxu0 0.0
    %233 = vmatpush.msra.mxu0 0.0
    %234 = vmatpush.msra.mxu0 0.0
    %235 = vmatpush.msra.mxu0 0.0
    %236 = vmatpush.msra.mxu0 %v135
    %237 = vmatmul.f32.gmra.mxu0 %v126
    %v238 = vpop.f32.mrf.mxu0
    %v239 = vadd.f32 0.0, %v238
    %240 = vdwg.mxu0
    %241 = vmatpush.msra.mxu0 0.0
    %242 = vmatpush.msra.mxu0 0.0
    %243 = vmatpush.msra.mxu0 0.0
    %244 = vmatpush.msra.mxu0 0.0
    %245 = vmatpush.msra.mxu0 0.0
    %246 = vmatpush.msra.mxu0 0.0
    %247 = vmatpush.msra.mxu0 0.0
    %248 = vmatpush.msra.mxu0 0.0
    %249 = vmatpush.msra.mxu0 0.0
    %250 = vmatpush.msra.mxu0 0.0
    %251 = vmatpush.msra.mxu0 0.0
    %252 = vmatpush.msra.mxu0 0.0
    %253 = vmatpush.msra.mxu0 0.0
    %254 = vmatpush.msra.mxu0 0.0
    %255 = vmatpush.msra.mxu0 0.0
    %256 = vmatpush.msra.mxu0 %v137
    %257 = vmatmul.f32.gmra.mxu0 %v126
    %v258 = vpop.f32.mrf.mxu0
    %v259 = vadd.f32 0.0, %v258
    %260 = vdwg.mxu0
    %261 = vmatpush.msra.mxu0 0.0
    %262 = vmatpush.msra.mxu0 0.0
    %263 = vmatpush.msra.mxu0 0.0
    %264 = vmatpush.msra.mxu0 0.0
    %265 = vmatpush.msra.mxu0 0.0
    %266 = vmatpush.msra.mxu0 0.0
    %267 = vmatpush.msra.mxu0 0.0
    %268 = vmatpush.msra.mxu0 0.0
    %269 = vmatpush.msra.mxu0 0.0
    %270 = vmatpush.msra.mxu0 0.0
    %271 = vmatpush.msra.mxu0 0.0
    %272 = vmatpush.msra.mxu0 0.0
    %273 = vmatpush.msra.mxu0 0.0
    %274 = vmatpush.msra.mxu0 0.0
    %275 = vmatpush.msra.mxu0 0.0
    %276 = vmatpush.msra.mxu0 %v139
    %277 = vmatmul.f32.gmra.mxu0 %v126
    %v278 = vpop.f32.mrf.mxu0
    %v279 = vadd.f32 0.0, %v278
    %280 = vdwg.mxu0
    %281 = vmatpush.msra.mxu0 0.0
    %282 = vmatpush.msra.mxu0 0.0
    %283 = vmatpush.msra.mxu0 0.0
    %284 = vmatpush.msra.mxu0 0.0
    %285 = vmatpush.msra.mxu0 0.0
    %286 = vmatpush.msra.mxu0 0.0
    %287 = vmatpush.msra.mxu0 0.0
    %288 = vmatpush.msra.mxu0 0.0
    %289 = vmatpush.msra.mxu0 0.0
    %290 = vmatpush.msra.mxu0 0.0
    %291 = vmatpush.msra.mxu0 0.0
    %292 = vmatpush.msra.mxu0 0.0
    %293 = vmatpush.msra.mxu0 0.0
    %294 = vmatpush.msra.mxu0 0.0
    %295 = vmatpush.msra.mxu0 0.0
    %296 = vmatpush.msra.mxu0 %v141
    %297 = vmatmul.f32.gmra.mxu0 %v126
    %v298 = vpop.f32.mrf.mxu0
    %v299 = vadd.f32 0.0, %v298
    %300 = vdwg.mxu0
    %301 = vmatpush.msra.mxu0 0.0
    %302 = vmatpush.msra.mxu0 0.0
    %303 = vmatpush.msra.mxu0 0.0
    %304 = vmatpush.msra.mxu0 0.0
    %305 = vmatpush.msra.mxu0 0.0
    %306 = vmatpush.msra.mxu0 0.0
    %307 = vmatpush.msra.mxu0 0.0
    %308 = vmatpush.msra.mxu0 0.0
    %309 = vmatpush.msra.mxu0 0.0
    %310 = vmatpush.msra.mxu0 0.0
    %311 = vmatpush.msra.mxu0 0.0
    %312 = vmatpush.msra.mxu0 0.0
    %313 = vmatpush.msra.mxu0 0.0
    %314 = vmatpush.msra.mxu0 0.0
    %315 = vmatpush.msra.mxu0 0.0
    %316 = vmatpush.msra.mxu0 %v143
    %317 = vmatmul.f32.gmra.mxu0 %v126
    %v318 = vpop.f32.mrf.mxu0
    %v319 = vadd.f32 0.0, %v318
    %320 = vdwg.mxu0
    %321 = vmatpush.msra.mxu0 0.0
    %322 = vmatpush.msra.mxu0 0.0
    %323 = vmatpush.msra.mxu0 0.0
    %324 = vmatpush.msra.mxu0 0.0
    %325 = vmatpush.msra.mxu0 0.0
    %326 = vmatpush.msra.mxu0 0.0
    %327 = vmatpush.msra.mxu0 0.0
    %328 = vmatpush.msra.mxu0 0.0
    %329 = vmatpush.msra.mxu0 0.0
    %330 = vmatpush.msra.mxu0 0.0
    %331 = vmatpush.msra.mxu0 0.0
    %332 = vmatpush.msra.mxu0 0.0
    %333 = vmatpush.msra.mxu0 0.0
    %334 = vmatpush.msra.mxu0 0.0
    %335 = vmatpush.msra.mxu0 0.0
    %336 = vmatpush.msra.mxu0 %v145
    %337 = vmatmul.f32.gmra.mxu0 %v126
    %v338 = vpop.f32.mrf.mxu0
    %v339 = vadd.f32 0.0, %v338
    %340 = vdwg.mxu0
    %341 = vmatpush.msra.mxu0 0.0
    %342 = vmatpush.msra.mxu0 0.0
    %343 = vmatpush.msra.mxu0 0.0
    %344 = vmatpush.msra.mxu0 0.0
    %345 = vmatpush.msra.mxu0 0.0
    %346 = vmatpush.msra.mxu0 0.0
    %347 = vmatpush.msra.mxu0 0.0
    %348 = vmatpush.msra.mxu0 0.0
    %349 = vmatpush.msra.mxu0 0.0
    %350 = vmatpush.msra.mxu0 0.0
    %351 = vmatpush.msra.mxu0 0.0
    %352 = vmatpush.msra.mxu0 0.0
    %353 = vmatpush.msra.mxu0 0.0
    %354 = vmatpush.msra.mxu0 0.0
    %355 = vmatpush.msra.mxu0 0.0
    %356 = vmatpush.msra.mxu0 %v147
    %357 = vmatmul.f32.gmra.mxu0 %v126
    %v358 = vpop.f32.mrf.mxu0
    %v359 = vadd.f32 0.0, %v358
    %360 = vdwg.mxu0
    %361 = vmatpush.msra.mxu0 0.0
    %362 = vmatpush.msra.mxu0 0.0
    %363 = vmatpush.msra.mxu0 0.0
    %364 = vmatpush.msra.mxu0 0.0
    %365 = vmatpush.msra.mxu0 0.0
    %366 = vmatpush.msra.mxu0 0.0
    %367 = vmatpush.msra.mxu0 0.0
    %368 = vmatpush.msra.mxu0 0.0
    %369 = vmatpush.msra.mxu0 0.0
    %370 = vmatpush.msra.mxu0 0.0
    %371 = vmatpush.msra.mxu0 0.0
    %372 = vmatpush.msra.mxu0 0.0
    %373 = vmatpush.msra.mxu0 0.0
    %374 = vmatpush.msra.mxu0 0.0
    %375 = vmatpush.msra.mxu0 0.0
    %376 = vmatpush.msra.mxu0 %v149
    %377 = vmatmul.f32.gmra.mxu0 %v126
    %v378 = vpop.f32.mrf.mxu0
    %v379 = vadd.f32 0.0, %v378
    %380 = vdwg.mxu0
    %381 = vmatpush.msra.mxu0 0.0
    %382 = vmatpush.msra.mxu0 0.0
    %383 = vmatpush.msra.mxu0 0.0
    %384 = vmatpush.msra.mxu0 0.0
    %385 = vmatpush.msra.mxu0 0.0
    %386 = vmatpush.msra.mxu0 0.0
    %387 = vmatpush.msra.mxu0 0.0
    %388 = vmatpush.msra.mxu0 0.0
    %389 = vmatpush.msra.mxu0 0.0
    %390 = vmatpush.msra.mxu0 0.0
    %391 = vmatpush.msra.mxu0 0.0
    %392 = vmatpush.msra.mxu0 0.0
    %393 = vmatpush.msra.mxu0 0.0
    %394 = vmatpush.msra.mxu0 0.0
    %395 = vmatpush.msra.mxu0 0.0
    %396 = vmatpush.msra.mxu0 %v151
    %397 = vmatmul.f32.gmra.mxu0 %v126
    %v398 = vpop.f32.mrf.mxu0
    %v399 = vadd.f32 0.0, %v398
    %400 = vdwg.mxu0
    %401 = vmatpush.msra.mxu0 0.0
    %402 = vmatpush.msra.mxu0 0.0
    %403 = vmatpush.msra.mxu0 0.0
    %404 = vmatpush.msra.mxu0 0.0
    %405 = vmatpush.msra.mxu0 0.0
    %406 = vmatpush.msra.mxu0 0.0
    %407 = vmatpush.msra.mxu0 0.0
    %408 = vmatpush.msra.mxu0 0.0
    %409 = vmatpush.msra.mxu0 0.0
    %410 = vmatpush.msra.mxu0 0.0
    %411 = vmatpush.msra.mxu0 0.0
    %412 = vmatpush.msra.mxu0 0.0
    %413 = vmatpush.msra.mxu0 0.0
    %414 = vmatpush.msra.mxu0 0.0
    %415 = vmatpush.msra.mxu0 0.0
    %416 = vmatpush.msra.mxu0 %v153
    %417 = vmatmul.f32.gmra.mxu0 %v126
    %v418 = vpop.f32.mrf.mxu0
    %v419 = vadd.f32 0.0, %v418
    %420 = vdwg.mxu0
    %421 = vmatpush.msra.mxu0 0.0
    %422 = vmatpush.msra.mxu0 0.0
    %423 = vmatpush.msra.mxu0 0.0
    %424 = vmatpush.msra.mxu0 0.0
    %425 = vmatpush.msra.mxu0 0.0
    %426 = vmatpush.msra.mxu0 0.0
    %427 = vmatpush.msra.mxu0 0.0
    %428 = vmatpush.msra.mxu0 0.0
    %429 = vmatpush.msra.mxu0 0.0
    %430 = vmatpush.msra.mxu0 0.0
    %431 = vmatpush.msra.mxu0 0.0
    %432 = vmatpush.msra.mxu0 0.0
    %433 = vmatpush.msra.mxu0 0.0
    %434 = vmatpush.msra.mxu0 0.0
    %435 = vmatpush.msra.mxu0 0.0
    %436 = vmatpush.msra.mxu0 %v155
    %437 = vmatmul.f32.gmra.mxu0 %v126
    %v438 = vpop.f32.mrf.mxu0
    %v439 = vadd.f32 0.0, %v438
    %440 = vdwg.mxu0
    %441 = vmatpush.msra.mxu0 0.0
    %442 = vmatpush.msra.mxu0 0.0
    %443 = vmatpush.msra.mxu0 0.0
    %444 = vmatpush.msra.mxu0 0.0
    %445 = vmatpush.msra.mxu0 0.0
    %446 = vmatpush.msra.mxu0 0.0
    %447 = vmatpush.msra.mxu0 0.0
    %448 = vmatpush.msra.mxu0 0.0
    %449 = vmatpush.msra.mxu0 0.0
    %450 = vmatpush.msra.mxu0 0.0
    %451 = vmatpush.msra.mxu0 0.0
    %452 = vmatpush.msra.mxu0 0.0
    %453 = vmatpush.msra.mxu0 0.0
    %454 = vmatpush.msra.mxu0 0.0
    %455 = vmatpush.msra.mxu0 0.0
    %456 = vmatpush.msra.mxu0 %v157
    %457 = vmatmul.f32.gmra.mxu0 %v126
    %v458 = vpop.f32.mrf.mxu0
    %v459 = vadd.f32 0.0, %v458
    %460 = vdwg.mxu0
    %461 = vmatpush.msra.mxu0 0.0
    %462 = vmatpush.msra.mxu0 0.0
    %463 = vmatpush.msra.mxu0 0.0
    %464 = vmatpush.msra.mxu0 0.0
    %465 = vmatpush.msra.mxu0 0.0
    %466 = vmatpush.msra.mxu0 0.0
    %467 = vmatpush.msra.mxu0 0.0
    %468 = vmatpush.msra.mxu0 0.0
    %469 = vmatpush.msra.mxu0 0.0
    %470 = vmatpush.msra.mxu0 0.0
    %471 = vmatpush.msra.mxu0 0.0
    %472 = vmatpush.msra.mxu0 0.0
    %473 = vmatpush.msra.mxu0 0.0
    %474 = vmatpush.msra.mxu0 0.0
    %475 = vmatpush.msra.mxu0 0.0
    %476 = vmatpush.msra.mxu0 %v159
    %477 = vmatmul.f32.gmra.mxu0 %v126
    %v478 = vpop.f32.mrf.mxu0
    %v479 = vadd.f32 0.0, %v478
    %480 = vdwg.mxu0
    %481 = vst [vmem:[#allocation1] ss:$2 sm:$0xff] %v30
    %s482 = scalar_lea.vmem [#allocation1], 16
    %483 = vst [vmem:[%s482] ss:$2 sm:$0xff] %v31
    %s484 = scalar_lea.vmem [#allocation1], 32
    %485 = vst [vmem:[%s484] ss:$2 sm:$0xff] %v32
    %s486 = scalar_lea.vmem [#allocation1], 48
    %487 = vst [vmem:[%s486] ss:$2 sm:$0xff] %v33
    %v488 = vld.sshfl [vmem:[#allocation1] sm:$0xff pattern:$0x75316420]
    %v489 = vld.sshfl [vmem:[#allocation1 + $0x8] sm:$0xff pattern:$0x75316420]
    %v490 = vld.sshfl [vmem:[#allocation1 + $0x10] sm:$0xff pattern:$0x75316420]
    %v491 = vld.sshfl [vmem:[#allocation1 + $0x18] sm:$0xff pattern:$0x75316420]
    %v492 = vld.sshfl [vmem:[#allocation1 + $0x20] sm:$0xff pattern:$0x75316420]
    %v493 = vld.sshfl [vmem:[#allocation1 + $0x28] sm:$0xff pattern:$0x75316420]
    %v494 = vld.sshfl [vmem:[#allocation1 + $0x30] sm:$0xff pattern:$0x75316420]
    %v495 = vld.sshfl [vmem:[#allocation1 + $0x38] sm:$0xff pattern:$0x75316420]
    %496 = vst [vmem:[#allocation1] ss:$2 sm:$0xff] %v34
    %497 = vst [vmem:[%s482] ss:$2 sm:$0xff] %v35
    %498 = vst [vmem:[%s484] ss:$2 sm:$0xff] %v36
    %499 = vst [vmem:[%s486] ss:$2 sm:$0xff] %v37
    %v500 = vld.sshfl [vmem:[#allocation1] sm:$0xff pattern:$0x75316420]
    %v501 = vld.sshfl [vmem:[#allocation1 + $0x8] sm:$0xff pattern:$0x75316420]
    %v502 = vld.sshfl [vmem:[#allocation1 + $0x10] sm:$0xff pattern:$0x75316420]
    %v503 = vld.sshfl [vmem:[#allocation1 + $0x18] sm:$0xff pattern:$0x75316420]
    %v504 = vld.sshfl [vmem:[#allocation1 + $0x20] sm:$0xff pattern:$0x75316420]
    %v505 = vld.sshfl [vmem:[#allocation1 + $0x28] sm:$0xff pattern:$0x75316420]
    %v506 = vld.sshfl [vmem:[#allocation1 + $0x30] sm:$0xff pattern:$0x75316420]
    %v507 = vld.sshfl [vmem:[#allocation1 + $0x38] sm:$0xff pattern:$0x75316420]
    %v509 = vsel %vm124, %v38, 0
    %v511 = vsel %vm128, %v488, 0
    %v513 = vsel %vm128, %v489, 0
    %v515 = vsel %vm128, %v490, 0
    %v517 = vsel %vm128, %v491, 0
    %v519 = vsel %vm128, %v492, 0
    %v521 = vsel %vm128, %v493, 0
    %v523 = vsel %vm128, %v494, 0
    %v525 = vsel %vm128, %v495, 0
    %v527 = vsel %vm128, %v500, 0
    %v529 = vsel %vm128, %v501, 0
    %v531 = vsel %vm128, %v502, 0
    %v533 = vsel %vm128, %v503, 0
    %v535 = vsel %vm128, %v504, 0
    %v537 = vsel %vm128, %v505, 0
    %v539 = vsel %vm128, %v506, 0
    %v541 = vsel %vm128, %v507, 0
    %543 = vmatpush.msra.mxu0 0.0
    %544 = vmatpush.msra.mxu0 0.0
    %545 = vmatpush.msra.mxu0 0.0
    %546 = vmatpush.msra.mxu0 0.0
    %547 = vmatpush.msra.mxu0 0.0
    %548 = vmatpush.msra.mxu0 0.0
    %549 = vmatpush.msra.mxu0 0.0
    %550 = vmatpush.msra.mxu0 0.0
    %551 = vmatpush.msra.mxu0 0.0
    %552 = vmatpush.msra.mxu0 0.0
    %553 = vmatpush.msra.mxu0 0.0
    %554 = vmatpush.msra.mxu0 0.0
    %555 = vmatpush.msra.mxu0 0.0
    %556 = vmatpush.msra.mxu0 0.0
    %557 = vmatpush.msra.mxu0 0.0
    %558 = vmatpush.msra.mxu0 %v511
    %559 = vmatmul.f32.gmra.mxu0 %v509
    %v560 = vpop.f32.mrf.mxu0
    %v561 = vadd.f32 %v179, %v560
    %562 = vdwg.mxu0
    %563 = vmatpush.msra.mxu0 0.0
    %564 = vmatpush.msra.mxu0 0.0
    %565 = vmatpush.msra.mxu0 0.0
    %566 = vmatpush.msra.mxu0 0.0
    %567 = vmatpush.msra.mxu0 0.0
    %568 = vmatpush.msra.mxu0 0.0
    %569 = vmatpush.msra.mxu0 0.0
    %570 = vmatpush.msra.mxu0 0.0
    %571 = vmatpush.msra.mxu0 0.0
    %572 = vmatpush.msra.mxu0 0.0
    %573 = vmatpush.msra.mxu0 0.0
    %574 = vmatpush.msra.mxu0 0.0
    %575 = vmatpush.msra.mxu0 0.0
    %576 = vmatpush.msra.mxu0 0.0
    %577 = vmatpush.msra.mxu0 0.0
    %578 = vmatpush.msra.mxu0 %v513
    %579 = vmatmul.f32.gmra.mxu0 %v509
    %v580 = vpop.f32.mrf.mxu0
    %v581 = vadd.f32 %v199, %v580
    %582 = vdwg.mxu0
    %583 = vmatpush.msra.mxu0 0.0
    %584 = vmatpush.msra.mxu0 0.0
    %585 = vmatpush.msra.mxu0 0.0
    %586 = vmatpush.msra.mxu0 0.0
    %587 = vmatpush.msra.mxu0 0.0
    %588 = vmatpush.msra.mxu0 0.0
    %589 = vmatpush.msra.mxu0 0.0
    %590 = vmatpush.msra.mxu0 0.0
    %591 = vmatpush.msra.mxu0 0.0
    %592 = vmatpush.msra.mxu0 0.0
    %593 = vmatpush.msra.mxu0 0.0
    %594 = vmatpush.msra.mxu0 0.0
    %595 = vmatpush.msra.mxu0 0.0
    %596 = vmatpush.msra.mxu0 0.0
    %597 = vmatpush.msra.mxu0 0.0
    %598 = vmatpush.msra.mxu0 %v515
    %599 = vmatmul.f32.gmra.mxu0 %v509
    %v600 = vpop.f32.mrf.mxu0
    %v601 = vadd.f32 %v219, %v600
    %602 = vdwg.mxu0
    %603 = vmatpush.msra.mxu0 0.0
    %604 = vmatpush.msra.mxu0 0.0
    %605 = vmatpush.msra.mxu0 0.0
    %606 = vmatpush.msra.mxu0 0.0
    %607 = vmatpush.msra.mxu0 0.0
    %608 = vmatpush.msra.mxu0 0.0
    %609 = vmatpush.msra.mxu0 0.0
    %610 = vmatpush.msra.mxu0 0.0
    %611 = vmatpush.msra.mxu0 0.0
    %612 = vmatpush.msra.mxu0 0.0
    %613 = vmatpush.msra.mxu0 0.0
    %614 = vmatpush.msra.mxu0 0.0
    %615 = vmatpush.msra.mxu0 0.0
    %616 = vmatpush.msra.mxu0 0.0
    %617 = vmatpush.msra.mxu0 0.0
    %618 = vmatpush.msra.mxu0 %v517
    %619 = vmatmul.f32.gmra.mxu0 %v509
    %v620 = vpop.f32.mrf.mxu0
    %v621 = vadd.f32 %v239, %v620
    %622 = vdwg.mxu0
    %623 = vmatpush.msra.mxu0 0.0
    %624 = vmatpush.msra.mxu0 0.0
    %625 = vmatpush.msra.mxu0 0.0
    %626 = vmatpush.msra.mxu0 0.0
    %627 = vmatpush.msra.mxu0 0.0
    %628 = vmatpush.msra.mxu0 0.0
    %629 = vmatpush.msra.mxu0 0.0
    %630 = vmatpush.msra.mxu0 0.0
    %631 = vmatpush.msra.mxu0 0.0
    %632 = vmatpush.msra.mxu0 0.0
    %633 = vmatpush.msra.mxu0 0.0
    %634 = vmatpush.msra.mxu0 0.0
    %635 = vmatpush.msra.mxu0 0.0
    %636 = vmatpush.msra.mxu0 0.0
    %637 = vmatpush.msra.mxu0 0.0
    %638 = vmatpush.msra.mxu0 %v519
    %639 = vmatmul.f32.gmra.mxu0 %v509
    %v640 = vpop.f32.mrf.mxu0
    %v641 = vadd.f32 %v259, %v640
    %642 = vdwg.mxu0
    %643 = vmatpush.msra.mxu0 0.0
    %644 = vmatpush.msra.mxu0 0.0
    %645 = vmatpush.msra.mxu0 0.0
    %646 = vmatpush.msra.mxu0 0.0
    %647 = vmatpush.msra.mxu0 0.0
    %648 = vmatpush.msra.mxu0 0.0
    %649 = vmatpush.msra.mxu0 0.0
    %650 = vmatpush.msra.mxu0 0.0
    %651 = vmatpush.msra.mxu0 0.0
    %652 = vmatpush.msra.mxu0 0.0
    %653 = vmatpush.msra.mxu0 0.0
    %654 = vmatpush.msra.mxu0 0.0
    %655 = vmatpush.msra.mxu0 0.0
    %656 = vmatpush.msra.mxu0 0.0
    %657 = vmatpush.msra.mxu0 0.0
    %658 = vmatpush.msra.mxu0 %v521
    %659 = vmatmul.f32.gmra.mxu0 %v509
    %v660 = vpop.f32.mrf.mxu0
    %v661 = vadd.f32 %v279, %v660
    %662 = vdwg.mxu0
    %663 = vmatpush.msra.mxu0 0.0
    %664 = vmatpush.msra.mxu0 0.0
    %665 = vmatpush.msra.mxu0 0.0
    %666 = vmatpush.msra.mxu0 0.0
    %667 = vmatpush.msra.mxu0 0.0
    %668 = vmatpush.msra.mxu0 0.0
    %669 = vmatpush.msra.mxu0 0.0
    %670 = vmatpush.msra.mxu0 0.0
    %671 = vmatpush.msra.mxu0 0.0
    %672 = vmatpush.msra.mxu0 0.0
    %673 = vmatpush.msra.mxu0 0.0
    %674 = vmatpush.msra.mxu0 0.0
    %675 = vmatpush.msra.mxu0 0.0
    %676 = vmatpush.msra.mxu0 0.0
    %677 = vmatpush.msra.mxu0 0.0
    %678 = vmatpush.msra.mxu0 %v523
    %679 = vmatmul.f32.gmra.mxu0 %v509
    %v680 = vpop.f32.mrf.mxu0
    %v681 = vadd.f32 %v299, %v680
    %682 = vdwg.mxu0
    %683 = vmatpush.msra.mxu0 0.0
    %684 = vmatpush.msra.mxu0 0.0
    %685 = vmatpush.msra.mxu0 0.0
    %686 = vmatpush.msra.mxu0 0.0
    %687 = vmatpush.msra.mxu0 0.0
    %688 = vmatpush.msra.mxu0 0.0
    %689 = vmatpush.msra.mxu0 0.0
    %690 = vmatpush.msra.mxu0 0.0
    %691 = vmatpush.msra.mxu0 0.0
    %692 = vmatpush.msra.mxu0 0.0
    %693 = vmatpush.msra.mxu0 0.0
    %694 = vmatpush.msra.mxu0 0.0
    %695 = vmatpush.msra.mxu0 0.0
    %696 = vmatpush.msra.mxu0 0.0
    %697 = vmatpush.msra.mxu0 0.0
    %698 = vmatpush.msra.mxu0 %v525
    %699 = vmatmul.f32.gmra.mxu0 %v509
    %v700 = vpop.f32.mrf.mxu0
    %v701 = vadd.f32 %v319, %v700
    %702 = vdwg.mxu0
    %703 = vmatpush.msra.mxu0 0.0
    %704 = vmatpush.msra.mxu0 0.0
    %705 = vmatpush.msra.mxu0 0.0
    %706 = vmatpush.msra.mxu0 0.0
    %707 = vmatpush.msra.mxu0 0.0
    %708 = vmatpush.msra.mxu0 0.0
    %709 = vmatpush.msra.mxu0 0.0
    %710 = vmatpush.msra.mxu0 0.0
    %711 = vmatpush.msra.mxu0 0.0
    %712 = vmatpush.msra.mxu0 0.0
    %713 = vmatpush.msra.mxu0 0.0
    %714 = vmatpush.msra.mxu0 0.0
    %715 = vmatpush.msra.mxu0 0.0
    %716 = vmatpush.msra.mxu0 0.0
    %717 = vmatpush.msra.mxu0 0.0
    %718 = vmatpush.msra.mxu0 %v527
    %719 = vmatmul.f32.gmra.mxu0 %v509
    %v720 = vpop.f32.mrf.mxu0
    %v721 = vadd.f32 %v339, %v720
    %722 = vdwg.mxu0
    %723 = vmatpush.msra.mxu0 0.0
    %724 = vmatpush.msra.mxu0 0.0
    %725 = vmatpush.msra.mxu0 0.0
    %726 = vmatpush.msra.mxu0 0.0
    %727 = vmatpush.msra.mxu0 0.0
    %728 = vmatpush.msra.mxu0 0.0
    %729 = vmatpush.msra.mxu0 0.0
    %730 = vmatpush.msra.mxu0 0.0
    %731 = vmatpush.msra.mxu0 0.0
    %732 = vmatpush.msra.mxu0 0.0
    %733 = vmatpush.msra.mxu0 0.0
    %734 = vmatpush.msra.mxu0 0.0
    %735 = vmatpush.msra.mxu0 0.0
    %736 = vmatpush.msra.mxu0 0.0
    %737 = vmatpush.msra.mxu0 0.0
    %738 = vmatpush.msra.mxu0 %v529
    %739 = vmatmul.f32.gmra.mxu0 %v509
    %v740 = vpop.f32.mrf.mxu0
    %v741 = vadd.f32 %v359, %v740
    %742 = vdwg.mxu0
    %743 = vmatpush.msra.mxu0 0.0
    %744 = vmatpush.msra.mxu0 0.0
    %745 = vmatpush.msra.mxu0 0.0
    %746 = vmatpush.msra.mxu0 0.0
    %747 = vmatpush.msra.mxu0 0.0
    %748 = vmatpush.msra.mxu0 0.0
    %749 = vmatpush.msra.mxu0 0.0
    %750 = vmatpush.msra.mxu0 0.0
    %751 = vmatpush.msra.mxu0 0.0
    %752 = vmatpush.msra.mxu0 0.0
    %753 = vmatpush.msra.mxu0 0.0
    %754 = vmatpush.msra.mxu0 0.0
    %755 = vmatpush.msra.mxu0 0.0
    %756 = vmatpush.msra.mxu0 0.0
    %757 = vmatpush.msra.mxu0 0.0
    %758 = vmatpush.msra.mxu0 %v531
    %759 = vmatmul.f32.gmra.mxu0 %v509
    %v760 = vpop.f32.mrf.mxu0
    %v761 = vadd.f32 %v379, %v760
    %762 = vdwg.mxu0
    %763 = vmatpush.msra.mxu0 0.0
    %764 = vmatpush.msra.mxu0 0.0
    %765 = vmatpush.msra.mxu0 0.0
    %766 = vmatpush.msra.mxu0 0.0
    %767 = vmatpush.msra.mxu0 0.0
    %768 = vmatpush.msra.mxu0 0.0
    %769 = vmatpush.msra.mxu0 0.0
    %770 = vmatpush.msra.mxu0 0.0
    %771 = vmatpush.msra.mxu0 0.0
    %772 = vmatpush.msra.mxu0 0.0
    %773 = vmatpush.msra.mxu0 0.0
    %774 = vmatpush.msra.mxu0 0.0
    %775 = vmatpush.msra.mxu0 0.0
    %776 = vmatpush.msra.mxu0 0.0
    %777 = vmatpush.msra.mxu0 0.0
    %778 = vmatpush.msra.mxu0 %v533
    %779 = vmatmul.f32.gmra.mxu0 %v509
    %v780 = vpop.f32.mrf.mxu0
    %v781 = vadd.f32 %v399, %v780
    %782 = vdwg.mxu0
    %783 = vmatpush.msra.mxu0 0.0
    %784 = vmatpush.msra.mxu0 0.0
    %785 = vmatpush.msra.mxu0 0.0
    %786 = vmatpush.msra.mxu0 0.0
    %787 = vmatpush.msra.mxu0 0.0
    %788 = vmatpush.msra.mxu0 0.0
    %789 = vmatpush.msra.mxu0 0.0
    %790 = vmatpush.msra.mxu0 0.0
    %791 = vmatpush.msra.mxu0 0.0
    %792 = vmatpush.msra.mxu0 0.0
    %793 = vmatpush.msra.mxu0 0.0
    %794 = vmatpush.msra.mxu0 0.0
    %795 = vmatpush.msra.mxu0 0.0
    %796 = vmatpush.msra.mxu0 0.0
    %797 = vmatpush.msra.mxu0 0.0
    %798 = vmatpush.msra.mxu0 %v535
    %799 = vmatmul.f32.gmra.mxu0 %v509
    %v800 = vpop.f32.mrf.mxu0
    %v801 = vadd.f32 %v419, %v800
    %802 = vdwg.mxu0
    %803 = vmatpush.msra.mxu0 0.0
    %804 = vmatpush.msra.mxu0 0.0
    %805 = vmatpush.msra.mxu0 0.0
    %806 = vmatpush.msra.mxu0 0.0
    %807 = vmatpush.msra.mxu0 0.0
    %808 = vmatpush.msra.mxu0 0.0
    %809 = vmatpush.msra.mxu0 0.0
    %810 = vmatpush.msra.mxu0 0.0
    %811 = vmatpush.msra.mxu0 0.0
    %812 = vmatpush.msra.mxu0 0.0
    %813 = vmatpush.msra.mxu0 0.0
    %814 = vmatpush.msra.mxu0 0.0
    %815 = vmatpush.msra.mxu0 0.0
    %816 = vmatpush.msra.mxu0 0.0
    %817 = vmatpush.msra.mxu0 0.0
    %818 = vmatpush.msra.mxu0 %v537
    %819 = vmatmul.f32.gmra.mxu0 %v509
    %v820 = vpop.f32.mrf.mxu0
    %v821 = vadd.f32 %v439, %v820
    %822 = vdwg.mxu0
    %823 = vmatpush.msra.mxu0 0.0
    %824 = vmatpush.msra.mxu0 0.0
    %825 = vmatpush.msra.mxu0 0.0
    %826 = vmatpush.msra.mxu0 0.0
    %827 = vmatpush.msra.mxu0 0.0
    %828 = vmatpush.msra.mxu0 0.0
    %829 = vmatpush.msra.mxu0 0.0
    %830 = vmatpush.msra.mxu0 0.0
    %831 = vmatpush.msra.mxu0 0.0
    %832 = vmatpush.msra.mxu0 0.0
    %833 = vmatpush.msra.mxu0 0.0
    %834 = vmatpush.msra.mxu0 0.0
    %835 = vmatpush.msra.mxu0 0.0
    %836 = vmatpush.msra.mxu0 0.0
    %837 = vmatpush.msra.mxu0 0.0
    %838 = vmatpush.msra.mxu0 %v539
    %839 = vmatmul.f32.gmra.mxu0 %v509
    %v840 = vpop.f32.mrf.mxu0
    %v841 = vadd.f32 %v459, %v840
    %842 = vdwg.mxu0
    %843 = vmatpush.msra.mxu0 0.0
    %844 = vmatpush.msra.mxu0 0.0
    %845 = vmatpush.msra.mxu0 0.0
    %846 = vmatpush.msra.mxu0 0.0
    %847 = vmatpush.msra.mxu0 0.0
    %848 = vmatpush.msra.mxu0 0.0
    %849 = vmatpush.msra.mxu0 0.0
    %850 = vmatpush.msra.mxu0 0.0
    %851 = vmatpush.msra.mxu0 0.0
    %852 = vmatpush.msra.mxu0 0.0
    %853 = vmatpush.msra.mxu0 0.0
    %854 = vmatpush.msra.mxu0 0.0
    %855 = vmatpush.msra.mxu0 0.0
    %856 = vmatpush.msra.mxu0 0.0
    %857 = vmatpush.msra.mxu0 0.0
    %858 = vmatpush.msra.mxu0 %v541
    %859 = vmatmul.f32.gmra.mxu0 %v509
    %v860 = vpop.f32.mrf.mxu0
    %v861 = vadd.f32 %v479, %v860
    %862 = vdwg.mxu0
    %s863 = scalar_lea.vmem %s1, 16
    %v864 = vld [vmem:[%s863] sm:$0xff]
    %865 = vst [vmem:[#allocation1] ss:$2 sm:$0xff] %v30
    %s866 = scalar_lea.vmem [#allocation1], 16
    %867 = vst [vmem:[%s866] ss:$2 sm:$0xff] %v31
    %s868 = scalar_lea.vmem [#allocation1], 32
    %869 = vst [vmem:[%s868] ss:$2 sm:$0xff] %v32
    %s870 = scalar_lea.vmem [#allocation1], 48
    %871 = vst [vmem:[%s870] ss:$2 sm:$0xff] %v33
    %v872 = vld.sshfl [vmem:[#allocation1] sm:$0xff pattern:$0x75316420]
    %v873 = vld.sshfl [vmem:[#allocation1 + $0x8] sm:$0xff pattern:$0x75316420]
    %v874 = vld.sshfl [vmem:[#allocation1 + $0x10] sm:$0xff pattern:$0x75316420]
    %v875 = vld.sshfl [vmem:[#allocation1 + $0x18] sm:$0xff pattern:$0x75316420]
    %v876 = vld.sshfl [vmem:[#allocation1 + $0x20] sm:$0xff pattern:$0x75316420]
    %v877 = vld.sshfl [vmem:[#allocation1 + $0x28] sm:$0xff pattern:$0x75316420]
    %v878 = vld.sshfl [vmem:[#allocation1 + $0x30] sm:$0xff pattern:$0x75316420]
    %v879 = vld.sshfl [vmem:[#allocation1 + $0x38] sm:$0xff pattern:$0x75316420]
    %880 = vst [vmem:[#allocation1] ss:$2 sm:$0xff] %v34
    %881 = vst [vmem:[%s866] ss:$2 sm:$0xff] %v35
    %882 = vst [vmem:[%s868] ss:$2 sm:$0xff] %v36
    %883 = vst [vmem:[%s870] ss:$2 sm:$0xff] %v37
    %v884 = vld.sshfl [vmem:[#allocation1] sm:$0xff pattern:$0x75316420]
    %v885 = vld.sshfl [vmem:[#allocation1 + $0x8] sm:$0xff pattern:$0x75316420]
    %v886 = vld.sshfl [vmem:[#allocation1 + $0x10] sm:$0xff pattern:$0x75316420]
    %v887 = vld.sshfl [vmem:[#allocation1 + $0x18] sm:$0xff pattern:$0x75316420]
    %v888 = vld.sshfl [vmem:[#allocation1 + $0x20] sm:$0xff pattern:$0x75316420]
    %v889 = vld.sshfl [vmem:[#allocation1 + $0x28] sm:$0xff pattern:$0x75316420]
    %v890 = vld.sshfl [vmem:[#allocation1 + $0x30] sm:$0xff pattern:$0x75316420]
    %v891 = vld.sshfl [vmem:[#allocation1 + $0x38] sm:$0xff pattern:$0x75316420]
    %892 = vrot.lane.b32.xlu0 %v872, 126
    %v893 = vpop.permute.xlu0 %892
    %894 = vrot.lane.b32.xlu0 %v873, 126
    %v895 = vpop.permute.xlu0 %894
    %896 = vrot.lane.b32.xlu0 %v874, 126
    %v897 = vpop.permute.xlu0 %896
    %898 = vrot.lane.b32.xlu0 %v875, 126
    %v899 = vpop.permute.xlu0 %898
    %900 = vrot.lane.b32.xlu0 %v876, 126
    %v901 = vpop.permute.xlu0 %900
    %902 = vrot.lane.b32.xlu0 %v877, 126
    %v903 = vpop.permute.xlu0 %902
    %904 = vrot.lane.b32.xlu0 %v878, 126
    %v905 = vpop.permute.xlu0 %904
    %906 = vrot.lane.b32.xlu0 %v879, 126
    %v907 = vpop.permute.xlu0 %906
    %908 = vrot.lane.b32.xlu0 %v884, 126
    %v909 = vpop.permute.xlu0 %908
    %910 = vrot.lane.b32.xlu0 %v885, 126
    %v911 = vpop.permute.xlu0 %910
    %912 = vrot.lane.b32.xlu0 %v886, 126
    %v913 = vpop.permute.xlu0 %912
    %914 = vrot.lane.b32.xlu0 %v887, 126
    %v915 = vpop.permute.xlu0 %914
    %916 = vrot.lane.b32.xlu0 %v888, 126
    %v917 = vpop.permute.xlu0 %916
    %918 = vrot.lane.b32.xlu0 %v889, 126
    %v919 = vpop.permute.xlu0 %918
    %920 = vrot.lane.b32.xlu0 %v890, 126
    %v921 = vpop.permute.xlu0 %920
    %922 = vrot.lane.b32.xlu0 %v891, 126
    %v923 = vpop.permute.xlu0 %922
    %vm924 = vcmask 1031168
    %v925 = vsel %vm924, %v893, %v895
    %v926 = vsel %vm924, %v895, %v897
    %v927 = vsel %vm924, %v897, %v899
    %v928 = vsel %vm924, %v899, %v901
    %v929 = vsel %vm924, %v901, %v903
    %v930 = vsel %vm924, %v903, %v905
    %v931 = vsel %vm924, %v905, %v907
    %v932 = vsel %vm924, %v907, %v909
    %v933 = vsel %vm924, %v909, %v911
    %v934 = vsel %vm924, %v911, %v913
    %v935 = vsel %vm924, %v913, %v915
    %v936 = vsel %vm924, %v915, %v917
    %v937 = vsel %vm924, %v917, %v919
    %v938 = vsel %vm924, %v919, %v921
    %v939 = vsel %vm924, %v921, %v923
    %v941 = vsel %vm124, %v864, 0
    %v943 = vsel %vm128, %v925, 0
    %v945 = vsel %vm128, %v926, 0
    %v947 = vsel %vm128, %v927, 0
    %v949 = vsel %vm128, %v928, 0
    %v951 = vsel %vm128, %v929, 0
    %v953 = vsel %vm128, %v930, 0
    %v955 = vsel %vm128, %v931, 0
    %v957 = vsel %vm128, %v932, 0
    %v959 = vsel %vm128, %v933, 0
    %v961 = vsel %vm128, %v934, 0
    %v963 = vsel %vm128, %v935, 0
    %v965 = vsel %vm128, %v936, 0
    %v967 = vsel %vm128, %v937, 0
    %v969 = vsel %vm128, %v938, 0
    %v971 = vsel %vm128, %v939, 0
    %v973 = vsel %vm128, %v923, 0
    %975 = vmatpush.msra.mxu0 0.0
    %976 = vmatpush.msra.mxu0 0.0
    %977 = vmatpush.msra.mxu0 0.0
    %978 = vmatpush.msra.mxu0 0.0
    %979 = vmatpush.msra.mxu0 0.0
    %980 = vmatpush.msra.mxu0 0.0
    %981 = vmatpush.msra.mxu0 0.0
    %982 = vmatpush.msra.mxu0 0.0
    %983 = vmatpush.msra.mxu0 0.0
    %984 = vmatpush.msra.mxu0 0.0
    %985 = vmatpush.msra.mxu0 0.0
    %986 = vmatpush.msra.mxu0 0.0
    %987 = vmatpush.msra.mxu0 0.0
    %988 = vmatpush.msra.mxu0 0.0
    %989 = vmatpush.msra.mxu0 0.0
    %990 = vmatpush.msra.mxu0 %v943
    %991 = vmatmul.f32.gmra.mxu0 %v941
    %v992 = vpop.f32.mrf.mxu0
    %v993 = vadd.f32 0.0, %v992
    %994 = vdwg.mxu0
    %995 = vmatpush.msra.mxu0 0.0
    %996 = vmatpush.msra.mxu0 0.0
    %997 = vmatpush.msra.mxu0 0.0
    %998 = vmatpush.msra.mxu0 0.0
    %999 = vmatpush.msra.mxu0 0.0
    %1000 = vmatpush.msra.mxu0 0.0
    %1001 = vmatpush.msra.mxu0 0.0
    %1002 = vmatpush.msra.mxu0 0.0
    %1003 = vmatpush.msra.mxu0 0.0
    %1004 = vmatpush.msra.mxu0 0.0
    %1005 = vmatpush.msra.mxu0 0.0
    %1006 = vmatpush.msra.mxu0 0.0
    %1007 = vmatpush.msra.mxu0 0.0
    %1008 = vmatpush.msra.mxu0 0.0
    %1009 = vmatpush.msra.mxu0 0.0
    %1010 = vmatpush.msra.mxu0 %v945
    %1011 = vmatmul.f32.gmra.mxu0 %v941
    %v1012 = vpop.f32.mrf.mxu0
    %v1013 = vadd.f32 0.0, %v1012
    %1014 = vdwg.mxu0
    %1015 = vmatpush.msra.mxu0 0.0
    %1016 = vmatpush.msra.mxu0 0.0
    %1017 = vmatpush.msra.mxu0 0.0
    %1018 = vmatpush.msra.mxu0 0.0
    %1019 = vmatpush.msra.mxu0 0.0
    %1020 = vmatpush.msra.mxu0 0.0
    %1021 = vmatpush.msra.mxu0 0.0
    %1022 = vmatpush.msra.mxu0 0.0
    %1023 = vmatpush.msra.mxu0 0.0
    %1024 = vmatpush.msra.mxu0 0.0
    %1025 = vmatpush.msra.mxu0 0.0
    %1026 = vmatpush.msra.mxu0 0.0
    %1027 = vmatpush.msra.mxu0 0.0
    %1028 = vmatpush.msra.mxu0 0.0
    %1029 = vmatpush.msra.mxu0 0.0
    %1030 = vmatpush.msra.mxu0 %v947
    %1031 = vmatmul.f32.gmra.mxu0 %v941
    %v1032 = vpop.f32.mrf.mxu0
    %v1033 = vadd.f32 0.0, %v1032
    %1034 = vdwg.mxu0
    %1035 = vmatpush.msra.mxu0 0.0
    %1036 = vmatpush.msra.mxu0 0.0
    %1037 = vmatpush.msra.mxu0 0.0
    %1038 = vmatpush.msra.mxu0 0.0
    %1039 = vmatpush.msra.mxu0 0.0
    %1040 = vmatpush.msra.mxu0 0.0
    %1041 = vmatpush.msra.mxu0 0.0
    %1042 = vmatpush.msra.mxu0 0.0
    %1043 = vmatpush.msra.mxu0 0.0
    %1044 = vmatpush.msra.mxu0 0.0
    %1045 = vmatpush.msra.mxu0 0.0
    %1046 = vmatpush.msra.mxu0 0.0
    %1047 = vmatpush.msra.mxu0 0.0
    %1048 = vmatpush.msra.mxu0 0.0
    %1049 = vmatpush.msra.mxu0 0.0
    %1050 = vmatpush.msra.mxu0 %v949
    %1051 = vmatmul.f32.gmra.mxu0 %v941
    %v1052 = vpop.f32.mrf.mxu0
    %v1053 = vadd.f32 0.0, %v1052
    %1054 = vdwg.mxu0
    %1055 = vmatpush.msra.mxu0 0.0
    %1056 = vmatpush.msra.mxu0 0.0
    %1057 = vmatpush.msra.mxu0 0.0
    %1058 = vmatpush.msra.mxu0 0.0
    %1059 = vmatpush.msra.mxu0 0.0
    %1060 = vmatpush.msra.mxu0 0.0
    %1061 = vmatpush.msra.mxu0 0.0
    %1062 = vmatpush.msra.mxu0 0.0
    %1063 = vmatpush.msra.mxu0 0.0
    %1064 = vmatpush.msra.mxu0 0.0
    %1065 = vmatpush.msra.mxu0 0.0
    %1066 = vmatpush.msra.mxu0 0.0
    %1067 = vmatpush.msra.mxu0 0.0
    %1068 = vmatpush.msra.mxu0 0.0
    %1069 = vmatpush.msra.mxu0 0.0
    %1070 = vmatpush.msra.mxu0 %v951
    %1071 = vmatmul.f32.gmra.mxu0 %v941
    %v1072 = vpop.f32.mrf.mxu0
    %v1073 = vadd.f32 0.0, %v1072
    %1074 = vdwg.mxu0
    %1075 = vmatpush.msra.mxu0 0.0
    %1076 = vmatpush.msra.mxu0 0.0
    %1077 = vmatpush.msra.mxu0 0.0
    %1078 = vmatpush.msra.mxu0 0.0
    %1079 = vmatpush.msra.mxu0 0.0
    %1080 = vmatpush.msra.mxu0 0.0
    %1081 = vmatpush.msra.mxu0 0.0
    %1082 = vmatpush.msra.mxu0 0.0
    %1083 = vmatpush.msra.mxu0 0.0
    %1084 = vmatpush.msra.mxu0 0.0
    %1085 = vmatpush.msra.mxu0 0.0
    %1086 = vmatpush.msra.mxu0 0.0
    %1087 = vmatpush.msra.mxu0 0.0
    %1088 = vmatpush.msra.mxu0 0.0
    %1089 = vmatpush.msra.mxu0 0.0
    %1090 = vmatpush.msra.mxu0 %v953
    %1091 = vmatmul.f32.gmra.mxu0 %v941
    %v1092 = vpop.f32.mrf.mxu0
    %v1093 = vadd.f32 0.0, %v1092
    %1094 = vdwg.mxu0
    %1095 = vmatpush.msra.mxu0 0.0
    %1096 = vmatpush.msra.mxu0 0.0
    %1097 = vmatpush.msra.mxu0 0.0
    %1098 = vmatpush.msra.mxu0 0.0
    %1099 = vmatpush.msra.mxu0 0.0
    %1100 = vmatpush.msra.mxu0 0.0
    %1101 = vmatpush.msra.mxu0 0.0
    %1102 = vmatpush.msra.mxu0 0.0
    %1103 = vmatpush.msra.mxu0 0.0
    %1104 = vmatpush.msra.mxu0 0.0
    %1105 = vmatpush.msra.mxu0 0.0
    %1106 = vmatpush.msra.mxu0 0.0
    %1107 = vmatpush.msra.mxu0 0.0
    %1108 = vmatpush.msra.mxu0 0.0
    %1109 = vmatpush.msra.mxu0 0.0
    %1110 = vmatpush.msra.mxu0 %v955
    %1111 = vmatmul.f32.gmra.mxu0 %v941
    %v1112 = vpop.f32.mrf.mxu0
    %v1113 = vadd.f32 0.0, %v1112
    %1114 = vdwg.mxu0
    %1115 = vmatpush.msra.mxu0 0.0
    %1116 = vmatpush.msra.mxu0 0.0
    %1117 = vmatpush.msra.mxu0 0.0
    %1118 = vmatpush.msra.mxu0 0.0
    %1119 = vmatpush.msra.mxu0 0.0
    %1120 = vmatpush.msra.mxu0 0.0
    %1121 = vmatpush.msra.mxu0 0.0
    %1122 = vmatpush.msra.mxu0 0.0
    %1123 = vmatpush.msra.mxu0 0.0
    %1124 = vmatpush.msra.mxu0 0.0
    %1125 = vmatpush.msra.mxu0 0.0
    %1126 = vmatpush.msra.mxu0 0.0
    %1127 = vmatpush.msra.mxu0 0.0
    %1128 = vmatpush.msra.mxu0 0.0
    %1129 = vmatpush.msra.mxu0 0.0
    %1130 = vmatpush.msra.mxu0 %v957
    %1131 = vmatmul.f32.gmra.mxu0 %v941
    %v1132 = vpop.f32.mrf.mxu0
    %v1133 = vadd.f32 0.0, %v1132
    %1134 = vdwg.mxu0
    %1135 = vmatpush.msra.mxu0 0.0
    %1136 = vmatpush.msra.mxu0 0.0
    %1137 = vmatpush.msra.mxu0 0.0
    %1138 = vmatpush.msra.mxu0 0.0
    %1139 = vmatpush.msra.mxu0 0.0
    %1140 = vmatpush.msra.mxu0 0.0
    %1141 = vmatpush.msra.mxu0 0.0
    %1142 = vmatpush.msra.mxu0 0.0
    %1143 = vmatpush.msra.mxu0 0.0
    %1144 = vmatpush.msra.mxu0 0.0
    %1145 = vmatpush.msra.mxu0 0.0
    %1146 = vmatpush.msra.mxu0 0.0
    %1147 = vmatpush.msra.mxu0 0.0
    %1148 = vmatpush.msra.mxu0 0.0
    %1149 = vmatpush.msra.mxu0 0.0
    %1150 = vmatpush.msra.mxu0 %v959
    %1151 = vmatmul.f32.gmra.mxu0 %v941
    %v1152 = vpop.f32.mrf.mxu0
    %v1153 = vadd.f32 0.0, %v1152
    %1154 = vdwg.mxu0
    %1155 = vmatpush.msra.mxu0 0.0
    %1156 = vmatpush.msra.mxu0 0.0
    %1157 = vmatpush.msra.mxu0 0.0
    %1158 = vmatpush.msra.mxu0 0.0
    %1159 = vmatpush.msra.mxu0 0.0
    %1160 = vmatpush.msra.mxu0 0.0
    %1161 = vmatpush.msra.mxu0 0.0
    %1162 = vmatpush.msra.mxu0 0.0
    %1163 = vmatpush.msra.mxu0 0.0
    %1164 = vmatpush.msra.mxu0 0.0
    %1165 = vmatpush.msra.mxu0 0.0
    %1166 = vmatpush.msra.mxu0 0.0
    %1167 = vmatpush.msra.mxu0 0.0
    %1168 = vmatpush.msra.mxu0 0.0
    %1169 = vmatpush.msra.mxu0 0.0
    %1170 = vmatpush.msra.mxu0 %v961
    %1171 = vmatmul.f32.gmra.mxu0 %v941
    %v1172 = vpop.f32.mrf.mxu0
    %v1173 = vadd.f32 0.0, %v1172
    %1174 = vdwg.mxu0
    %1175 = vmatpush.msra.mxu0 0.0
    %1176 = vmatpush.msra.mxu0 0.0
    %1177 = vmatpush.msra.mxu0 0.0
    %1178 = vmatpush.msra.mxu0 0.0
    %1179 = vmatpush.msra.mxu0 0.0
    %1180 = vmatpush.msra.mxu0 0.0
    %1181 = vmatpush.msra.mxu0 0.0
    %1182 = vmatpush.msra.mxu0 0.0
    %1183 = vmatpush.msra.mxu0 0.0
    %1184 = vmatpush.msra.mxu0 0.0
    %1185 = vmatpush.msra.mxu0 0.0
    %1186 = vmatpush.msra.mxu0 0.0
    %1187 = vmatpush.msra.mxu0 0.0
    %1188 = vmatpush.msra.mxu0 0.0
    %1189 = vmatpush.msra.mxu0 0.0
    %1190 = vmatpush.msra.mxu0 %v963
    %1191 = vmatmul.f32.gmra.mxu0 %v941
    %v1192 = vpop.f32.mrf.mxu0
    %v1193 = vadd.f32 0.0, %v1192
    %1194 = vdwg.mxu0
    %1195 = vmatpush.msra.mxu0 0.0
    %1196 = vmatpush.msra.mxu0 0.0
    %1197 = vmatpush.msra.mxu0 0.0
    %1198 = vmatpush.msra.mxu0 0.0
    %1199 = vmatpush.msra.mxu0 0.0
    %1200 = vmatpush.msra.mxu0 0.0
    %1201 = vmatpush.msra.mxu0 0.0
    %1202 = vmatpush.msra.mxu0 0.0
    %1203 = vmatpush.msra.mxu0 0.0
    %1204 = vmatpush.msra.mxu0 0.0
    %1205 = vmatpush.msra.mxu0 0.0
    %1206 = vmatpush.msra.mxu0 0.0
    %1207 = vmatpush.msra.mxu0 0.0
    %1208 = vmatpush.msra.mxu0 0.0
    %1209 = vmatpush.msra.mxu0 0.0
    %1210 = vmatpush.msra.mxu0 %v965
    %1211 = vmatmul.f32.gmra.mxu0 %v941
    %v1212 = vpop.f32.mrf.mxu0
    %v1213 = vadd.f32 0.0, %v1212
    %1214 = vdwg.mxu0
    %1215 = vmatpush.msra.mxu0 0.0
    %1216 = vmatpush.msra.mxu0 0.0
    %1217 = vmatpush.msra.mxu0 0.0
    %1218 = vmatpush.msra.mxu0 0.0
    %1219 = vmatpush.msra.mxu0 0.0
    %1220 = vmatpush.msra.mxu0 0.0
    %1221 = vmatpush.msra.mxu0 0.0
    %1222 = vmatpush.msra.mxu0 0.0
    %1223 = vmatpush.msra.mxu0 0.0
    %1224 = vmatpush.msra.mxu0 0.0
    %1225 = vmatpush.msra.mxu0 0.0
    %1226 = vmatpush.msra.mxu0 0.0
    %1227 = vmatpush.msra.mxu0 0.0
    %1228 = vmatpush.msra.mxu0 0.0
    %1229 = vmatpush.msra.mxu0 0.0
    %1230 = vmatpush.msra.mxu0 %v967
    %1231 = vmatmul.f32.gmra.mxu0 %v941
    %v1232 = vpop.f32.mrf.mxu0
    %v1233 = vadd.f32 0.0, %v1232
    %1234 = vdwg.mxu0
    %1235 = vmatpush.msra.mxu0 0.0
    %1236 = vmatpush.msra.mxu0 0.0
    %1237 = vmatpush.msra.mxu0 0.0
    %1238 = vmatpush.msra.mxu0 0.0
    %1239 = vmatpush.msra.mxu0 0.0
    %1240 = vmatpush.msra.mxu0 0.0
    %1241 = vmatpush.msra.mxu0 0.0
    %1242 = vmatpush.msra.mxu0 0.0
    %1243 = vmatpush.msra.mxu0 0.0
    %1244 = vmatpush.msra.mxu0 0.0
    %1245 = vmatpush.msra.mxu0 0.0
    %1246 = vmatpush.msra.mxu0 0.0
    %1247 = vmatpush.msra.mxu0 0.0
    %1248 = vmatpush.msra.mxu0 0.0
    %1249 = vmatpush.msra.mxu0 0.0
    %1250 = vmatpush.msra.mxu0 %v969
    %1251 = vmatmul.f32.gmra.mxu0 %v941
    %v1252 = vpop.f32.mrf.mxu0
    %v1253 = vadd.f32 0.0, %v1252
    %1254 = vdwg.mxu0
    %1255 = vmatpush.msra.mxu0 0.0
    %1256 = vmatpush.msra.mxu0 0.0
    %1257 = vmatpush.msra.mxu0 0.0
    %1258 = vmatpush.msra.mxu0 0.0
    %1259 = vmatpush.msra.mxu0 0.0
    %1260 = vmatpush.msra.mxu0 0.0
    %1261 = vmatpush.msra.mxu0 0.0
    %1262 = vmatpush.msra.mxu0 0.0
    %1263 = vmatpush.msra.mxu0 0.0
    %1264 = vmatpush.msra.mxu0 0.0
    %1265 = vmatpush.msra.mxu0 0.0
    %1266 = vmatpush.msra.mxu0 0.0
    %1267 = vmatpush.msra.mxu0 0.0
    %1268 = vmatpush.msra.mxu0 0.0
    %1269 = vmatpush.msra.mxu0 0.0
    %1270 = vmatpush.msra.mxu0 %v971
    %1271 = vmatmul.f32.gmra.mxu0 %v941
    %v1272 = vpop.f32.mrf.mxu0
    %v1273 = vadd.f32 0.0, %v1272
    %1274 = vdwg.mxu0
    %1275 = vmatpush.msra.mxu0 0.0
    %1276 = vmatpush.msra.mxu0 0.0
    %1277 = vmatpush.msra.mxu0 0.0
    %1278 = vmatpush.msra.mxu0 0.0
    %1279 = vmatpush.msra.mxu0 0.0
    %1280 = vmatpush.msra.mxu0 0.0
    %1281 = vmatpush.msra.mxu0 0.0
    %1282 = vmatpush.msra.mxu0 0.0
    %1283 = vmatpush.msra.mxu0 0.0
    %1284 = vmatpush.msra.mxu0 0.0
    %1285 = vmatpush.msra.mxu0 0.0
    %1286 = vmatpush.msra.mxu0 0.0
    %1287 = vmatpush.msra.mxu0 0.0
    %1288 = vmatpush.msra.mxu0 0.0
    %1289 = vmatpush.msra.mxu0 0.0
    %1290 = vmatpush.msra.mxu0 %v973
    %1291 = vmatmul.f32.gmra.mxu0 %v941
    %v1292 = vpop.f32.mrf.mxu0
    %v1293 = vadd.f32 0.0, %v1292
    %1294 = vdwg.mxu0
    %v1295 = vadd.f32 %v561, %v993
    %v1296 = vadd.f32 %v581, %v1013
    %v1297 = vadd.f32 %v601, %v1033
    %v1298 = vadd.f32 %v621, %v1053
    %v1299 = vadd.f32 %v641, %v1073
    %v1300 = vadd.f32 %v661, %v1093
    %v1301 = vadd.f32 %v681, %v1113
    %v1302 = vadd.f32 %v701, %v1133
    %v1303 = vadd.f32 %v721, %v1153
    %v1304 = vadd.f32 %v741, %v1173
    %v1305 = vadd.f32 %v761, %v1193
    %v1306 = vadd.f32 %v781, %v1213
    %v1307 = vadd.f32 %v801, %v1233
    %v1308 = vadd.f32 %v821, %v1253
    %v1309 = vadd.f32 %v841, %v1273
    %v1310 = vadd.f32 %v861, %v1293
    %s1311 = scalar_lea.vmem %s1, 24
    %v1312 = vld [vmem:[%s1311] sm:$0xff]
    %1313 = vst [vmem:[#allocation1] ss:$2 sm:$0xff] %v30
    %s1314 = scalar_lea.vmem [#allocation1], 16
    %1315 = vst [vmem:[%s1314] ss:$2 sm:$0xff] %v31
    %s1316 = scalar_lea.vmem [#allocation1], 32
    %1317 = vst [vmem:[%s1316] ss:$2 sm:$0xff] %v32
    %s1318 = scalar_lea.vmem [#allocation1], 48
    %1319 = vst [vmem:[%s1318] ss:$2 sm:$0xff] %v33
    %v1320 = vld.sshfl [vmem:[#allocation1] sm:$0xff pattern:$0x75316420]
    %v1321 = vld.sshfl [vmem:[#allocation1 + $0x8] sm:$0xff pattern:$0x75316420]
    %v1322 = vld.sshfl [vmem:[#allocation1 + $0x10] sm:$0xff pattern:$0x75316420]
    %v1323 = vld.sshfl [vmem:[#allocation1 + $0x18] sm:$0xff pattern:$0x75316420]
    %v1324 = vld.sshfl [vmem:[#allocation1 + $0x20] sm:$0xff pattern:$0x75316420]
    %v1325 = vld.sshfl [vmem:[#allocation1 + $0x28] sm:$0xff pattern:$0x75316420]
    %v1326 = vld.sshfl [vmem:[#allocation1 + $0x30] sm:$0xff pattern:$0x75316420]
    %v1327 = vld.sshfl [vmem:[#allocation1 + $0x38] sm:$0xff pattern:$0x75316420]
    %1328 = vst [vmem:[#allocation1] ss:$2 sm:$0xff] %v34
    %1329 = vst [vmem:[%s1314] ss:$2 sm:$0xff] %v35
    %1330 = vst [vmem:[%s1316] ss:$2 sm:$0xff] %v36
    %1331 = vst [vmem:[%s1318] ss:$2 sm:$0xff] %v37
    %v1332 = vld.sshfl [vmem:[#allocation1] sm:$0xff pattern:$0x75316420]
    %v1333 = vld.sshfl [vmem:[#allocation1 + $0x8] sm:$0xff pattern:$0x75316420]
    %v1334 = vld.sshfl [vmem:[#allocation1 + $0x10] sm:$0xff pattern:$0x75316420]
    %v1335 = vld.sshfl [vmem:[#allocation1 + $0x18] sm:$0xff pattern:$0x75316420]
    %v1336 = vld.sshfl [vmem:[#allocation1 + $0x20] sm:$0xff pattern:$0x75316420]
    %v1337 = vld.sshfl [vmem:[#allocation1 + $0x28] sm:$0xff pattern:$0x75316420]
    %v1338 = vld.sshfl [vmem:[#allocation1 + $0x30] sm:$0xff pattern:$0x75316420]
    %v1339 = vld.sshfl [vmem:[#allocation1 + $0x38] sm:$0xff pattern:$0x75316420]
    %1340 = vrot.lane.b32.xlu0 %v1320, 110
    %v1341 = vpop.permute.xlu0 %1340
    %1342 = vrot.lane.b32.xlu0 %v1321, 110
    %v1343 = vpop.permute.xlu0 %1342
    %1344 = vrot.lane.b32.xlu0 %v1322, 110
    %v1345 = vpop.permute.xlu0 %1344
    %1346 = vrot.lane.b32.xlu0 %v1323, 110
    %v1347 = vpop.permute.xlu0 %1346
    %1348 = vrot.lane.b32.xlu0 %v1324, 110
    %v1349 = vpop.permute.xlu0 %1348
    %1350 = vrot.lane.b32.xlu0 %v1325, 110
    %v1351 = vpop.permute.xlu0 %1350
    %1352 = vrot.lane.b32.xlu0 %v1326, 110
    %v1353 = vpop.permute.xlu0 %1352
    %1354 = vrot.lane.b32.xlu0 %v1327, 110
    %v1355 = vpop.permute.xlu0 %1354
    %1356 = vrot.lane.b32.xlu0 %v1332, 110
    %v1357 = vpop.permute.xlu0 %1356
    %1358 = vrot.lane.b32.xlu0 %v1333, 110
    %v1359 = vpop.permute.xlu0 %1358
    %1360 = vrot.lane.b32.xlu0 %v1334, 110
    %v1361 = vpop.permute.xlu0 %1360
    %1362 = vrot.lane.b32.xlu0 %v1335, 110
    %v1363 = vpop.permute.xlu0 %1362
    %1364 = vrot.lane.b32.xlu0 %v1336, 110
    %v1365 = vpop.permute.xlu0 %1364
    %1366 = vrot.lane.b32.xlu0 %v1337, 110
    %v1367 = vpop.permute.xlu0 %1366
    %1368 = vrot.lane.b32.xlu0 %v1338, 110
    %v1369 = vpop.permute.xlu0 %1368
    %1370 = vrot.lane.b32.xlu0 %v1339, 110
    %v1371 = vpop.permute.xlu0 %1370
    %vm1372 = vcmask 900096
    %v1373 = vsel %vm1372, %v1341, %v1343
    %v1374 = vsel %vm1372, %v1343, %v1345
    %v1375 = vsel %vm1372, %v1345, %v1347
    %v1376 = vsel %vm1372, %v1347, %v1349
    %v1377 = vsel %vm1372, %v1349, %v1351
    %v1378 = vsel %vm1372, %v1351, %v1353
    %v1379 = vsel %vm1372, %v1353, %v1355
    %v1380 = vsel %vm1372, %v1355, %v1357
    %v1381 = vsel %vm1372, %v1357, %v1359
    %v1382 = vsel %vm1372, %v1359, %v1361
    %v1383 = vsel %vm1372, %v1361, %v1363
    %v1384 = vsel %vm1372, %v1363, %v1365
    %v1385 = vsel %vm1372, %v1365, %v1367
    %v1386 = vsel %vm1372, %v1367, %v1369
    %v1387 = vsel %vm1372, %v1369, %v1371
    %v1389 = vsel %vm124, %v1312, 0
    %v1391 = vsel %vm128, %v1373, 0
    %v1393 = vsel %vm128, %v1374, 0
    %v1395 = vsel %vm128, %v1375, 0
    %v1397 = vsel %vm128, %v1376, 0
    %v1399 = vsel %vm128, %v1377, 0
    %v1401 = vsel %vm128, %v1378, 0
    %v1403 = vsel %vm128, %v1379, 0
    %v1405 = vsel %vm128, %v1380, 0
    %v1407 = vsel %vm128, %v1381, 0
    %v1409 = vsel %vm128, %v1382, 0
    %v1411 = vsel %vm128, %v1383, 0
    %v1413 = vsel %vm128, %v1384, 0
    %v1415 = vsel %vm128, %v1385, 0
    %v1417 = vsel %vm128, %v1386, 0
    %v1419 = vsel %vm128, %v1387, 0
    %v1421 = vsel %vm128, %v1371, 0
    %1423 = vmatpush.msra.mxu0 0.0
    %1424 = vmatpush.msra.mxu0 0.0
    %1425 = vmatpush.msra.mxu0 0.0
    %1426 = vmatpush.msra.mxu0 0.0
    %1427 = vmatpush.msra.mxu0 0.0
    %1428 = vmatpush.msra.mxu0 0.0
    %1429 = vmatpush.msra.mxu0 0.0
    %1430 = vmatpush.msra.mxu0 0.0
    %1431 = vmatpush.msra.mxu0 0.0
    %1432 = vmatpush.msra.mxu0 0.0
    %1433 = vmatpush.msra.mxu0 0.0
    %1434 = vmatpush.msra.mxu0 0.0
    %1435 = vmatpush.msra.mxu0 0.0
    %1436 = vmatpush.msra.mxu0 0.0
    %1437 = vmatpush.msra.mxu0 0.0
    %1438 = vmatpush.msra.mxu0 %v1391
    %1439 = vmatmul.f32.gmra.mxu0 %v1389
    %v1440 = vpop.f32.mrf.mxu0
    %v1441 = vadd.f32 0.0, %v1440
    %1442 = vdwg.mxu0
    %1443 = vmatpush.msra.mxu0 0.0
    %1444 = vmatpush.msra.mxu0 0.0
    %1445 = vmatpush.msra.mxu0 0.0
    %1446 = vmatpush.msra.mxu0 0.0
    %1447 = vmatpush.msra.mxu0 0.0
    %1448 = vmatpush.msra.mxu0 0.0
    %1449 = vmatpush.msra.mxu0 0.0
    %1450 = vmatpush.msra.mxu0 0.0
    %1451 = vmatpush.msra.mxu0 0.0
    %1452 = vmatpush.msra.mxu0 0.0
    %1453 = vmatpush.msra.mxu0 0.0
    %1454 = vmatpush.msra.mxu0 0.0
    %1455 = vmatpush.msra.mxu0 0.0
    %1456 = vmatpush.msra.mxu0 0.0
    %1457 = vmatpush.msra.mxu0 0.0
    %1458 = vmatpush.msra.mxu0 %v1393
    %1459 = vmatmul.f32.gmra.mxu0 %v1389
    %v1460 = vpop.f32.mrf.mxu0
    %v1461 = vadd.f32 0.0, %v1460
    %1462 = vdwg.mxu0
    %1463 = vmatpush.msra.mxu0 0.0
    %1464 = vmatpush.msra.mxu0 0.0
    %1465 = vmatpush.msra.mxu0 0.0
    %1466 = vmatpush.msra.mxu0 0.0
    %1467 = vmatpush.msra.mxu0 0.0
    %1468 = vmatpush.msra.mxu0 0.0
    %1469 = vmatpush.msra.mxu0 0.0
    %1470 = vmatpush.msra.mxu0 0.0
    %1471 = vmatpush.msra.mxu0 0.0
    %1472 = vmatpush.msra.mxu0 0.0
    %1473 = vmatpush.msra.mxu0 0.0
    %1474 = vmatpush.msra.mxu0 0.0
    %1475 = vmatpush.msra.mxu0 0.0
    %1476 = vmatpush.msra.mxu0 0.0
    %1477 = vmatpush.msra.mxu0 0.0
    %1478 = vmatpush.msra.mxu0 %v1395
    %1479 = vmatmul.f32.gmra.mxu0 %v1389
    %v1480 = vpop.f32.mrf.mxu0
    %v1481 = vadd.f32 0.0, %v1480
    %1482 = vdwg.mxu0
    %1483 = vmatpush.msra.mxu0 0.0
    %1484 = vmatpush.msra.mxu0 0.0
    %1485 = vmatpush.msra.mxu0 0.0
    %1486 = vmatpush.msra.mxu0 0.0
    %1487 = vmatpush.msra.mxu0 0.0
    %1488 = vmatpush.msra.mxu0 0.0
    %1489 = vmatpush.msra.mxu0 0.0
    %1490 = vmatpush.msra.mxu0 0.0
    %1491 = vmatpush.msra.mxu0 0.0
    %1492 = vmatpush.msra.mxu0 0.0
    %1493 = vmatpush.msra.mxu0 0.0
    %1494 = vmatpush.msra.mxu0 0.0
    %1495 = vmatpush.msra.mxu0 0.0
    %1496 = vmatpush.msra.mxu0 0.0
    %1497 = vmatpush.msra.mxu0 0.0
    %1498 = vmatpush.msra.mxu0 %v1397
    %1499 = vmatmul.f32.gmra.mxu0 %v1389
    %v1500 = vpop.f32.mrf.mxu0
    %v1501 = vadd.f32 0.0, %v1500
    %1502 = vdwg.mxu0
    %1503 = vmatpush.msra.mxu0 0.0
    %1504 = vmatpush.msra.mxu0 0.0
    %1505 = vmatpush.msra.mxu0 0.0
    %1506 = vmatpush.msra.mxu0 0.0
    %1507 = vmatpush.msra.mxu0 0.0
    %1508 = vmatpush.msra.mxu0 0.0
    %1509 = vmatpush.msra.mxu0 0.0
    %1510 = vmatpush.msra.mxu0 0.0
    %1511 = vmatpush.msra.mxu0 0.0
    %1512 = vmatpush.msra.mxu0 0.0
    %1513 = vmatpush.msra.mxu0 0.0
    %1514 = vmatpush.msra.mxu0 0.0
    %1515 = vmatpush.msra.mxu0 0.0
    %1516 = vmatpush.msra.mxu0 0.0
    %1517 = vmatpush.msra.mxu0 0.0
    %1518 = vmatpush.msra.mxu0 %v1399
    %1519 = vmatmul.f32.gmra.mxu0 %v1389
    %v1520 = vpop.f32.mrf.mxu0
    %v1521 = vadd.f32 0.0, %v1520
    %1522 = vdwg.mxu0
    %1523 = vmatpush.msra.mxu0 0.0
    %1524 = vmatpush.msra.mxu0 0.0
    %1525 = vmatpush.msra.mxu0 0.0
    %1526 = vmatpush.msra.mxu0 0.0
    %1527 = vmatpush.msra.mxu0 0.0
    %1528 = vmatpush.msra.mxu0 0.0
    %1529 = vmatpush.msra.mxu0 0.0
    %1530 = vmatpush.msra.mxu0 0.0
    %1531 = vmatpush.msra.mxu0 0.0
    %1532 = vmatpush.msra.mxu0 0.0
    %1533 = vmatpush.msra.mxu0 0.0
    %1534 = vmatpush.msra.mxu0 0.0
    %1535 = vmatpush.msra.mxu0 0.0
    %1536 = vmatpush.msra.mxu0 0.0
    %1537 = vmatpush.msra.mxu0 0.0
    %1538 = vmatpush.msra.mxu0 %v1401
    %1539 = vmatmul.f32.gmra.mxu0 %v1389
    %v1540 = vpop.f32.mrf.mxu0
    %v1541 = vadd.f32 0.0, %v1540
    %1542 = vdwg.mxu0
    %1543 = vmatpush.msra.mxu0 0.0
    %1544 = vmatpush.msra.mxu0 0.0
    %1545 = vmatpush.msra.mxu0 0.0
    %1546 = vmatpush.msra.mxu0 0.0
    %1547 = vmatpush.msra.mxu0 0.0
    %1548 = vmatpush.msra.mxu0 0.0
    %1549 = vmatpush.msra.mxu0 0.0
    %1550 = vmatpush.msra.mxu0 0.0
    %1551 = vmatpush.msra.mxu0 0.0
    %1552 = vmatpush.msra.mxu0 0.0
    %1553 = vmatpush.msra.mxu0 0.0
    %1554 = vmatpush.msra.mxu0 0.0
    %1555 = vmatpush.msra.mxu0 0.0
    %1556 = vmatpush.msra.mxu0 0.0
    %1557 = vmatpush.msra.mxu0 0.0
    %1558 = vmatpush.msra.mxu0 %v1403
    %1559 = vmatmul.f32.gmra.mxu0 %v1389
    %v1560 = vpop.f32.mrf.mxu0
    %v1561 = vadd.f32 0.0, %v1560
    %1562 = vdwg.mxu0
    %1563 = vmatpush.msra.mxu0 0.0
    %1564 = vmatpush.msra.mxu0 0.0
    %1565 = vmatpush.msra.mxu0 0.0
    %1566 = vmatpush.msra.mxu0 0.0
    %1567 = vmatpush.msra.mxu0 0.0
    %1568 = vmatpush.msra.mxu0 0.0
    %1569 = vmatpush.msra.mxu0 0.0
    %1570 = vmatpush.msra.mxu0 0.0
    %1571 = vmatpush.msra.mxu0 0.0
    %1572 = vmatpush.msra.mxu0 0.0
    %1573 = vmatpush.msra.mxu0 0.0
    %1574 = vmatpush.msra.mxu0 0.0
    %1575 = vmatpush.msra.mxu0 0.0
    %1576 = vmatpush.msra.mxu0 0.0
    %1577 = vmatpush.msra.mxu0 0.0
    %1578 = vmatpush.msra.mxu0 %v1405
    %1579 = vmatmul.f32.gmra.mxu0 %v1389
    %v1580 = vpop.f32.mrf.mxu0
    %v1581 = vadd.f32 0.0, %v1580
    %1582 = vdwg.mxu0
    %1583 = vmatpush.msra.mxu0 0.0
    %1584 = vmatpush.msra.mxu0 0.0
    %1585 = vmatpush.msra.mxu0 0.0
    %1586 = vmatpush.msra.mxu0 0.0
    %1587 = vmatpush.msra.mxu0 0.0
    %1588 = vmatpush.msra.mxu0 0.0
    %1589 = vmatpush.msra.mxu0 0.0
    %1590 = vmatpush.msra.mxu0 0.0
    %1591 = vmatpush.msra.mxu0 0.0
    %1592 = vmatpush.msra.mxu0 0.0
    %1593 = vmatpush.msra.mxu0 0.0
    %1594 = vmatpush.msra.mxu0 0.0
    %1595 = vmatpush.msra.mxu0 0.0
    %1596 = vmatpush.msra.mxu0 0.0
    %1597 = vmatpush.msra.mxu0 0.0
    %1598 = vmatpush.msra.mxu0 %v1407
    %1599 = vmatmul.f32.gmra.mxu0 %v1389
    %v1600 = vpop.f32.mrf.mxu0
    %v1601 = vadd.f32 0.0, %v1600
    %1602 = vdwg.mxu0
    %1603 = vmatpush.msra.mxu0 0.0
    %1604 = vmatpush.msra.mxu0 0.0
    %1605 = vmatpush.msra.mxu0 0.0
    %1606 = vmatpush.msra.mxu0 0.0
    %1607 = vmatpush.msra.mxu0 0.0
    %1608 = vmatpush.msra.mxu0 0.0
    %1609 = vmatpush.msra.mxu0 0.0
    %1610 = vmatpush.msra.mxu0 0.0
    %1611 = vmatpush.msra.mxu0 0.0
    %1612 = vmatpush.msra.mxu0 0.0
    %1613 = vmatpush.msra.mxu0 0.0
    %1614 = vmatpush.msra.mxu0 0.0
    %1615 = vmatpush.msra.mxu0 0.0
    %1616 = vmatpush.msra.mxu0 0.0
    %1617 = vmatpush.msra.mxu0 0.0
    %1618 = vmatpush.msra.mxu0 %v1409
    %1619 = vmatmul.f32.gmra.mxu0 %v1389
    %v1620 = vpop.f32.mrf.mxu0
    %v1621 = vadd.f32 0.0, %v1620
    %1622 = vdwg.mxu0
    %1623 = vmatpush.msra.mxu0 0.0
    %1624 = vmatpush.msra.mxu0 0.0
    %1625 = vmatpush.msra.mxu0 0.0
    %1626 = vmatpush.msra.mxu0 0.0
    %1627 = vmatpush.msra.mxu0 0.0
    %1628 = vmatpush.msra.mxu0 0.0
    %1629 = vmatpush.msra.mxu0 0.0
    %1630 = vmatpush.msra.mxu0 0.0
    %1631 = vmatpush.msra.mxu0 0.0
    %1632 = vmatpush.msra.mxu0 0.0
    %1633 = vmatpush.msra.mxu0 0.0
    %1634 = vmatpush.msra.mxu0 0.0
    %1635 = vmatpush.msra.mxu0 0.0
    %1636 = vmatpush.msra.mxu0 0.0
    %1637 = vmatpush.msra.mxu0 0.0
    %1638 = vmatpush.msra.mxu0 %v1411
    %1639 = vmatmul.f32.gmra.mxu0 %v1389
    %v1640 = vpop.f32.mrf.mxu0
    %v1641 = vadd.f32 0.0, %v1640
    %1642 = vdwg.mxu0
    %1643 = vmatpush.msra.mxu0 0.0
    %1644 = vmatpush.msra.mxu0 0.0
    %1645 = vmatpush.msra.mxu0 0.0
    %1646 = vmatpush.msra.mxu0 0.0
    %1647 = vmatpush.msra.mxu0 0.0
    %1648 = vmatpush.msra.mxu0 0.0
    %1649 = vmatpush.msra.mxu0 0.0
    %1650 = vmatpush.msra.mxu0 0.0
    %1651 = vmatpush.msra.mxu0 0.0
    %1652 = vmatpush.msra.mxu0 0.0
    %1653 = vmatpush.msra.mxu0 0.0
    %1654 = vmatpush.msra.mxu0 0.0
    %1655 = vmatpush.msra.mxu0 0.0
    %1656 = vmatpush.msra.mxu0 0.0
    %1657 = vmatpush.msra.mxu0 0.0
    %1658 = vmatpush.msra.mxu0 %v1413
    %1659 = vmatmul.f32.gmra.mxu0 %v1389
    %v1660 = vpop.f32.mrf.mxu0
    %v1661 = vadd.f32 0.0, %v1660
    %1662 = vdwg.mxu0
    %1663 = vmatpush.msra.mxu0 0.0
    %1664 = vmatpush.msra.mxu0 0.0
    %1665 = vmatpush.msra.mxu0 0.0
    %1666 = vmatpush.msra.mxu0 0.0
    %1667 = vmatpush.msra.mxu0 0.0
    %1668 = vmatpush.msra.mxu0 0.0
    %1669 = vmatpush.msra.mxu0 0.0
    %1670 = vmatpush.msra.mxu0 0.0
    %1671 = vmatpush.msra.mxu0 0.0
    %1672 = vmatpush.msra.mxu0 0.0
    %1673 = vmatpush.msra.mxu0 0.0
    %1674 = vmatpush.msra.mxu0 0.0
    %1675 = vmatpush.msra.mxu0 0.0
    %1676 = vmatpush.msra.mxu0 0.0
    %1677 = vmatpush.msra.mxu0 0.0
    %1678 = vmatpush.msra.mxu0 %v1415
    %1679 = vmatmul.f32.gmra.mxu0 %v1389
    %v1680 = vpop.f32.mrf.mxu0
    %v1681 = vadd.f32 0.0, %v1680
    %1682 = vdwg.mxu0
    %1683 = vmatpush.msra.mxu0 0.0
    %1684 = vmatpush.msra.mxu0 0.0
    %1685 = vmatpush.msra.mxu0 0.0
    %1686 = vmatpush.msra.mxu0 0.0
    %1687 = vmatpush.msra.mxu0 0.0
    %1688 = vmatpush.msra.mxu0 0.0
    %1689 = vmatpush.msra.mxu0 0.0
    %1690 = vmatpush.msra.mxu0 0.0
    %1691 = vmatpush.msra.mxu0 0.0
    %1692 = vmatpush.msra.mxu0 0.0
    %1693 = vmatpush.msra.mxu0 0.0
    %1694 = vmatpush.msra.mxu0 0.0
    %1695 = vmatpush.msra.mxu0 0.0
    %1696 = vmatpush.msra.mxu0 0.0
    %1697 = vmatpush.msra.mxu0 0.0
    %1698 = vmatpush.msra.mxu0 %v1417
    %1699 = vmatmul.f32.gmra.mxu0 %v1389
    %v1700 = vpop.f32.mrf.mxu0
    %v1701 = vadd.f32 0.0, %v1700
    %1702 = vdwg.mxu0
    %1703 = vmatpush.msra.mxu0 0.0
    %1704 = vmatpush.msra.mxu0 0.0
    %1705 = vmatpush.msra.mxu0 0.0
    %1706 = vmatpush.msra.mxu0 0.0
    %1707 = vmatpush.msra.mxu0 0.0
    %1708 = vmatpush.msra.mxu0 0.0
    %1709 = vmatpush.msra.mxu0 0.0
    %1710 = vmatpush.msra.mxu0 0.0
    %1711 = vmatpush.msra.mxu0 0.0
    %1712 = vmatpush.msra.mxu0 0.0
    %1713 = vmatpush.msra.mxu0 0.0
    %1714 = vmatpush.msra.mxu0 0.0
    %1715 = vmatpush.msra.mxu0 0.0
    %1716 = vmatpush.msra.mxu0 0.0
    %1717 = vmatpush.msra.mxu0 0.0
    %1718 = vmatpush.msra.mxu0 %v1419
    %1719 = vmatmul.f32.gmra.mxu0 %v1389
    %v1720 = vpop.f32.mrf.mxu0
    %v1721 = vadd.f32 0.0, %v1720
    %1722 = vdwg.mxu0
    %1723 = vmatpush.msra.mxu0 0.0
    %1724 = vmatpush.msra.mxu0 0.0
    %1725 = vmatpush.msra.mxu0 0.0
    %1726 = vmatpush.msra.mxu0 0.0
    %1727 = vmatpush.msra.mxu0 0.0
    %1728 = vmatpush.msra.mxu0 0.0
    %1729 = vmatpush.msra.mxu0 0.0
    %1730 = vmatpush.msra.mxu0 0.0
    %1731 = vmatpush.msra.mxu0 0.0
    %1732 = vmatpush.msra.mxu0 0.0
    %1733 = vmatpush.msra.mxu0 0.0
    %1734 = vmatpush.msra.mxu0 0.0
    %1735 = vmatpush.msra.mxu0 0.0
    %1736 = vmatpush.msra.mxu0 0.0
    %1737 = vmatpush.msra.mxu0 0.0
    %1738 = vmatpush.msra.mxu0 %v1421
    %1739 = vmatmul.f32.gmra.mxu0 %v1389
    %v1740 = vpop.f32.mrf.mxu0
    %v1741 = vadd.f32 0.0, %v1740
    %1742 = vdwg.mxu0
    %v1743 = vadd.f32 %v1295, %v1441
    %v1744 = vadd.f32 %v1296, %v1461
    %v1745 = vadd.f32 %v1297, %v1481
    %v1746 = vadd.f32 %v1298, %v1501
    %v1747 = vadd.f32 %v1299, %v1521
    %v1748 = vadd.f32 %v1300, %v1541
    %v1749 = vadd.f32 %v1301, %v1561
    %v1750 = vadd.f32 %v1302, %v1581
    %v1751 = vadd.f32 %v1303, %v1601
    %v1752 = vadd.f32 %v1304, %v1621
    %v1753 = vadd.f32 %v1305, %v1641
    %v1754 = vadd.f32 %v1306, %v1661
    %v1755 = vadd.f32 %v1307, %v1681
    %v1756 = vadd.f32 %v1308, %v1701
    %v1757 = vadd.f32 %v1309, %v1721
    %v1758 = vadd.f32 %v1310, %v1741
    %s1759 = scalar_lea.vmem %s1, 32
    %v1760 = vld [vmem:[%s1759] sm:$0xff]
    %1761 = vst [vmem:[#allocation1] ss:$2 sm:$0xff] %v30
    %s1762 = scalar_lea.vmem [#allocation1], 16
    %1763 = vst [vmem:[%s1762] ss:$2 sm:$0xff] %v31
    %s1764 = scalar_lea.vmem [#allocation1], 32
    %1765 = vst [vmem:[%s1764] ss:$2 sm:$0xff] %v32
    %s1766 = scalar_lea.vmem [#allocation1], 48
    %1767 = vst [vmem:[%s1766] ss:$2 sm:$0xff] %v33
    %v1768 = vld.sshfl [vmem:[#allocation1] sm:$0xff pattern:$0x75316420]
    %v1769 = vld.sshfl [vmem:[#allocation1 + $0x8] sm:$0xff pattern:$0x75316420]
    %v1770 = vld.sshfl [vmem:[#allocation1 + $0x10] sm:$0xff pattern:$0x75316420]
    %v1771 = vld.sshfl [vmem:[#allocation1 + $0x18] sm:$0xff pattern:$0x75316420]
    %v1772 = vld.sshfl [vmem:[#allocation1 + $0x20] sm:$0xff pattern:$0x75316420]
    %v1773 = vld.sshfl [vmem:[#allocation1 + $0x28] sm:$0xff pattern:$0x75316420]
    %v1774 = vld.sshfl [vmem:[#allocation1 + $0x30] sm:$0xff pattern:$0x75316420]
    %v1775 = vld.sshfl [vmem:[#allocation1 + $0x38] sm:$0xff pattern:$0x75316420]
    %1776 = vst [vmem:[#allocation1] ss:$2 sm:$0xff] %v34
    %1777 = vst [vmem:[%s1762] ss:$2 sm:$0xff] %v35
    %1778 = vst [vmem:[%s1764] ss:$2 sm:$0xff] %v36
    %1779 = vst [vmem:[%s1766] ss:$2 sm:$0xff] %v37
    %v1780 = vld.sshfl [vmem:[#allocation1] sm:$0xff pattern:$0x75316420]
    %v1781 = vld.sshfl [vmem:[#allocation1 + $0x8] sm:$0xff pattern:$0x75316420]
    %v1782 = vld.sshfl [vmem:[#allocation1 + $0x10] sm:$0xff pattern:$0x75316420]
    %v1783 = vld.sshfl [vmem:[#allocation1 + $0x18] sm:$0xff pattern:$0x75316420]
    %v1784 = vld.sshfl [vmem:[#allocation1 + $0x20] sm:$0xff pattern:$0x75316420]
    %v1785 = vld.sshfl [vmem:[#allocation1 + $0x28] sm:$0xff pattern:$0x75316420]
    %v1786 = vld.sshfl [vmem:[#allocation1 + $0x30] sm:$0xff pattern:$0x75316420]
    %v1787 = vld.sshfl [vmem:[#allocation1 + $0x38] sm:$0xff pattern:$0x75316420]
    %1788 = vrot.lane.b32.xlu0 %v1768, 109
    %v1789 = vpop.permute.xlu0 %1788
    %1790 = vrot.lane.b32.xlu0 %v1769, 109
    %v1791 = vpop.permute.xlu0 %1790
    %1792 = vrot.lane.b32.xlu0 %v1770, 109
    %v1793 = vpop.permute.xlu0 %1792
    %1794 = vrot.lane.b32.xlu0 %v1771, 109
    %v1795 = vpop.permute.xlu0 %1794
    %1796 = vrot.lane.b32.xlu0 %v1772, 109
    %v1797 = vpop.permute.xlu0 %1796
    %1798 = vrot.lane.b32.xlu0 %v1773, 109
    %v1799 = vpop.permute.xlu0 %1798
    %1800 = vrot.lane.b32.xlu0 %v1774, 109
    %v1801 = vpop.permute.xlu0 %1800
    %1802 = vrot.lane.b32.xlu0 %v1775, 109
    %v1803 = vpop.permute.xlu0 %1802
    %1804 = vrot.lane.b32.xlu0 %v1780, 109
    %v1805 = vpop.permute.xlu0 %1804
    %1806 = vrot.lane.b32.xlu0 %v1781, 109
    %v1807 = vpop.permute.xlu0 %1806
    %1808 = vrot.lane.b32.xlu0 %v1782, 109
    %v1809 = vpop.permute.xlu0 %1808
    %1810 = vrot.lane.b32.xlu0 %v1783, 109
    %v1811 = vpop.permute.xlu0 %1810
    %1812 = vrot.lane.b32.xlu0 %v1784, 109
    %v1813 = vpop.permute.xlu0 %1812
    %1814 = vrot.lane.b32.xlu0 %v1785, 109
    %v1815 = vpop.permute.xlu0 %1814
    %1816 = vrot.lane.b32.xlu0 %v1786, 109
    %v1817 = vpop.permute.xlu0 %1816
    %1818 = vrot.lane.b32.xlu0 %v1787, 109
    %v1819 = vpop.permute.xlu0 %1818
    %vm1820 = vcmask 891904
    %v1821 = vsel %vm1820, %v1789, %v1791
    %v1822 = vsel %vm1820, %v1791, %v1793
    %v1823 = vsel %vm1820, %v1793, %v1795
    %v1824 = vsel %vm1820, %v1795, %v1797
    %v1825 = vsel %vm1820, %v1797, %v1799
    %v1826 = vsel %vm1820, %v1799, %v1801
    %v1827 = vsel %vm1820, %v1801, %v1803
    %v1828 = vsel %vm1820, %v1803, %v1805
    %v1829 = vsel %vm1820, %v1805, %v1807
    %v1830 = vsel %vm1820, %v1807, %v1809
    %v1831 = vsel %vm1820, %v1809, %v1811
    %v1832 = vsel %vm1820, %v1811, %v1813
    %v1833 = vsel %vm1820, %v1813, %v1815
    %v1834 = vsel %vm1820, %v1815, %v1817
    %v1835 = vsel %vm1820, %v1817, %v1819
    %v1837 = vsel %vm124, %v1760, 0
    %v1839 = vsel %vm128, %v1821, 0
    %v1841 = vsel %vm128, %v1822, 0
    %v1843 = vsel %vm128, %v1823, 0
    %v1845 = vsel %vm128, %v1824, 0
    %v1847 = vsel %vm128, %v1825, 0
    %v1849 = vsel %vm128, %v1826, 0
    %v1851 = vsel %vm128, %v1827, 0
    %v1853 = vsel %vm128, %v1828, 0
    %v1855 = vsel %vm128, %v1829, 0
    %v1857 = vsel %vm128, %v1830, 0
    %v1859 = vsel %vm128, %v1831, 0
    %v1861 = vsel %vm128, %v1832, 0
    %v1863 = vsel %vm128, %v1833, 0
    %v1865 = vsel %vm128, %v1834, 0
    %v1867 = vsel %vm128, %v1835, 0
    %v1869 = vsel %vm128, %v1819, 0
    %1871 = vmatpush.msra.mxu0 0.0
    %1872 = vmatpush.msra.mxu0 0.0
    %1873 = vmatpush.msra.mxu0 0.0
    %1874 = vmatpush.msra.mxu0 0.0
    %1875 = vmatpush.msra.mxu0 0.0
    %1876 = vmatpush.msra.mxu0 0.0
    %1877 = vmatpush.msra.mxu0 0.0
    %1878 = vmatpush.msra.mxu0 0.0
    %1879 = vmatpush.msra.mxu0 0.0
    %1880 = vmatpush.msra.mxu0 0.0
    %1881 = vmatpush.msra.mxu0 0.0
    %1882 = vmatpush.msra.mxu0 0.0
    %1883 = vmatpush.msra.mxu0 0.0
    %1884 = vmatpush.msra.mxu0 0.0
    %1885 = vmatpush.msra.mxu0 0.0
    %1886 = vmatpush.msra.mxu0 %v1839
    %1887 = vmatmul.f32.gmra.mxu0 %v1837
    %v1888 = vpop.f32.mrf.mxu0
    %v1889 = vadd.f32 0.0, %v1888
    %1890 = vdwg.mxu0
    %1891 = vmatpush.msra.mxu0 0.0
    %1892 = vmatpush.msra.mxu0 0.0
    %1893 = vmatpush.msra.mxu0 0.0
    %1894 = vmatpush.msra.mxu0 0.0
    %1895 = vmatpush.msra.mxu0 0.0
    %1896 = vmatpush.msra.mxu0 0.0
    %1897 = vmatpush.msra.mxu0 0.0
    %1898 = vmatpush.msra.mxu0 0.0
    %1899 = vmatpush.msra.mxu0 0.0
    %1900 = vmatpush.msra.mxu0 0.0
    %1901 = vmatpush.msra.mxu0 0.0
    %1902 = vmatpush.msra.mxu0 0.0
    %1903 = vmatpush.msra.mxu0 0.0
    %1904 = vmatpush.msra.mxu0 0.0
    %1905 = vmatpush.msra.mxu0 0.0
    %1906 = vmatpush.msra.mxu0 %v1841
    %1907 = vmatmul.f32.gmra.mxu0 %v1837
    %v1908 = vpop.f32.mrf.mxu0
    %v1909 = vadd.f32 0.0, %v1908
    %1910 = vdwg.mxu0
    %1911 = vmatpush.msra.mxu0 0.0
    %1912 = vmatpush.msra.mxu0 0.0
    %1913 = vmatpush.msra.mxu0 0.0
    %1914 = vmatpush.msra.mxu0 0.0
    %1915 = vmatpush.msra.mxu0 0.0
    %1916 = vmatpush.msra.mxu0 0.0
    %1917 = vmatpush.msra.mxu0 0.0
    %1918 = vmatpush.msra.mxu0 0.0
    %1919 = vmatpush.msra.mxu0 0.0
    %1920 = vmatpush.msra.mxu0 0.0
    %1921 = vmatpush.msra.mxu0 0.0
    %1922 = vmatpush.msra.mxu0 0.0
    %1923 = vmatpush.msra.mxu0 0.0
    %1924 = vmatpush.msra.mxu0 0.0
    %1925 = vmatpush.msra.mxu0 0.0
    %1926 = vmatpush.msra.mxu0 %v1843
    %1927 = vmatmul.f32.gmra.mxu0 %v1837
    %v1928 = vpop.f32.mrf.mxu0
    %v1929 = vadd.f32 0.0, %v1928
    %1930 = vdwg.mxu0
    %1931 = vmatpush.msra.mxu0 0.0
    %1932 = vmatpush.msra.mxu0 0.0
    %1933 = vmatpush.msra.mxu0 0.0
    %1934 = vmatpush.msra.mxu0 0.0
    %1935 = vmatpush.msra.mxu0 0.0
    %1936 = vmatpush.msra.mxu0 0.0
    %1937 = vmatpush.msra.mxu0 0.0
    %1938 = vmatpush.msra.mxu0 0.0
    %1939 = vmatpush.msra.mxu0 0.0
    %1940 = vmatpush.msra.mxu0 0.0
    %1941 = vmatpush.msra.mxu0 0.0
    %1942 = vmatpush.msra.mxu0 0.0
    %1943 = vmatpush.msra.mxu0 0.0
    %1944 = vmatpush.msra.mxu0 0.0
    %1945 = vmatpush.msra.mxu0 0.0
    %1946 = vmatpush.msra.mxu0 %v1845
    %1947 = vmatmul.f32.gmra.mxu0 %v1837
    %v1948 = vpop.f32.mrf.mxu0
    %v1949 = vadd.f32 0.0, %v1948
    %1950 = vdwg.mxu0
    %1951 = vmatpush.msra.mxu0 0.0
    %1952 = vmatpush.msra.mxu0 0.0
    %1953 = vmatpush.msra.mxu0 0.0
    %1954 = vmatpush.msra.mxu0 0.0
    %1955 = vmatpush.msra.mxu0 0.0
    %1956 = vmatpush.msra.mxu0 0.0
    %1957 = vmatpush.msra.mxu0 0.0
    %1958 = vmatpush.msra.mxu0 0.0
    %1959 = vmatpush.msra.mxu0 0.0
    %1960 = vmatpush.msra.mxu0 0.0
    %1961 = vmatpush.msra.mxu0 0.0
    %1962 = vmatpush.msra.mxu0 0.0
    %1963 = vmatpush.msra.mxu0 0.0
    %1964 = vmatpush.msra.mxu0 0.0
    %1965 = vmatpush.msra.mxu0 0.0
    %1966 = vmatpush.msra.mxu0 %v1847
    %1967 = vmatmul.f32.gmra.mxu0 %v1837
    %v1968 = vpop.f32.mrf.mxu0
    %v1969 = vadd.f32 0.0, %v1968
    %1970 = vdwg.mxu0
    %1971 = vmatpush.msra.mxu0 0.0
    %1972 = vmatpush.msra.mxu0 0.0
    %1973 = vmatpush.msra.mxu0 0.0
    %1974 = vmatpush.msra.mxu0 0.0
    %1975 = vmatpush.msra.mxu0 0.0
    %1976 = vmatpush.msra.mxu0 0.0
    %1977 = vmatpush.msra.mxu0 0.0
    %1978 = vmatpush.msra.mxu0 0.0
    %1979 = vmatpush.msra.mxu0 0.0
    %1980 = vmatpush.msra.mxu0 0.0
    %1981 = vmatpush.msra.mxu0 0.0
    %1982 = vmatpush.msra.mxu0 0.0
    %1983 = vmatpush.msra.mxu0 0.0
    %1984 = vmatpush.msra.mxu0 0.0
    %1985 = vmatpush.msra.mxu0 0.0
    %1986 = vmatpush.msra.mxu0 %v1849
    %1987 = vmatmul.f32.gmra.mxu0 %v1837
    %v1988 = vpop.f32.mrf.mxu0
    %v1989 = vadd.f32 0.0, %v1988
    %1990 = vdwg.mxu0
    %1991 = vmatpush.msra.mxu0 0.0
    %1992 = vmatpush.msra.mxu0 0.0
    %1993 = vmatpush.msra.mxu0 0.0
    %1994 = vmatpush.msra.mxu0 0.0
    %1995 = vmatpush.msra.mxu0 0.0
    %1996 = vmatpush.msra.mxu0 0.0
    %1997 = vmatpush.msra.mxu0 0.0
    %1998 = vmatpush.msra.mxu0 0.0
    %1999 = vmatpush.msra.mxu0 0.0
    %2000 = vmatpush.msra.mxu0 0.0
    %2001 = vmatpush.msra.mxu0 0.0
    %2002 = vmatpush.msra.mxu0 0.0
    %2003 = vmatpush.msra.mxu0 0.0
    %2004 = vmatpush.msra.mxu0 0.0
    %2005 = vmatpush.msra.mxu0 0.0
    %2006 = vmatpush.msra.mxu0 %v1851
    %2007 = vmatmul.f32.gmra.mxu0 %v1837
    %v2008 = vpop.f32.mrf.mxu0
    %v2009 = vadd.f32 0.0, %v2008
    %2010 = vdwg.mxu0
    %2011 = vmatpush.msra.mxu0 0.0
    %2012 = vmatpush.msra.mxu0 0.0
    %2013 = vmatpush.msra.mxu0 0.0
    %2014 = vmatpush.msra.mxu0 0.0
    %2015 = vmatpush.msra.mxu0 0.0
    %2016 = vmatpush.msra.mxu0 0.0
    %2017 = vmatpush.msra.mxu0 0.0
    %2018 = vmatpush.msra.mxu0 0.0
    %2019 = vmatpush.msra.mxu0 0.0
    %2020 = vmatpush.msra.mxu0 0.0
    %2021 = vmatpush.msra.mxu0 0.0
    %2022 = vmatpush.msra.mxu0 0.0
    %2023 = vmatpush.msra.mxu0 0.0
    %2024 = vmatpush.msra.mxu0 0.0
    %2025 = vmatpush.msra.mxu0 0.0
    %2026 = vmatpush.msra.mxu0 %v1853
    %2027 = vmatmul.f32.gmra.mxu0 %v1837
    %v2028 = vpop.f32.mrf.mxu0
    %v2029 = vadd.f32 0.0, %v2028
    %2030 = vdwg.mxu0
    %2031 = vmatpush.msra.mxu0 0.0
    %2032 = vmatpush.msra.mxu0 0.0
    %2033 = vmatpush.msra.mxu0 0.0
    %2034 = vmatpush.msra.mxu0 0.0
    %2035 = vmatpush.msra.mxu0 0.0
    %2036 = vmatpush.msra.mxu0 0.0
    %2037 = vmatpush.msra.mxu0 0.0
    %2038 = vmatpush.msra.mxu0 0.0
    %2039 = vmatpush.msra.mxu0 0.0
    %2040 = vmatpush.msra.mxu0 0.0
    %2041 = vmatpush.msra.mxu0 0.0
    %2042 = vmatpush.msra.mxu0 0.0
    %2043 = vmatpush.msra.mxu0 0.0
    %2044 = vmatpush.msra.mxu0 0.0
    %2045 = vmatpush.msra.mxu0 0.0
    %2046 = vmatpush.msra.mxu0 %v1855
    %2047 = vmatmul.f32.gmra.mxu0 %v1837
    %v2048 = vpop.f32.mrf.mxu0
    %v2049 = vadd.f32 0.0, %v2048
    %2050 = vdwg.mxu0
    %2051 = vmatpush.msra.mxu0 0.0
    %2052 = vmatpush.msra.mxu0 0.0
    %2053 = vmatpush.msra.mxu0 0.0
    %2054 = vmatpush.msra.mxu0 0.0
    %2055 = vmatpush.msra.mxu0 0.0
    %2056 = vmatpush.msra.mxu0 0.0
    %2057 = vmatpush.msra.mxu0 0.0
    %2058 = vmatpush.msra.mxu0 0.0
    %2059 = vmatpush.msra.mxu0 0.0
    %2060 = vmatpush.msra.mxu0 0.0
    %2061 = vmatpush.msra.mxu0 0.0
    %2062 = vmatpush.msra.mxu0 0.0
    %2063 = vmatpush.msra.mxu0 0.0
    %2064 = vmatpush.msra.mxu0 0.0
    %2065 = vmatpush.msra.mxu0 0.0
    %2066 = vmatpush.msra.mxu0 %v1857
    %2067 = vmatmul.f32.gmra.mxu0 %v1837
    %v2068 = vpop.f32.mrf.mxu0
    %v2069 = vadd.f32 0.0, %v2068
    %2070 = vdwg.mxu0
    %2071 = vmatpush.msra.mxu0 0.0
    %2072 = vmatpush.msra.mxu0 0.0
    %2073 = vmatpush.msra.mxu0 0.0
    %2074 = vmatpush.msra.mxu0 0.0
    %2075 = vmatpush.msra.mxu0 0.0
    %2076 = vmatpush.msra.mxu0 0.0
    %2077 = vmatpush.msra.mxu0 0.0
    %2078 = vmatpush.msra.mxu0 0.0
    %2079 = vmatpush.msra.mxu0 0.0
    %2080 = vmatpush.msra.mxu0 0.0
    %2081 = vmatpush.msra.mxu0 0.0
    %2082 = vmatpush.msra.mxu0 0.0
    %2083 = vmatpush.msra.mxu0 0.0
    %2084 = vmatpush.msra.mxu0 0.0
    %2085 = vmatpush.msra.mxu0 0.0
    %2086 = vmatpush.msra.mxu0 %v1859
    %2087 = vmatmul.f32.gmra.mxu0 %v1837
    %v2088 = vpop.f32.mrf.mxu0
    %v2089 = vadd.f32 0.0, %v2088
    %2090 = vdwg.mxu0
    %2091 = vmatpush.msra.mxu0 0.0
    %2092 = vmatpush.msra.mxu0 0.0
    %2093 = vmatpush.msra.mxu0 0.0
    %2094 = vmatpush.msra.mxu0 0.0
    %2095 = vmatpush.msra.mxu0 0.0
    %2096 = vmatpush.msra.mxu0 0.0
    %2097 = vmatpush.msra.mxu0 0.0
    %2098 = vmatpush.msra.mxu0 0.0
    %2099 = vmatpush.msra.mxu0 0.0
    %2100 = vmatpush.msra.mxu0 0.0
    %2101 = vmatpush.msra.mxu0 0.0
    %2102 = vmatpush.msra.mxu0 0.0
    %2103 = vmatpush.msra.mxu0 0.0
    %2104 = vmatpush.msra.mxu0 0.0
    %2105 = vmatpush.msra.mxu0 0.0
    %2106 = vmatpush.msra.mxu0 %v1861
    %2107 = vmatmul.f32.gmra.mxu0 %v1837
    %v2108 = vpop.f32.mrf.mxu0
    %v2109 = vadd.f32 0.0, %v2108
    %2110 = vdwg.mxu0
    %2111 = vmatpush.msra.mxu0 0.0
    %2112 = vmatpush.msra.mxu0 0.0
    %2113 = vmatpush.msra.mxu0 0.0
    %2114 = vmatpush.msra.mxu0 0.0
    %2115 = vmatpush.msra.mxu0 0.0
    %2116 = vmatpush.msra.mxu0 0.0
    %2117 = vmatpush.msra.mxu0 0.0
    %2118 = vmatpush.msra.mxu0 0.0
    %2119 = vmatpush.msra.mxu0 0.0
    %2120 = vmatpush.msra.mxu0 0.0
    %2121 = vmatpush.msra.mxu0 0.0
    %2122 = vmatpush.msra.mxu0 0.0
    %2123 = vmatpush.msra.mxu0 0.0
    %2124 = vmatpush.msra.mxu0 0.0
    %2125 = vmatpush.msra.mxu0 0.0
    %2126 = vmatpush.msra.mxu0 %v1863
    %2127 = vmatmul.f32.gmra.mxu0 %v1837
    %v2128 = vpop.f32.mrf.mxu0
    %v2129 = vadd.f32 0.0, %v2128
    %2130 = vdwg.mxu0
    %2131 = vmatpush.msra.mxu0 0.0
    %2132 = vmatpush.msra.mxu0 0.0
    %2133 = vmatpush.msra.mxu0 0.0
    %2134 = vmatpush.msra.mxu0 0.0
    %2135 = vmatpush.msra.mxu0 0.0
    %2136 = vmatpush.msra.mxu0 0.0
    %2137 = vmatpush.msra.mxu0 0.0
    %2138 = vmatpush.msra.mxu0 0.0
    %2139 = vmatpush.msra.mxu0 0.0
    %2140 = vmatpush.msra.mxu0 0.0
    %2141 = vmatpush.msra.mxu0 0.0
    %2142 = vmatpush.msra.mxu0 0.0
    %2143 = vmatpush.msra.mxu0 0.0
    %2144 = vmatpush.msra.mxu0 0.0
    %2145 = vmatpush.msra.mxu0 0.0
    %2146 = vmatpush.msra.mxu0 %v1865
    %2147 = vmatmul.f32.gmra.mxu0 %v1837
    %v2148 = vpop.f32.mrf.mxu0
    %v2149 = vadd.f32 0.0, %v2148
    %2150 = vdwg.mxu0
    %2151 = vmatpush.msra.mxu0 0.0
    %2152 = vmatpush.msra.mxu0 0.0
    %2153 = vmatpush.msra.mxu0 0.0
    %2154 = vmatpush.msra.mxu0 0.0
    %2155 = vmatpush.msra.mxu0 0.0
    %2156 = vmatpush.msra.mxu0 0.0
    %2157 = vmatpush.msra.mxu0 0.0
    %2158 = vmatpush.msra.mxu0 0.0
    %2159 = vmatpush.msra.mxu0 0.0
    %2160 = vmatpush.msra.mxu0 0.0
    %2161 = vmatpush.msra.mxu0 0.0
    %2162 = vmatpush.msra.mxu0 0.0
    %2163 = vmatpush.msra.mxu0 0.0
    %2164 = vmatpush.msra.mxu0 0.0
    %2165 = vmatpush.msra.mxu0 0.0
    %2166 = vmatpush.msra.mxu0 %v1867
    %2167 = vmatmul.f32.gmra.mxu0 %v1837
    %v2168 = vpop.f32.mrf.mxu0
    %v2169 = vadd.f32 0.0, %v2168
    %2170 = vdwg.mxu0
    %2171 = vmatpush.msra.mxu0 0.0
    %2172 = vmatpush.msra.mxu0 0.0
    %2173 = vmatpush.msra.mxu0 0.0
    %2174 = vmatpush.msra.mxu0 0.0
    %2175 = vmatpush.msra.mxu0 0.0
    %2176 = vmatpush.msra.mxu0 0.0
    %2177 = vmatpush.msra.mxu0 0.0
    %2178 = vmatpush.msra.mxu0 0.0
    %2179 = vmatpush.msra.mxu0 0.0
    %2180 = vmatpush.msra.mxu0 0.0
    %2181 = vmatpush.msra.mxu0 0.0
    %2182 = vmatpush.msra.mxu0 0.0
    %2183 = vmatpush.msra.mxu0 0.0
    %2184 = vmatpush.msra.mxu0 0.0
    %2185 = vmatpush.msra.mxu0 0.0
    %2186 = vmatpush.msra.mxu0 %v1869
    %2187 = vmatmul.f32.gmra.mxu0 %v1837
    %v2188 = vpop.f32.mrf.mxu0
    %v2189 = vadd.f32 0.0, %v2188
    %2190 = vdwg.mxu0
    %v2191 = vadd.f32 %v1743, %v1889
    %v2192 = vadd.f32 %v1744, %v1909
    %v2193 = vadd.f32 %v1745, %v1929
    %v2194 = vadd.f32 %v1746, %v1949
    %v2195 = vadd.f32 %v1747, %v1969
    %v2196 = vadd.f32 %v1748, %v1989
    %v2197 = vadd.f32 %v1749, %v2009
    %v2198 = vadd.f32 %v1750, %v2029
    %v2199 = vadd.f32 %v1751, %v2049
    %v2200 = vadd.f32 %v1752, %v2069
    %v2201 = vadd.f32 %v1753, %v2089
    %v2202 = vadd.f32 %v1754, %v2109
    %v2203 = vadd.f32 %v1755, %v2129
    %v2204 = vadd.f32 %v1756, %v2149
    %v2205 = vadd.f32 %v1757, %v2169
    %v2206 = vadd.f32 %v1758, %v2189
    %s2207 = scalar_lea.vmem %s1, 40
    %v2208 = vld [vmem:[%s2207] sm:$0xff]
    %2209 = vst [vmem:[#allocation1] ss:$2 sm:$0xff] %v30
    %s2210 = scalar_lea.vmem [#allocation1], 16
    %2211 = vst [vmem:[%s2210] ss:$2 sm:$0xff] %v31
    %s2212 = scalar_lea.vmem [#allocation1], 32
    %2213 = vst [vmem:[%s2212] ss:$2 sm:$0xff] %v32
    %s2214 = scalar_lea.vmem [#allocation1], 48
    %2215 = vst [vmem:[%s2214] ss:$2 sm:$0xff] %v33
    %v2216 = vld.sshfl [vmem:[#allocation1] sm:$0xff pattern:$0x75316420]
    %v2217 = vld.sshfl [vmem:[#allocation1 + $0x8] sm:$0xff pattern:$0x75316420]
    %v2218 = vld.sshfl [vmem:[#allocation1 + $0x10] sm:$0xff pattern:$0x75316420]
    %v2219 = vld.sshfl [vmem:[#allocation1 + $0x18] sm:$0xff pattern:$0x75316420]
    %v2220 = vld.sshfl [vmem:[#allocation1 + $0x20] sm:$0xff pattern:$0x75316420]
    %v2221 = vld.sshfl [vmem:[#allocation1 + $0x28] sm:$0xff pattern:$0x75316420]
    %v2222 = vld.sshfl [vmem:[#allocation1 + $0x30] sm:$0xff pattern:$0x75316420]
    %v2223 = vld.sshfl [vmem:[#allocation1 + $0x38] sm:$0xff pattern:$0x75316420]
    %2224 = vst [vmem:[#allocation1] ss:$2 sm:$0xff] %v34
    %2225 = vst [vmem:[%s2210] ss:$2 sm:$0xff] %v35
    %2226 = vst [vmem:[%s2212] ss:$2 sm:$0xff] %v36
    %2227 = vst [vmem:[%s2214] ss:$2 sm:$0xff] %v37
    %v2228 = vld.sshfl [vmem:[#allocation1] sm:$0xff pattern:$0x75316420]
    %v2229 = vld.sshfl [vmem:[#allocation1 + $0x8] sm:$0xff pattern:$0x75316420]
    %v2230 = vld.sshfl [vmem:[#allocation1 + $0x10] sm:$0xff pattern:$0x75316420]
    %v2231 = vld.sshfl [vmem:[#allocation1 + $0x18] sm:$0xff pattern:$0x75316420]
    %v2232 = vld.sshfl [vmem:[#allocation1 + $0x20] sm:$0xff pattern:$0x75316420]
    %v2233 = vld.sshfl [vmem:[#allocation1 + $0x28] sm:$0xff pattern:$0x75316420]
    %v2234 = vld.sshfl [vmem:[#allocation1 + $0x30] sm:$0xff pattern:$0x75316420]
    %v2235 = vld.sshfl [vmem:[#allocation1 + $0x38] sm:$0xff pattern:$0x75316420]
    %2236 = vrot.lane.b32.xlu0 %v2216, 108
    %v2237 = vpop.permute.xlu0 %2236
    %2238 = vrot.lane.b32.xlu0 %v2217, 108
    %v2239 = vpop.permute.xlu0 %2238
    %2240 = vrot.lane.b32.xlu0 %v2218, 108
    %v2241 = vpop.permute.xlu0 %2240
    %2242 = vrot.lane.b32.xlu0 %v2219, 108
    %v2243 = vpop.permute.xlu0 %2242
    %2244 = vrot.lane.b32.xlu0 %v2220, 108
    %v2245 = vpop.permute.xlu0 %2244
    %2246 = vrot.lane.b32.xlu0 %v2221, 108
    %v2247 = vpop.permute.xlu0 %2246
    %2248 = vrot.lane.b32.xlu0 %v2222, 108
    %v2249 = vpop.permute.xlu0 %2248
    %2250 = vrot.lane.b32.xlu0 %v2223, 108
    %v2251 = vpop.permute.xlu0 %2250
    %2252 = vrot.lane.b32.xlu0 %v2228, 108
    %v2253 = vpop.permute.xlu0 %2252
    %2254 = vrot.lane.b32.xlu0 %v2229, 108
    %v2255 = vpop.permute.xlu0 %2254
    %2256 = vrot.lane.b32.xlu0 %v2230, 108
    %v2257 = vpop.permute.xlu0 %2256
    %2258 = vrot.lane.b32.xlu0 %v2231, 108
    %v2259 = vpop.permute.xlu0 %2258
    %2260 = vrot.lane.b32.xlu0 %v2232, 108
    %v2261 = vpop.permute.xlu0 %2260
    %2262 = vrot.lane.b32.xlu0 %v2233, 108
    %v2263 = vpop.permute.xlu0 %2262
    %2264 = vrot.lane.b32.xlu0 %v2234, 108
    %v2265 = vpop.permute.xlu0 %2264
    %2266 = vrot.lane.b32.xlu0 %v2235, 108
    %v2267 = vpop.permute.xlu0 %2266
    %vm2268 = vcmask 883712
    %v2269 = vsel %vm2268, %v2237, %v2239
    %v2270 = vsel %vm2268, %v2239, %v2241
    %v2271 = vsel %vm2268, %v2241, %v2243
    %v2272 = vsel %vm2268, %v2243, %v2245
    %v2273 = vsel %vm2268, %v2245, %v2247
    %v2274 = vsel %vm2268, %v2247, %v2249
    %v2275 = vsel %vm2268, %v2249, %v2251
    %v2276 = vsel %vm2268, %v2251, %v2253
    %v2277 = vsel %vm2268, %v2253, %v2255
    %v2278 = vsel %vm2268, %v2255, %v2257
    %v2279 = vsel %vm2268, %v2257, %v2259
    %v2280 = vsel %vm2268, %v2259, %v2261
    %v2281 = vsel %vm2268, %v2261, %v2263
    %v2282 = vsel %vm2268, %v2263, %v2265
    %v2283 = vsel %vm2268, %v2265, %v2267
    %v2285 = vsel %vm124, %v2208, 0
    %v2287 = vsel %vm128, %v2269, 0
    %v2289 = vsel %vm128, %v2270, 0
    %v2291 = vsel %vm128, %v2271, 0
    %v2293 = vsel %vm128, %v2272, 0
    %v2295 = vsel %vm128, %v2273, 0
    %v2297 = vsel %vm128, %v2274, 0
    %v2299 = vsel %vm128, %v2275, 0
    %v2301 = vsel %vm128, %v2276, 0
    %v2303 = vsel %vm128, %v2277, 0
    %v2305 = vsel %vm128, %v2278, 0
    %v2307 = vsel %vm128, %v2279, 0
    %v2309 = vsel %vm128, %v2280, 0
    %v2311 = vsel %vm128, %v2281, 0
    %v2313 = vsel %vm128, %v2282, 0
    %v2315 = vsel %vm128, %v2283, 0
    %v2317 = vsel %vm128, %v2267, 0
    %2319 = vmatpush.msra.mxu0 0.0
    %2320 = vmatpush.msra.mxu0 0.0
    %2321 = vmatpush.msra.mxu0 0.0
    %2322 = vmatpush.msra.mxu0 0.0
    %2323 = vmatpush.msra.mxu0 0.0
    %2324 = vmatpush.msra.mxu0 0.0
    %2325 = vmatpush.msra.mxu0 0.0
    %2326 = vmatpush.msra.mxu0 0.0
    %2327 = vmatpush.msra.mxu0 0.0
    %2328 = vmatpush.msra.mxu0 0.0
    %2329 = vmatpush.msra.mxu0 0.0
    %2330 = vmatpush.msra.mxu0 0.0
    %2331 = vmatpush.msra.mxu0 0.0
    %2332 = vmatpush.msra.mxu0 0.0
    %2333 = vmatpush.msra.mxu0 0.0
    %2334 = vmatpush.msra.mxu0 %v2287
    %2335 = vmatmul.f32.gmra.mxu0 %v2285
    %v2336 = vpop.f32.mrf.mxu0
    %v2337 = vadd.f32 0.0, %v2336
    %2338 = vdwg.mxu0
    %2339 = vmatpush.msra.mxu0 0.0
    %2340 = vmatpush.msra.mxu0 0.0
    %2341 = vmatpush.msra.mxu0 0.0
    %2342 = vmatpush.msra.mxu0 0.0
    %2343 = vmatpush.msra.mxu0 0.0
    %2344 = vmatpush.msra.mxu0 0.0
    %2345 = vmatpush.msra.mxu0 0.0
    %2346 = vmatpush.msra.mxu0 0.0
    %2347 = vmatpush.msra.mxu0 0.0
    %2348 = vmatpush.msra.mxu0 0.0
    %2349 = vmatpush.msra.mxu0 0.0
    %2350 = vmatpush.msra.mxu0 0.0
    %2351 = vmatpush.msra.mxu0 0.0
    %2352 = vmatpush.msra.mxu0 0.0
    %2353 = vmatpush.msra.mxu0 0.0
    %2354 = vmatpush.msra.mxu0 %v2289
    %2355 = vmatmul.f32.gmra.mxu0 %v2285
    %v2356 = vpop.f32.mrf.mxu0
    %v2357 = vadd.f32 0.0, %v2356
    %2358 = vdwg.mxu0
    %2359 = vmatpush.msra.mxu0 0.0
    %2360 = vmatpush.msra.mxu0 0.0
    %2361 = vmatpush.msra.mxu0 0.0
    %2362 = vmatpush.msra.mxu0 0.0
    %2363 = vmatpush.msra.mxu0 0.0
    %2364 = vmatpush.msra.mxu0 0.0
    %2365 = vmatpush.msra.mxu0 0.0
    %2366 = vmatpush.msra.mxu0 0.0
    %2367 = vmatpush.msra.mxu0 0.0
    %2368 = vmatpush.msra.mxu0 0.0
    %2369 = vmatpush.msra.mxu0 0.0
    %2370 = vmatpush.msra.mxu0 0.0
    %2371 = vmatpush.msra.mxu0 0.0
    %2372 = vmatpush.msra.mxu0 0.0
    %2373 = vmatpush.msra.mxu0 0.0
    %2374 = vmatpush.msra.mxu0 %v2291
    %2375 = vmatmul.f32.gmra.mxu0 %v2285
    %v2376 = vpop.f32.mrf.mxu0
    %v2377 = vadd.f32 0.0, %v2376
    %2378 = vdwg.mxu0
    %2379 = vmatpush.msra.mxu0 0.0
    %2380 = vmatpush.msra.mxu0 0.0
    %2381 = vmatpush.msra.mxu0 0.0
    %2382 = vmatpush.msra.mxu0 0.0
    %2383 = vmatpush.msra.mxu0 0.0
    %2384 = vmatpush.msra.mxu0 0.0
    %2385 = vmatpush.msra.mxu0 0.0
    %2386 = vmatpush.msra.mxu0 0.0
    %2387 = vmatpush.msra.mxu0 0.0
    %2388 = vmatpush.msra.mxu0 0.0
    %2389 = vmatpush.msra.mxu0 0.0
    %2390 = vmatpush.msra.mxu0 0.0
    %2391 = vmatpush.msra.mxu0 0.0
    %2392 = vmatpush.msra.mxu0 0.0
    %2393 = vmatpush.msra.mxu0 0.0
    %2394 = vmatpush.msra.mxu0 %v2293
    %2395 = vmatmul.f32.gmra.mxu0 %v2285
    %v2396 = vpop.f32.mrf.mxu0
    %v2397 = vadd.f32 0.0, %v2396
    %2398 = vdwg.mxu0
    %2399 = vmatpush.msra.mxu0 0.0
    %2400 = vmatpush.msra.mxu0 0.0
    %2401 = vmatpush.msra.mxu0 0.0
    %2402 = vmatpush.msra.mxu0 0.0
    %2403 = vmatpush.msra.mxu0 0.0
    %2404 = vmatpush.msra.mxu0 0.0
    %2405 = vmatpush.msra.mxu0 0.0
    %2406 = vmatpush.msra.mxu0 0.0
    %2407 = vmatpush.msra.mxu0 0.0
    %2408 = vmatpush.msra.mxu0 0.0
    %2409 = vmatpush.msra.mxu0 0.0
    %2410 = vmatpush.msra.mxu0 0.0
    %2411 = vmatpush.msra.mxu0 0.0
    %2412 = vmatpush.msra.mxu0 0.0
    %2413 = vmatpush.msra.mxu0 0.0
    %2414 = vmatpush.msra.mxu0 %v2295
    %2415 = vmatmul.f32.gmra.mxu0 %v2285
    %v2416 = vpop.f32.mrf.mxu0
    %v2417 = vadd.f32 0.0, %v2416
    %2418 = vdwg.mxu0
    %2419 = vmatpush.msra.mxu0 0.0
    %2420 = vmatpush.msra.mxu0 0.0
    %2421 = vmatpush.msra.mxu0 0.0
    %2422 = vmatpush.msra.mxu0 0.0
    %2423 = vmatpush.msra.mxu0 0.0
    %2424 = vmatpush.msra.mxu0 0.0
    %2425 = vmatpush.msra.mxu0 0.0
    %2426 = vmatpush.msra.mxu0 0.0
    %2427 = vmatpush.msra.mxu0 0.0
    %2428 = vmatpush.msra.mxu0 0.0
    %2429 = vmatpush.msra.mxu0 0.0
    %2430 = vmatpush.msra.mxu0 0.0
    %2431 = vmatpush.msra.mxu0 0.0
    %2432 = vmatpush.msra.mxu0 0.0
    %2433 = vmatpush.msra.mxu0 0.0
    %2434 = vmatpush.msra.mxu0 %v2297
    %2435 = vmatmul.f32.gmra.mxu0 %v2285
    %v2436 = vpop.f32.mrf.mxu0
    %v2437 = vadd.f32 0.0, %v2436
    %2438 = vdwg.mxu0
    %2439 = vmatpush.msra.mxu0 0.0
    %2440 = vmatpush.msra.mxu0 0.0
    %2441 = vmatpush.msra.mxu0 0.0
    %2442 = vmatpush.msra.mxu0 0.0
    %2443 = vmatpush.msra.mxu0 0.0
    %2444 = vmatpush.msra.mxu0 0.0
    %2445 = vmatpush.msra.mxu0 0.0
    %2446 = vmatpush.msra.mxu0 0.0
    %2447 = vmatpush.msra.mxu0 0.0
    %2448 = vmatpush.msra.mxu0 0.0
    %2449 = vmatpush.msra.mxu0 0.0
    %2450 = vmatpush.msra.mxu0 0.0
    %2451 = vmatpush.msra.mxu0 0.0
    %2452 = vmatpush.msra.mxu0 0.0
    %2453 = vmatpush.msra.mxu0 0.0
    %2454 = vmatpush.msra.mxu0 %v2299
    %2455 = vmatmul.f32.gmra.mxu0 %v2285
    %v2456 = vpop.f32.mrf.mxu0
    %v2457 = vadd.f32 0.0, %v2456
    %2458 = vdwg.mxu0
    %2459 = vmatpush.msra.mxu0 0.0
    %2460 = vmatpush.msra.mxu0 0.0
    %2461 = vmatpush.msra.mxu0 0.0
    %2462 = vmatpush.msra.mxu0 0.0
    %2463 = vmatpush.msra.mxu0 0.0
    %2464 = vmatpush.msra.mxu0 0.0
    %2465 = vmatpush.msra.mxu0 0.0
    %2466 = vmatpush.msra.mxu0 0.0
    %2467 = vmatpush.msra.mxu0 0.0
    %2468 = vmatpush.msra.mxu0 0.0
    %2469 = vmatpush.msra.mxu0 0.0
    %2470 = vmatpush.msra.mxu0 0.0
    %2471 = vmatpush.msra.mxu0 0.0
    %2472 = vmatpush.msra.mxu0 0.0
    %2473 = vmatpush.msra.mxu0 0.0
    %2474 = vmatpush.msra.mxu0 %v2301
    %2475 = vmatmul.f32.gmra.mxu0 %v2285
    %v2476 = vpop.f32.mrf.mxu0
    %v2477 = vadd.f32 0.0, %v2476
    %2478 = vdwg.mxu0
    %2479 = vmatpush.msra.mxu0 0.0
    %2480 = vmatpush.msra.mxu0 0.0
    %2481 = vmatpush.msra.mxu0 0.0
    %2482 = vmatpush.msra.mxu0 0.0
    %2483 = vmatpush.msra.mxu0 0.0
    %2484 = vmatpush.msra.mxu0 0.0
    %2485 = vmatpush.msra.mxu0 0.0
    %2486 = vmatpush.msra.mxu0 0.0
    %2487 = vmatpush.msra.mxu0 0.0
    %2488 = vmatpush.msra.mxu0 0.0
    %2489 = vmatpush.msra.mxu0 0.0
    %2490 = vmatpush.msra.mxu0 0.0
    %2491 = vmatpush.msra.mxu0 0.0
    %2492 = vmatpush.msra.mxu0 0.0
    %2493 = vmatpush.msra.mxu0 0.0
    %2494 = vmatpush.msra.mxu0 %v2303
    %2495 = vmatmul.f32.gmra.mxu0 %v2285
    %v2496 = vpop.f32.mrf.mxu0
    %v2497 = vadd.f32 0.0, %v2496
    %2498 = vdwg.mxu0
    %2499 = vmatpush.msra.mxu0 0.0
    %2500 = vmatpush.msra.mxu0 0.0
    %2501 = vmatpush.msra.mxu0 0.0
    %2502 = vmatpush.msra.mxu0 0.0
    %2503 = vmatpush.msra.mxu0 0.0
    %2504 = vmatpush.msra.mxu0 0.0
    %2505 = vmatpush.msra.mxu0 0.0
    %2506 = vmatpush.msra.mxu0 0.0
    %2507 = vmatpush.msra.mxu0 0.0
    %2508 = vmatpush.msra.mxu0 0.0
    %2509 = vmatpush.msra.mxu0 0.0
    %2510 = vmatpush.msra.mxu0 0.0
    %2511 = vmatpush.msra.mxu0 0.0
    %2512 = vmatpush.msra.mxu0 0.0
    %2513 = vmatpush.msra.mxu0 0.0
    %2514 = vmatpush.msra.mxu0 %v2305
    %2515 = vmatmul.f32.gmra.mxu0 %v2285
    %v2516 = vpop.f32.mrf.mxu0
    %v2517 = vadd.f32 0.0, %v2516
    %2518 = vdwg.mxu0
    %2519 = vmatpush.msra.mxu0 0.0
    %2520 = vmatpush.msra.mxu0 0.0
    %2521 = vmatpush.msra.mxu0 0.0
    %2522 = vmatpush.msra.mxu0 0.0
    %2523 = vmatpush.msra.mxu0 0.0
    %2524 = vmatpush.msra.mxu0 0.0
    %2525 = vmatpush.msra.mxu0 0.0
    %2526 = vmatpush.msra.mxu0 0.0
    %2527 = vmatpush.msra.mxu0 0.0
    %2528 = vmatpush.msra.mxu0 0.0
    %2529 = vmatpush.msra.mxu0 0.0
    %2530 = vmatpush.msra.mxu0 0.0
    %2531 = vmatpush.msra.mxu0 0.0
    %2532 = vmatpush.msra.mxu0 0.0
    %2533 = vmatpush.msra.mxu0 0.0
    %2534 = vmatpush.msra.mxu0 %v2307
    %2535 = vmatmul.f32.gmra.mxu0 %v2285
    %v2536 = vpop.f32.mrf.mxu0
    %v2537 = vadd.f32 0.0, %v2536
    %2538 = vdwg.mxu0
    %2539 = vmatpush.msra.mxu0 0.0
    %2540 = vmatpush.msra.mxu0 0.0
    %2541 = vmatpush.msra.mxu0 0.0
    %2542 = vmatpush.msra.mxu0 0.0
    %2543 = vmatpush.msra.mxu0 0.0
    %2544 = vmatpush.msra.mxu0 0.0
    %2545 = vmatpush.msra.mxu0 0.0
    %2546 = vmatpush.msra.mxu0 0.0
    %2547 = vmatpush.msra.mxu0 0.0
    %2548 = vmatpush.msra.mxu0 0.0
    %2549 = vmatpush.msra.mxu0 0.0
    %2550 = vmatpush.msra.mxu0 0.0
    %2551 = vmatpush.msra.mxu0 0.0
    %2552 = vmatpush.msra.mxu0 0.0
    %2553 = vmatpush.msra.mxu0 0.0
    %2554 = vmatpush.msra.mxu0 %v2309
    %2555 = vmatmul.f32.gmra.mxu0 %v2285
    %v2556 = vpop.f32.mrf.mxu0
    %v2557 = vadd.f32 0.0, %v2556
    %2558 = vdwg.mxu0
    %2559 = vmatpush.msra.mxu0 0.0
    %2560 = vmatpush.msra.mxu0 0.0
    %2561 = vmatpush.msra.mxu0 0.0
    %2562 = vmatpush.msra.mxu0 0.0
    %2563 = vmatpush.msra.mxu0 0.0
    %2564 = vmatpush.msra.mxu0 0.0
    %2565 = vmatpush.msra.mxu0 0.0
    %2566 = vmatpush.msra.mxu0 0.0
    %2567 = vmatpush.msra.mxu0 0.0
    %2568 = vmatpush.msra.mxu0 0.0
    %2569 = vmatpush.msra.mxu0 0.0
    %2570 = vmatpush.msra.mxu0 0.0
    %2571 = vmatpush.msra.mxu0 0.0
    %2572 = vmatpush.msra.mxu0 0.0
    %2573 = vmatpush.msra.mxu0 0.0
    %2574 = vmatpush.msra.mxu0 %v2311
    %2575 = vmatmul.f32.gmra.mxu0 %v2285
    %v2576 = vpop.f32.mrf.mxu0
    %v2577 = vadd.f32 0.0, %v2576
    %2578 = vdwg.mxu0
    %2579 = vmatpush.msra.mxu0 0.0
    %2580 = vmatpush.msra.mxu0 0.0
    %2581 = vmatpush.msra.mxu0 0.0
    %2582 = vmatpush.msra.mxu0 0.0
    %2583 = vmatpush.msra.mxu0 0.0
    %2584 = vmatpush.msra.mxu0 0.0
    %2585 = vmatpush.msra.mxu0 0.0
    %2586 = vmatpush.msra.mxu0 0.0
    %2587 = vmatpush.msra.mxu0 0.0
    %2588 = vmatpush.msra.mxu0 0.0
    %2589 = vmatpush.msra.mxu0 0.0
    %2590 = vmatpush.msra.mxu0 0.0
    %2591 = vmatpush.msra.mxu0 0.0
    %2592 = vmatpush.msra.mxu0 0.0
    %2593 = vmatpush.msra.mxu0 0.0
    %2594 = vmatpush.msra.mxu0 %v2313
    %2595 = vmatmul.f32.gmra.mxu0 %v2285
    %v2596 = vpop.f32.mrf.mxu0
    %v2597 = vadd.f32 0.0, %v2596
    %2598 = vdwg.mxu0
    %2599 = vmatpush.msra.mxu0 0.0
    %2600 = vmatpush.msra.mxu0 0.0
    %2601 = vmatpush.msra.mxu0 0.0
    %2602 = vmatpush.msra.mxu0 0.0
    %2603 = vmatpush.msra.mxu0 0.0
    %2604 = vmatpush.msra.mxu0 0.0
    %2605 = vmatpush.msra.mxu0 0.0
    %2606 = vmatpush.msra.mxu0 0.0
    %2607 = vmatpush.msra.mxu0 0.0
    %2608 = vmatpush.msra.mxu0 0.0
    %2609 = vmatpush.msra.mxu0 0.0
    %2610 = vmatpush.msra.mxu0 0.0
    %2611 = vmatpush.msra.mxu0 0.0
    %2612 = vmatpush.msra.mxu0 0.0
    %2613 = vmatpush.msra.mxu0 0.0
    %2614 = vmatpush.msra.mxu0 %v2315
    %2615 = vmatmul.f32.gmra.mxu0 %v2285
    %v2616 = vpop.f32.mrf.mxu0
    %v2617 = vadd.f32 0.0, %v2616
    %2618 = vdwg.mxu0
    %2619 = vmatpush.msra.mxu0 0.0
    %2620 = vmatpush.msra.mxu0 0.0
    %2621 = vmatpush.msra.mxu0 0.0
    %2622 = vmatpush.msra.mxu0 0.0
    %2623 = vmatpush.msra.mxu0 0.0
    %2624 = vmatpush.msra.mxu0 0.0
    %2625 = vmatpush.msra.mxu0 0.0
    %2626 = vmatpush.msra.mxu0 0.0
    %2627 = vmatpush.msra.mxu0 0.0
    %2628 = vmatpush.msra.mxu0 0.0
    %2629 = vmatpush.msra.mxu0 0.0
    %2630 = vmatpush.msra.mxu0 0.0
    %2631 = vmatpush.msra.mxu0 0.0
    %2632 = vmatpush.msra.mxu0 0.0
    %2633 = vmatpush.msra.mxu0 0.0
    %2634 = vmatpush.msra.mxu0 %v2317
    %2635 = vmatmul.f32.gmra.mxu0 %v2285
    %v2636 = vpop.f32.mrf.mxu0
    %v2637 = vadd.f32 0.0, %v2636
    %2638 = vdwg.mxu0
    %v2639 = vadd.f32 %v2191, %v2337
    %v2640 = vadd.f32 %v2192, %v2357
    %v2641 = vadd.f32 %v2193, %v2377
    %v2642 = vadd.f32 %v2194, %v2397
    %v2643 = vadd.f32 %v2195, %v2417
    %v2644 = vadd.f32 %v2196, %v2437
    %v2645 = vadd.f32 %v2197, %v2457
    %v2646 = vadd.f32 %v2198, %v2477
    %v2647 = vadd.f32 %v2199, %v2497
    %v2648 = vadd.f32 %v2200, %v2517
    %v2649 = vadd.f32 %v2201, %v2537
    %v2650 = vadd.f32 %v2202, %v2557
    %v2651 = vadd.f32 %v2203, %v2577
    %v2652 = vadd.f32 %v2204, %v2597
    %v2653 = vadd.f32 %v2205, %v2617
    %v2654 = vadd.f32 %v2206, %v2637
    %s2655 = scalar_lea.vmem %s1, 48
    %v2656 = vld [vmem:[%s2655] sm:$0xff]
    %2657 = vst [vmem:[#allocation1] ss:$2 sm:$0xff] %v30
    %s2658 = scalar_lea.vmem [#allocation1], 16
    %2659 = vst [vmem:[%s2658] ss:$2 sm:$0xff] %v31
    %s2660 = scalar_lea.vmem [#allocation1], 32
    %2661 = vst [vmem:[%s2660] ss:$2 sm:$0xff] %v32
    %s2662 = scalar_lea.vmem [#allocation1], 48
    %2663 = vst [vmem:[%s2662] ss:$2 sm:$0xff] %v33
    %v2664 = vld.sshfl [vmem:[#allocation1] sm:$0xff pattern:$0x75316420]
    %v2665 = vld.sshfl [vmem:[#allocation1 + $0x8] sm:$0xff pattern:$0x75316420]
    %v2666 = vld.sshfl [vmem:[#allocation1 + $0x10] sm:$0xff pattern:$0x75316420]
    %v2667 = vld.sshfl [vmem:[#allocation1 + $0x18] sm:$0xff pattern:$0x75316420]
    %v2668 = vld.sshfl [vmem:[#allocation1 + $0x20] sm:$0xff pattern:$0x75316420]
    %v2669 = vld.sshfl [vmem:[#allocation1 + $0x28] sm:$0xff pattern:$0x75316420]
    %v2670 = vld.sshfl [vmem:[#allocation1 + $0x30] sm:$0xff pattern:$0x75316420]
    %v2671 = vld.sshfl [vmem:[#allocation1 + $0x38] sm:$0xff pattern:$0x75316420]
    %2672 = vst [vmem:[#allocation1] ss:$2 sm:$0xff] %v34
    %2673 = vst [vmem:[%s2658] ss:$2 sm:$0xff] %v35
    %2674 = vst [vmem:[%s2660] ss:$2 sm:$0xff] %v36
    %2675 = vst [vmem:[%s2662] ss:$2 sm:$0xff] %v37
    %v2676 = vld.sshfl [vmem:[#allocation1] sm:$0xff pattern:$0x75316420]
    %v2677 = vld.sshfl [vmem:[#allocation1 + $0x8] sm:$0xff pattern:$0x75316420]
    %v2678 = vld.sshfl [vmem:[#allocation1 + $0x10] sm:$0xff pattern:$0x75316420]
    %v2679 = vld.sshfl [vmem:[#allocation1 + $0x18] sm:$0xff pattern:$0x75316420]
    %v2680 = vld.sshfl [vmem:[#allocation1 + $0x20] sm:$0xff pattern:$0x75316420]
    %v2681 = vld.sshfl [vmem:[#allocation1 + $0x28] sm:$0xff pattern:$0x75316420]
    %v2682 = vld.sshfl [vmem:[#allocation1 + $0x30] sm:$0xff pattern:$0x75316420]
    %v2683 = vld.sshfl [vmem:[#allocation1 + $0x38] sm:$0xff pattern:$0x75316420]
    %2684 = vrot.lane.b32.xlu0 %v2664, 92
    %v2685 = vpop.permute.xlu0 %2684
    %2686 = vrot.lane.b32.xlu0 %v2665, 92
    %v2687 = vpop.permute.xlu0 %2686
    %2688 = vrot.lane.b32.xlu0 %v2666, 92
    %v2689 = vpop.permute.xlu0 %2688
    %2690 = vrot.lane.b32.xlu0 %v2667, 92
    %v2691 = vpop.permute.xlu0 %2690
    %2692 = vrot.lane.b32.xlu0 %v2668, 92
    %v2693 = vpop.permute.xlu0 %2692
    %2694 = vrot.lane.b32.xlu0 %v2669, 92
    %v2695 = vpop.permute.xlu0 %2694
    %2696 = vrot.lane.b32.xlu0 %v2670, 92
    %v2697 = vpop.permute.xlu0 %2696
    %2698 = vrot.lane.b32.xlu0 %v2671, 92
    %v2699 = vpop.permute.xlu0 %2698
    %2700 = vrot.lane.b32.xlu0 %v2676, 92
    %v2701 = vpop.permute.xlu0 %2700
    %2702 = vrot.lane.b32.xlu0 %v2677, 92
    %v2703 = vpop.permute.xlu0 %2702
    %2704 = vrot.lane.b32.xlu0 %v2678, 92
    %v2705 = vpop.permute.xlu0 %2704
    %2706 = vrot.lane.b32.xlu0 %v2679, 92
    %v2707 = vpop.permute.xlu0 %2706
    %2708 = vrot.lane.b32.xlu0 %v2680, 92
    %v2709 = vpop.permute.xlu0 %2708
    %2710 = vrot.lane.b32.xlu0 %v2681, 92
    %v2711 = vpop.permute.xlu0 %2710
    %2712 = vrot.lane.b32.xlu0 %v2682, 92
    %v2713 = vpop.permute.xlu0 %2712
    %2714 = vrot.lane.b32.xlu0 %v2683, 92
    %v2715 = vpop.permute.xlu0 %2714
    %vm2716 = vcmask 752640
    %v2717 = vsel %vm2716, %v2685, %v2687
    %v2718 = vsel %vm2716, %v2687, %v2689
    %v2719 = vsel %vm2716, %v2689, %v2691
    %v2720 = vsel %vm2716, %v2691, %v2693
    %v2721 = vsel %vm2716, %v2693, %v2695
    %v2722 = vsel %vm2716, %v2695, %v2697
    %v2723 = vsel %vm2716, %v2697, %v2699
    %v2724 = vsel %vm2716, %v2699, %v2701
    %v2725 = vsel %vm2716, %v2701, %v2703
    %v2726 = vsel %vm2716, %v2703, %v2705
    %v2727 = vsel %vm2716, %v2705, %v2707
    %v2728 = vsel %vm2716, %v2707, %v2709
    %v2729 = vsel %vm2716, %v2709, %v2711
    %v2730 = vsel %vm2716, %v2711, %v2713
    %v2731 = vsel %vm2716, %v2713, %v2715
    %v2733 = vsel %vm124, %v2656, 0
    %v2735 = vsel %vm128, %v2717, 0
    %v2737 = vsel %vm128, %v2718, 0
    %v2739 = vsel %vm128, %v2719, 0
    %v2741 = vsel %vm128, %v2720, 0
    %v2743 = vsel %vm128, %v2721, 0
    %v2745 = vsel %vm128, %v2722, 0
    %v2747 = vsel %vm128, %v2723, 0
    %v2749 = vsel %vm128, %v2724, 0
    %v2751 = vsel %vm128, %v2725, 0
    %v2753 = vsel %vm128, %v2726, 0
    %v2755 = vsel %vm128, %v2727, 0
    %v2757 = vsel %vm128, %v2728, 0
    %v2759 = vsel %vm128, %v2729, 0
    %v2761 = vsel %vm128, %v2730, 0
    %v2763 = vsel %vm128, %v2731, 0
    %v2765 = vsel %vm128, %v2715, 0
    %2767 = vmatpush.msra.mxu0 0.0
    %2768 = vmatpush.msra.mxu0 0.0
    %2769 = vmatpush.msra.mxu0 0.0
    %2770 = vmatpush.msra.mxu0 0.0
    %2771 = vmatpush.msra.mxu0 0.0
    %2772 = vmatpush.msra.mxu0 0.0
    %2773 = vmatpush.msra.mxu0 0.0
    %2774 = vmatpush.msra.mxu0 0.0
    %2775 = vmatpush.msra.mxu0 0.0
    %2776 = vmatpush.msra.mxu0 0.0
    %2777 = vmatpush.msra.mxu0 0.0
    %2778 = vmatpush.msra.mxu0 0.0
    %2779 = vmatpush.msra.mxu0 0.0
    %2780 = vmatpush.msra.mxu0 0.0
    %2781 = vmatpush.msra.mxu0 0.0
    %2782 = vmatpush.msra.mxu0 %v2735
    %2783 = vmatmul.f32.gmra.mxu0 %v2733
    %v2784 = vpop.f32.mrf.mxu0
    %v2785 = vadd.f32 0.0, %v2784
    %2786 = vdwg.mxu0
    %2787 = vmatpush.msra.mxu0 0.0
    %2788 = vmatpush.msra.mxu0 0.0
    %2789 = vmatpush.msra.mxu0 0.0
    %2790 = vmatpush.msra.mxu0 0.0
    %2791 = vmatpush.msra.mxu0 0.0
    %2792 = vmatpush.msra.mxu0 0.0
    %2793 = vmatpush.msra.mxu0 0.0
    %2794 = vmatpush.msra.mxu0 0.0
    %2795 = vmatpush.msra.mxu0 0.0
    %2796 = vmatpush.msra.mxu0 0.0
    %2797 = vmatpush.msra.mxu0 0.0
    %2798 = vmatpush.msra.mxu0 0.0
    %2799 = vmatpush.msra.mxu0 0.0
    %2800 = vmatpush.msra.mxu0 0.0
    %2801 = vmatpush.msra.mxu0 0.0
    %2802 = vmatpush.msra.mxu0 %v2737
    %2803 = vmatmul.f32.gmra.mxu0 %v2733
    %v2804 = vpop.f32.mrf.mxu0
    %v2805 = vadd.f32 0.0, %v2804
    %2806 = vdwg.mxu0
    %2807 = vmatpush.msra.mxu0 0.0
    %2808 = vmatpush.msra.mxu0 0.0
    %2809 = vmatpush.msra.mxu0 0.0
    %2810 = vmatpush.msra.mxu0 0.0
    %2811 = vmatpush.msra.mxu0 0.0
    %2812 = vmatpush.msra.mxu0 0.0
    %2813 = vmatpush.msra.mxu0 0.0
    %2814 = vmatpush.msra.mxu0 0.0
    %2815 = vmatpush.msra.mxu0 0.0
    %2816 = vmatpush.msra.mxu0 0.0
    %2817 = vmatpush.msra.mxu0 0.0
    %2818 = vmatpush.msra.mxu0 0.0
    %2819 = vmatpush.msra.mxu0 0.0
    %2820 = vmatpush.msra.mxu0 0.0
    %2821 = vmatpush.msra.mxu0 0.0
    %2822 = vmatpush.msra.mxu0 %v2739
    %2823 = vmatmul.f32.gmra.mxu0 %v2733
    %v2824 = vpop.f32.mrf.mxu0
    %v2825 = vadd.f32 0.0, %v2824
    %2826 = vdwg.mxu0
    %2827 = vmatpush.msra.mxu0 0.0
    %2828 = vmatpush.msra.mxu0 0.0
    %2829 = vmatpush.msra.mxu0 0.0
    %2830 = vmatpush.msra.mxu0 0.0
    %2831 = vmatpush.msra.mxu0 0.0
    %2832 = vmatpush.msra.mxu0 0.0
    %2833 = vmatpush.msra.mxu0 0.0
    %2834 = vmatpush.msra.mxu0 0.0
    %2835 = vmatpush.msra.mxu0 0.0
    %2836 = vmatpush.msra.mxu0 0.0
    %2837 = vmatpush.msra.mxu0 0.0
    %2838 = vmatpush.msra.mxu0 0.0
    %2839 = vmatpush.msra.mxu0 0.0
    %2840 = vmatpush.msra.mxu0 0.0
    %2841 = vmatpush.msra.mxu0 0.0
    %2842 = vmatpush.msra.mxu0 %v2741
    %2843 = vmatmul.f32.gmra.mxu0 %v2733
    %v2844 = vpop.f32.mrf.mxu0
    %v2845 = vadd.f32 0.0, %v2844
    %2846 = vdwg.mxu0
    %2847 = vmatpush.msra.mxu0 0.0
    %2848 = vmatpush.msra.mxu0 0.0
    %2849 = vmatpush.msra.mxu0 0.0
    %2850 = vmatpush.msra.mxu0 0.0
    %2851 = vmatpush.msra.mxu0 0.0
    %2852 = vmatpush.msra.mxu0 0.0
    %2853 = vmatpush.msra.mxu0 0.0
    %2854 = vmatpush.msra.mxu0 0.0
    %2855 = vmatpush.msra.mxu0 0.0
    %2856 = vmatpush.msra.mxu0 0.0
    %2857 = vmatpush.msra.mxu0 0.0
    %2858 = vmatpush.msra.mxu0 0.0
    %2859 = vmatpush.msra.mxu0 0.0
    %2860 = vmatpush.msra.mxu0 0.0
    %2861 = vmatpush.msra.mxu0 0.0
    %2862 = vmatpush.msra.mxu0 %v2743
    %2863 = vmatmul.f32.gmra.mxu0 %v2733
    %v2864 = vpop.f32.mrf.mxu0
    %v2865 = vadd.f32 0.0, %v2864
    %2866 = vdwg.mxu0
    %2867 = vmatpush.msra.mxu0 0.0
    %2868 = vmatpush.msra.mxu0 0.0
    %2869 = vmatpush.msra.mxu0 0.0
    %2870 = vmatpush.msra.mxu0 0.0
    %2871 = vmatpush.msra.mxu0 0.0
    %2872 = vmatpush.msra.mxu0 0.0
    %2873 = vmatpush.msra.mxu0 0.0
    %2874 = vmatpush.msra.mxu0 0.0
    %2875 = vmatpush.msra.mxu0 0.0
    %2876 = vmatpush.msra.mxu0 0.0
    %2877 = vmatpush.msra.mxu0 0.0
    %2878 = vmatpush.msra.mxu0 0.0
    %2879 = vmatpush.msra.mxu0 0.0
    %2880 = vmatpush.msra.mxu0 0.0
    %2881 = vmatpush.msra.mxu0 0.0
    %2882 = vmatpush.msra.mxu0 %v2745
    %2883 = vmatmul.f32.gmra.mxu0 %v2733
    %v2884 = vpop.f32.mrf.mxu0
    %v2885 = vadd.f32 0.0, %v2884
    %2886 = vdwg.mxu0
    %2887 = vmatpush.msra.mxu0 0.0
    %2888 = vmatpush.msra.mxu0 0.0
    %2889 = vmatpush.msra.mxu0 0.0
    %2890 = vmatpush.msra.mxu0 0.0
    %2891 = vmatpush.msra.mxu0 0.0
    %2892 = vmatpush.msra.mxu0 0.0
    %2893 = vmatpush.msra.mxu0 0.0
    %2894 = vmatpush.msra.mxu0 0.0
    %2895 = vmatpush.msra.mxu0 0.0
    %2896 = vmatpush.msra.mxu0 0.0
    %2897 = vmatpush.msra.mxu0 0.0
    %2898 = vmatpush.msra.mxu0 0.0
    %2899 = vmatpush.msra.mxu0 0.0
    %2900 = vmatpush.msra.mxu0 0.0
    %2901 = vmatpush.msra.mxu0 0.0
    %2902 = vmatpush.msra.mxu0 %v2747
    %2903 = vmatmul.f32.gmra.mxu0 %v2733
    %v2904 = vpop.f32.mrf.mxu0
    %v2905 = vadd.f32 0.0, %v2904
    %2906 = vdwg.mxu0
    %2907 = vmatpush.msra.mxu0 0.0
    %2908 = vmatpush.msra.mxu0 0.0
    %2909 = vmatpush.msra.mxu0 0.0
    %2910 = vmatpush.msra.mxu0 0.0
    %2911 = vmatpush.msra.mxu0 0.0
    %2912 = vmatpush.msra.mxu0 0.0
    %2913 = vmatpush.msra.mxu0 0.0
    %2914 = vmatpush.msra.mxu0 0.0
    %2915 = vmatpush.msra.mxu0 0.0
    %2916 = vmatpush.msra.mxu0 0.0
    %2917 = vmatpush.msra.mxu0 0.0
    %2918 = vmatpush.msra.mxu0 0.0
    %2919 = vmatpush.msra.mxu0 0.0
    %2920 = vmatpush.msra.mxu0 0.0
    %2921 = vmatpush.msra.mxu0 0.0
    %2922 = vmatpush.msra.mxu0 %v2749
    %2923 = vmatmul.f32.gmra.mxu0 %v2733
    %v2924 = vpop.f32.mrf.mxu0
    %v2925 = vadd.f32 0.0, %v2924
    %2926 = vdwg.mxu0
    %2927 = vmatpush.msra.mxu0 0.0
    %2928 = vmatpush.msra.mxu0 0.0
    %2929 = vmatpush.msra.mxu0 0.0
    %2930 = vmatpush.msra.mxu0 0.0
    %2931 = vmatpush.msra.mxu0 0.0
    %2932 = vmatpush.msra.mxu0 0.0
    %2933 = vmatpush.msra.mxu0 0.0
    %2934 = vmatpush.msra.mxu0 0.0
    %2935 = vmatpush.msra.mxu0 0.0
    %2936 = vmatpush.msra.mxu0 0.0
    %2937 = vmatpush.msra.mxu0 0.0
    %2938 = vmatpush.msra.mxu0 0.0
    %2939 = vmatpush.msra.mxu0 0.0
    %2940 = vmatpush.msra.mxu0 0.0
    %2941 = vmatpush.msra.mxu0 0.0
    %2942 = vmatpush.msra.mxu0 %v2751
    %2943 = vmatmul.f32.gmra.mxu0 %v2733
    %v2944 = vpop.f32.mrf.mxu0
    %v2945 = vadd.f32 0.0, %v2944
    %2946 = vdwg.mxu0
    %2947 = vmatpush.msra.mxu0 0.0
    %2948 = vmatpush.msra.mxu0 0.0
    %2949 = vmatpush.msra.mxu0 0.0
    %2950 = vmatpush.msra.mxu0 0.0
    %2951 = vmatpush.msra.mxu0 0.0
    %2952 = vmatpush.msra.mxu0 0.0
    %2953 = vmatpush.msra.mxu0 0.0
    %2954 = vmatpush.msra.mxu0 0.0
    %2955 = vmatpush.msra.mxu0 0.0
    %2956 = vmatpush.msra.mxu0 0.0
    %2957 = vmatpush.msra.mxu0 0.0
    %2958 = vmatpush.msra.mxu0 0.0
    %2959 = vmatpush.msra.mxu0 0.0
    %2960 = vmatpush.msra.mxu0 0.0
    %2961 = vmatpush.msra.mxu0 0.0
    %2962 = vmatpush.msra.mxu0 %v2753
    %2963 = vmatmul.f32.gmra.mxu0 %v2733
    %v2964 = vpop.f32.mrf.mxu0
    %v2965 = vadd.f32 0.0, %v2964
    %2966 = vdwg.mxu0
    %2967 = vmatpush.msra.mxu0 0.0
    %2968 = vmatpush.msra.mxu0 0.0
    %2969 = vmatpush.msra.mxu0 0.0
    %2970 = vmatpush.msra.mxu0 0.0
    %2971 = vmatpush.msra.mxu0 0.0
    %2972 = vmatpush.msra.mxu0 0.0
    %2973 = vmatpush.msra.mxu0 0.0
    %2974 = vmatpush.msra.mxu0 0.0
    %2975 = vmatpush.msra.mxu0 0.0
    %2976 = vmatpush.msra.mxu0 0.0
    %2977 = vmatpush.msra.mxu0 0.0
    %2978 = vmatpush.msra.mxu0 0.0
    %2979 = vmatpush.msra.mxu0 0.0
    %2980 = vmatpush.msra.mxu0 0.0
    %2981 = vmatpush.msra.mxu0 0.0
    %2982 = vmatpush.msra.mxu0 %v2755
    %2983 = vmatmul.f32.gmra.mxu0 %v2733
    %v2984 = vpop.f32.mrf.mxu0
    %v2985 = vadd.f32 0.0, %v2984
    %2986 = vdwg.mxu0
    %2987 = vmatpush.msra.mxu0 0.0
    %2988 = vmatpush.msra.mxu0 0.0
    %2989 = vmatpush.msra.mxu0 0.0
    %2990 = vmatpush.msra.mxu0 0.0
    %2991 = vmatpush.msra.mxu0 0.0
    %2992 = vmatpush.msra.mxu0 0.0
    %2993 = vmatpush.msra.mxu0 0.0
    %2994 = vmatpush.msra.mxu0 0.0
    %2995 = vmatpush.msra.mxu0 0.0
    %2996 = vmatpush.msra.mxu0 0.0
    %2997 = vmatpush.msra.mxu0 0.0
    %2998 = vmatpush.msra.mxu0 0.0
    %2999 = vmatpush.msra.mxu0 0.0
    %3000 = vmatpush.msra.mxu0 0.0
    %3001 = vmatpush.msra.mxu0 0.0
    %3002 = vmatpush.msra.mxu0 %v2757
    %3003 = vmatmul.f32.gmra.mxu0 %v2733
    %v3004 = vpop.f32.mrf.mxu0
    %v3005 = vadd.f32 0.0, %v3004
    %3006 = vdwg.mxu0
    %3007 = vmatpush.msra.mxu0 0.0
    %3008 = vmatpush.msra.mxu0 0.0
    %3009 = vmatpush.msra.mxu0 0.0
    %3010 = vmatpush.msra.mxu0 0.0
    %3011 = vmatpush.msra.mxu0 0.0
    %3012 = vmatpush.msra.mxu0 0.0
    %3013 = vmatpush.msra.mxu0 0.0
    %3014 = vmatpush.msra.mxu0 0.0
    %3015 = vmatpush.msra.mxu0 0.0
    %3016 = vmatpush.msra.mxu0 0.0
    %3017 = vmatpush.msra.mxu0 0.0
    %3018 = vmatpush.msra.mxu0 0.0
    %3019 = vmatpush.msra.mxu0 0.0
    %3020 = vmatpush.msra.mxu0 0.0
    %3021 = vmatpush.msra.mxu0 0.0
    %3022 = vmatpush.msra.mxu0 %v2759
    %3023 = vmatmul.f32.gmra.mxu0 %v2733
    %v3024 = vpop.f32.mrf.mxu0
    %v3025 = vadd.f32 0.0, %v3024
    %3026 = vdwg.mxu0
    %3027 = vmatpush.msra.mxu0 0.0
    %3028 = vmatpush.msra.mxu0 0.0
    %3029 = vmatpush.msra.mxu0 0.0
    %3030 = vmatpush.msra.mxu0 0.0
    %3031 = vmatpush.msra.mxu0 0.0
    %3032 = vmatpush.msra.mxu0 0.0
    %3033 = vmatpush.msra.mxu0 0.0
    %3034 = vmatpush.msra.mxu0 0.0
    %3035 = vmatpush.msra.mxu0 0.0
    %3036 = vmatpush.msra.mxu0 0.0
    %3037 = vmatpush.msra.mxu0 0.0
    %3038 = vmatpush.msra.mxu0 0.0
    %3039 = vmatpush.msra.mxu0 0.0
    %3040 = vmatpush.msra.mxu0 0.0
    %3041 = vmatpush.msra.mxu0 0.0
    %3042 = vmatpush.msra.mxu0 %v2761
    %3043 = vmatmul.f32.gmra.mxu0 %v2733
    %v3044 = vpop.f32.mrf.mxu0
    %v3045 = vadd.f32 0.0, %v3044
    %3046 = vdwg.mxu0
    %3047 = vmatpush.msra.mxu0 0.0
    %3048 = vmatpush.msra.mxu0 0.0
    %3049 = vmatpush.msra.mxu0 0.0
    %3050 = vmatpush.msra.mxu0 0.0
    %3051 = vmatpush.msra.mxu0 0.0
    %3052 = vmatpush.msra.mxu0 0.0
    %3053 = vmatpush.msra.mxu0 0.0
    %3054 = vmatpush.msra.mxu0 0.0
    %3055 = vmatpush.msra.mxu0 0.0
    %3056 = vmatpush.msra.mxu0 0.0
    %3057 = vmatpush.msra.mxu0 0.0
    %3058 = vmatpush.msra.mxu0 0.0
    %3059 = vmatpush.msra.mxu0 0.0
    %3060 = vmatpush.msra.mxu0 0.0
    %3061 = vmatpush.msra.mxu0 0.0
    %3062 = vmatpush.msra.mxu0 %v2763
    %3063 = vmatmul.f32.gmra.mxu0 %v2733
    %v3064 = vpop.f32.mrf.mxu0
    %v3065 = vadd.f32 0.0, %v3064
    %3066 = vdwg.mxu0
    %3067 = vmatpush.msra.mxu0 0.0
    %3068 = vmatpush.msra.mxu0 0.0
    %3069 = vmatpush.msra.mxu0 0.0
    %3070 = vmatpush.msra.mxu0 0.0
    %3071 = vmatpush.msra.mxu0 0.0
    %3072 = vmatpush.msra.mxu0 0.0
    %3073 = vmatpush.msra.mxu0 0.0
    %3074 = vmatpush.msra.mxu0 0.0
    %3075 = vmatpush.msra.mxu0 0.0
    %3076 = vmatpush.msra.mxu0 0.0
    %3077 = vmatpush.msra.mxu0 0.0
    %3078 = vmatpush.msra.mxu0 0.0
    %3079 = vmatpush.msra.mxu0 0.0
    %3080 = vmatpush.msra.mxu0 0.0
    %3081 = vmatpush.msra.mxu0 0.0
    %3082 = vmatpush.msra.mxu0 %v2765
    %3083 = vmatmul.f32.gmra.mxu0 %v2733
    %v3084 = vpop.f32.mrf.mxu0
    %v3085 = vadd.f32 0.0, %v3084
    %3086 = vdwg.mxu0
    %v3087 = vadd.f32 %v2639, %v2785
    %v3088 = vadd.f32 %v2640, %v2805
    %v3089 = vadd.f32 %v2641, %v2825
    %v3090 = vadd.f32 %v2642, %v2845
    %v3091 = vadd.f32 %v2643, %v2865
    %v3092 = vadd.f32 %v2644, %v2885
    %v3093 = vadd.f32 %v2645, %v2905
    %v3094 = vadd.f32 %v2646, %v2925
    %v3095 = vadd.f32 %v2647, %v2945
    %v3096 = vadd.f32 %v2648, %v2965
    %v3097 = vadd.f32 %v2649, %v2985
    %v3098 = vadd.f32 %v2650, %v3005
    %v3099 = vadd.f32 %v2651, %v3025
    %v3100 = vadd.f32 %v2652, %v3045
    %v3101 = vadd.f32 %v2653, %v3065
    %v3102 = vadd.f32 %v2654, %v3085
    %s3103 = scalar_lea.vmem %s1, 56
    %v3104 = vld [vmem:[%s3103] sm:$0xff]
    %3105 = vst [vmem:[#allocation1] ss:$2 sm:$0xff] %v30
    %s3106 = scalar_lea.vmem [#allocation1], 16
    %3107 = vst [vmem:[%s3106] ss:$2 sm:$0xff] %v31
    %s3108 = scalar_lea.vmem [#allocation1], 32
    %3109 = vst [vmem:[%s3108] ss:$2 sm:$0xff] %v32
    %s3110 = scalar_lea.vmem [#allocation1], 48
    %3111 = vst [vmem:[%s3110] ss:$2 sm:$0xff] %v33
    %v3112 = vld.sshfl [vmem:[#allocation1] sm:$0xff pattern:$0x75316420]
    %v3113 = vld.sshfl [vmem:[#allocation1 + $0x8] sm:$0xff pattern:$0x75316420]
    %v3114 = vld.sshfl [vmem:[#allocation1 + $0x10] sm:$0xff pattern:$0x75316420]
    %v3115 = vld.sshfl [vmem:[#allocation1 + $0x18] sm:$0xff pattern:$0x75316420]
    %v3116 = vld.sshfl [vmem:[#allocation1 + $0x20] sm:$0xff pattern:$0x75316420]
    %v3117 = vld.sshfl [vmem:[#allocation1 + $0x28] sm:$0xff pattern:$0x75316420]
    %v3118 = vld.sshfl [vmem:[#allocation1 + $0x30] sm:$0xff pattern:$0x75316420]
    %v3119 = vld.sshfl [vmem:[#allocation1 + $0x38] sm:$0xff pattern:$0x75316420]
    %3120 = vst [vmem:[#allocation1] ss:$2 sm:$0xff] %v34
    %3121 = vst [vmem:[%s3106] ss:$2 sm:$0xff] %v35
    %3122 = vst [vmem:[%s3108] ss:$2 sm:$0xff] %v36
    %3123 = vst [vmem:[%s3110] ss:$2 sm:$0xff] %v37
    %v3124 = vld.sshfl [vmem:[#allocation1] sm:$0xff pattern:$0x75316420]
    %v3125 = vld.sshfl [vmem:[#allocation1 + $0x8] sm:$0xff pattern:$0x75316420]
    %v3126 = vld.sshfl [vmem:[#allocation1 + $0x10] sm:$0xff pattern:$0x75316420]
    %v3127 = vld.sshfl [vmem:[#allocation1 + $0x18] sm:$0xff pattern:$0x75316420]
    %v3128 = vld.sshfl [vmem:[#allocation1 + $0x20] sm:$0xff pattern:$0x75316420]
    %v3129 = vld.sshfl [vmem:[#allocation1 + $0x28] sm:$0xff pattern:$0x75316420]
    %v3130 = vld.sshfl [vmem:[#allocation1 + $0x30] sm:$0xff pattern:$0x75316420]
    %v3131 = vld.sshfl [vmem:[#allocation1 + $0x38] sm:$0xff pattern:$0x75316420]
    %3132 = vrot.lane.b32.xlu0 %v3112, 91
    %v3133 = vpop.permute.xlu0 %3132
    %3134 = vrot.lane.b32.xlu0 %v3113, 91
    %v3135 = vpop.permute.xlu0 %3134
    %3136 = vrot.lane.b32.xlu0 %v3114, 91
    %v3137 = vpop.permute.xlu0 %3136
    %3138 = vrot.lane.b32.xlu0 %v3115, 91
    %v3139 = vpop.permute.xlu0 %3138
    %3140 = vrot.lane.b32.xlu0 %v3116, 91
    %v3141 = vpop.permute.xlu0 %3140
    %3142 = vrot.lane.b32.xlu0 %v3117, 91
    %v3143 = vpop.permute.xlu0 %3142
    %3144 = vrot.lane.b32.xlu0 %v3118, 91
    %v3145 = vpop.permute.xlu0 %3144
    %3146 = vrot.lane.b32.xlu0 %v3119, 91
    %v3147 = vpop.permute.xlu0 %3146
    %3148 = vrot.lane.b32.xlu0 %v3124, 91
    %v3149 = vpop.permute.xlu0 %3148
    %3150 = vrot.lane.b32.xlu0 %v3125, 91
    %v3151 = vpop.permute.xlu0 %3150
    %3152 = vrot.lane.b32.xlu0 %v3126, 91
    %v3153 = vpop.permute.xlu0 %3152
    %3154 = vrot.lane.b32.xlu0 %v3127, 91
    %v3155 = vpop.permute.xlu0 %3154
    %3156 = vrot.lane.b32.xlu0 %v3128, 91
    %v3157 = vpop.permute.xlu0 %3156
    %3158 = vrot.lane.b32.xlu0 %v3129, 91
    %v3159 = vpop.permute.xlu0 %3158
    %3160 = vrot.lane.b32.xlu0 %v3130, 91
    %v3161 = vpop.permute.xlu0 %3160
    %3162 = vrot.lane.b32.xlu0 %v3131, 91
    %v3163 = vpop.permute.xlu0 %3162
    %vm3164 = vcmask 744448
    %v3165 = vsel %vm3164, %v3133, %v3135
    %v3166 = vsel %vm3164, %v3135, %v3137
    %v3167 = vsel %vm3164, %v3137, %v3139
    %v3168 = vsel %vm3164, %v3139, %v3141
    %v3169 = vsel %vm3164, %v3141, %v3143
    %v3170 = vsel %vm3164, %v3143, %v3145
    %v3171 = vsel %vm3164, %v3145, %v3147
    %v3172 = vsel %vm3164, %v3147, %v3149
    %v3173 = vsel %vm3164, %v3149, %v3151
    %v3174 = vsel %vm3164, %v3151, %v3153
    %v3175 = vsel %vm3164, %v3153, %v3155
    %v3176 = vsel %vm3164, %v3155, %v3157
    %v3177 = vsel %vm3164, %v3157, %v3159
    %v3178 = vsel %vm3164, %v3159, %v3161
    %v3179 = vsel %vm3164, %v3161, %v3163
    %v3181 = vsel %vm124, %v3104, 0
    %v3183 = vsel %vm128, %v3165, 0
    %v3185 = vsel %vm128, %v3166, 0
    %v3187 = vsel %vm128, %v3167, 0
    %v3189 = vsel %vm128, %v3168, 0
    %v3191 = vsel %vm128, %v3169, 0
    %v3193 = vsel %vm128, %v3170, 0
    %v3195 = vsel %vm128, %v3171, 0
    %v3197 = vsel %vm128, %v3172, 0
    %v3199 = vsel %vm128, %v3173, 0
    %v3201 = vsel %vm128, %v3174, 0
    %v3203 = vsel %vm128, %v3175, 0
    %v3205 = vsel %vm128, %v3176, 0
    %v3207 = vsel %vm128, %v3177, 0
    %v3209 = vsel %vm128, %v3178, 0
    %v3211 = vsel %vm128, %v3179, 0
    %v3213 = vsel %vm128, %v3163, 0
    %3215 = vmatpush.msra.mxu0 0.0
    %3216 = vmatpush.msra.mxu0 0.0
    %3217 = vmatpush.msra.mxu0 0.0
    %3218 = vmatpush.msra.mxu0 0.0
    %3219 = vmatpush.msra.mxu0 0.0
    %3220 = vmatpush.msra.mxu0 0.0
    %3221 = vmatpush.msra.mxu0 0.0
    %3222 = vmatpush.msra.mxu0 0.0
    %3223 = vmatpush.msra.mxu0 0.0
    %3224 = vmatpush.msra.mxu0 0.0
    %3225 = vmatpush.msra.mxu0 0.0
    %3226 = vmatpush.msra.mxu0 0.0
    %3227 = vmatpush.msra.mxu0 0.0
    %3228 = vmatpush.msra.mxu0 0.0
    %3229 = vmatpush.msra.mxu0 0.0
    %3230 = vmatpush.msra.mxu0 %v3183
    %3231 = vmatmul.f32.gmra.mxu0 %v3181
    %v3232 = vpop.f32.mrf.mxu0
    %v3233 = vadd.f32 0.0, %v3232
    %3234 = vdwg.mxu0
    %3235 = vmatpush.msra.mxu0 0.0
    %3236 = vmatpush.msra.mxu0 0.0
    %3237 = vmatpush.msra.mxu0 0.0
    %3238 = vmatpush.msra.mxu0 0.0
    %3239 = vmatpush.msra.mxu0 0.0
    %3240 = vmatpush.msra.mxu0 0.0
    %3241 = vmatpush.msra.mxu0 0.0
    %3242 = vmatpush.msra.mxu0 0.0
    %3243 = vmatpush.msra.mxu0 0.0
    %3244 = vmatpush.msra.mxu0 0.0
    %3245 = vmatpush.msra.mxu0 0.0
    %3246 = vmatpush.msra.mxu0 0.0
    %3247 = vmatpush.msra.mxu0 0.0
    %3248 = vmatpush.msra.mxu0 0.0
    %3249 = vmatpush.msra.mxu0 0.0
    %3250 = vmatpush.msra.mxu0 %v3185
    %3251 = vmatmul.f32.gmra.mxu0 %v3181
    %v3252 = vpop.f32.mrf.mxu0
    %v3253 = vadd.f32 0.0, %v3252
    %3254 = vdwg.mxu0
    %3255 = vmatpush.msra.mxu0 0.0
    %3256 = vmatpush.msra.mxu0 0.0
    %3257 = vmatpush.msra.mxu0 0.0
    %3258 = vmatpush.msra.mxu0 0.0
    %3259 = vmatpush.msra.mxu0 0.0
    %3260 = vmatpush.msra.mxu0 0.0
    %3261 = vmatpush.msra.mxu0 0.0
    %3262 = vmatpush.msra.mxu0 0.0
    %3263 = vmatpush.msra.mxu0 0.0
    %3264 = vmatpush.msra.mxu0 0.0
    %3265 = vmatpush.msra.mxu0 0.0
    %3266 = vmatpush.msra.mxu0 0.0
    %3267 = vmatpush.msra.mxu0 0.0
    %3268 = vmatpush.msra.mxu0 0.0
    %3269 = vmatpush.msra.mxu0 0.0
    %3270 = vmatpush.msra.mxu0 %v3187
    %3271 = vmatmul.f32.gmra.mxu0 %v3181
    %v3272 = vpop.f32.mrf.mxu0
    %v3273 = vadd.f32 0.0, %v3272
    %3274 = vdwg.mxu0
    %3275 = vmatpush.msra.mxu0 0.0
    %3276 = vmatpush.msra.mxu0 0.0
    %3277 = vmatpush.msra.mxu0 0.0
    %3278 = vmatpush.msra.mxu0 0.0
    %3279 = vmatpush.msra.mxu0 0.0
    %3280 = vmatpush.msra.mxu0 0.0
    %3281 = vmatpush.msra.mxu0 0.0
    %3282 = vmatpush.msra.mxu0 0.0
    %3283 = vmatpush.msra.mxu0 0.0
    %3284 = vmatpush.msra.mxu0 0.0
    %3285 = vmatpush.msra.mxu0 0.0
    %3286 = vmatpush.msra.mxu0 0.0
    %3287 = vmatpush.msra.mxu0 0.0
    %3288 = vmatpush.msra.mxu0 0.0
    %3289 = vmatpush.msra.mxu0 0.0
    %3290 = vmatpush.msra.mxu0 %v3189
    %3291 = vmatmul.f32.gmra.mxu0 %v3181
    %v3292 = vpop.f32.mrf.mxu0
    %v3293 = vadd.f32 0.0, %v3292
    %3294 = vdwg.mxu0
    %3295 = vmatpush.msra.mxu0 0.0
    %3296 = vmatpush.msra.mxu0 0.0
    %3297 = vmatpush.msra.mxu0 0.0
    %3298 = vmatpush.msra.mxu0 0.0
    %3299 = vmatpush.msra.mxu0 0.0
    %3300 = vmatpush.msra.mxu0 0.0
    %3301 = vmatpush.msra.mxu0 0.0
    %3302 = vmatpush.msra.mxu0 0.0
    %3303 = vmatpush.msra.mxu0 0.0
    %3304 = vmatpush.msra.mxu0 0.0
    %3305 = vmatpush.msra.mxu0 0.0
    %3306 = vmatpush.msra.mxu0 0.0
    %3307 = vmatpush.msra.mxu0 0.0
    %3308 = vmatpush.msra.mxu0 0.0
    %3309 = vmatpush.msra.mxu0 0.0
    %3310 = vmatpush.msra.mxu0 %v3191
    %3311 = vmatmul.f32.gmra.mxu0 %v3181
    %v3312 = vpop.f32.mrf.mxu0
    %v3313 = vadd.f32 0.0, %v3312
    %3314 = vdwg.mxu0
    %3315 = vmatpush.msra.mxu0 0.0
    %3316 = vmatpush.msra.mxu0 0.0
    %3317 = vmatpush.msra.mxu0 0.0
    %3318 = vmatpush.msra.mxu0 0.0
    %3319 = vmatpush.msra.mxu0 0.0
    %3320 = vmatpush.msra.mxu0 0.0
    %3321 = vmatpush.msra.mxu0 0.0
    %3322 = vmatpush.msra.mxu0 0.0
    %3323 = vmatpush.msra.mxu0 0.0
    %3324 = vmatpush.msra.mxu0 0.0
    %3325 = vmatpush.msra.mxu0 0.0
    %3326 = vmatpush.msra.mxu0 0.0
    %3327 = vmatpush.msra.mxu0 0.0
    %3328 = vmatpush.msra.mxu0 0.0
    %3329 = vmatpush.msra.mxu0 0.0
    %3330 = vmatpush.msra.mxu0 %v3193
    %3331 = vmatmul.f32.gmra.mxu0 %v3181
    %v3332 = vpop.f32.mrf.mxu0
    %v3333 = vadd.f32 0.0, %v3332
    %3334 = vdwg.mxu0
    %3335 = vmatpush.msra.mxu0 0.0
    %3336 = vmatpush.msra.mxu0 0.0
    %3337 = vmatpush.msra.mxu0 0.0
    %3338 = vmatpush.msra.mxu0 0.0
    %3339 = vmatpush.msra.mxu0 0.0
    %3340 = vmatpush.msra.mxu0 0.0
    %3341 = vmatpush.msra.mxu0 0.0
    %3342 = vmatpush.msra.mxu0 0.0
    %3343 = vmatpush.msra.mxu0 0.0
    %3344 = vmatpush.msra.mxu0 0.0
    %3345 = vmatpush.msra.mxu0 0.0
    %3346 = vmatpush.msra.mxu0 0.0
    %3347 = vmatpush.msra.mxu0 0.0
    %3348 = vmatpush.msra.mxu0 0.0
    %3349 = vmatpush.msra.mxu0 0.0
    %3350 = vmatpush.msra.mxu0 %v3195
    %3351 = vmatmul.f32.gmra.mxu0 %v3181
    %v3352 = vpop.f32.mrf.mxu0
    %v3353 = vadd.f32 0.0, %v3352
    %3354 = vdwg.mxu0
    %3355 = vmatpush.msra.mxu0 0.0
    %3356 = vmatpush.msra.mxu0 0.0
    %3357 = vmatpush.msra.mxu0 0.0
    %3358 = vmatpush.msra.mxu0 0.0
    %3359 = vmatpush.msra.mxu0 0.0
    %3360 = vmatpush.msra.mxu0 0.0
    %3361 = vmatpush.msra.mxu0 0.0
    %3362 = vmatpush.msra.mxu0 0.0
    %3363 = vmatpush.msra.mxu0 0.0
    %3364 = vmatpush.msra.mxu0 0.0
    %3365 = vmatpush.msra.mxu0 0.0
    %3366 = vmatpush.msra.mxu0 0.0
    %3367 = vmatpush.msra.mxu0 0.0
    %3368 = vmatpush.msra.mxu0 0.0
    %3369 = vmatpush.msra.mxu0 0.0
    %3370 = vmatpush.msra.mxu0 %v3197
    %3371 = vmatmul.f32.gmra.mxu0 %v3181
    %v3372 = vpop.f32.mrf.mxu0
    %v3373 = vadd.f32 0.0, %v3372
    %3374 = vdwg.mxu0
    %3375 = vmatpush.msra.mxu0 0.0
    %3376 = vmatpush.msra.mxu0 0.0
    %3377 = vmatpush.msra.mxu0 0.0
    %3378 = vmatpush.msra.mxu0 0.0
    %3379 = vmatpush.msra.mxu0 0.0
    %3380 = vmatpush.msra.mxu0 0.0
    %3381 = vmatpush.msra.mxu0 0.0
    %3382 = vmatpush.msra.mxu0 0.0
    %3383 = vmatpush.msra.mxu0 0.0
    %3384 = vmatpush.msra.mxu0 0.0
    %3385 = vmatpush.msra.mxu0 0.0
    %3386 = vmatpush.msra.mxu0 0.0
    %3387 = vmatpush.msra.mxu0 0.0
    %3388 = vmatpush.msra.mxu0 0.0
    %3389 = vmatpush.msra.mxu0 0.0
    %3390 = vmatpush.msra.mxu0 %v3199
    %3391 = vmatmul.f32.gmra.mxu0 %v3181
    %v3392 = vpop.f32.mrf.mxu0
    %v3393 = vadd.f32 0.0, %v3392
    %3394 = vdwg.mxu0
    %3395 = vmatpush.msra.mxu0 0.0
    %3396 = vmatpush.msra.mxu0 0.0
    %3397 = vmatpush.msra.mxu0 0.0
    %3398 = vmatpush.msra.mxu0 0.0
    %3399 = vmatpush.msra.mxu0 0.0
    %3400 = vmatpush.msra.mxu0 0.0
    %3401 = vmatpush.msra.mxu0 0.0
    %3402 = vmatpush.msra.mxu0 0.0
    %3403 = vmatpush.msra.mxu0 0.0
    %3404 = vmatpush.msra.mxu0 0.0
    %3405 = vmatpush.msra.mxu0 0.0
    %3406 = vmatpush.msra.mxu0 0.0
    %3407 = vmatpush.msra.mxu0 0.0
    %3408 = vmatpush.msra.mxu0 0.0
    %3409 = vmatpush.msra.mxu0 0.0
    %3410 = vmatpush.msra.mxu0 %v3201
    %3411 = vmatmul.f32.gmra.mxu0 %v3181
    %v3412 = vpop.f32.mrf.mxu0
    %v3413 = vadd.f32 0.0, %v3412
    %3414 = vdwg.mxu0
    %3415 = vmatpush.msra.mxu0 0.0
    %3416 = vmatpush.msra.mxu0 0.0
    %3417 = vmatpush.msra.mxu0 0.0
    %3418 = vmatpush.msra.mxu0 0.0
    %3419 = vmatpush.msra.mxu0 0.0
    %3420 = vmatpush.msra.mxu0 0.0
    %3421 = vmatpush.msra.mxu0 0.0
    %3422 = vmatpush.msra.mxu0 0.0
    %3423 = vmatpush.msra.mxu0 0.0
    %3424 = vmatpush.msra.mxu0 0.0
    %3425 = vmatpush.msra.mxu0 0.0
    %3426 = vmatpush.msra.mxu0 0.0
    %3427 = vmatpush.msra.mxu0 0.0
    %3428 = vmatpush.msra.mxu0 0.0
    %3429 = vmatpush.msra.mxu0 0.0
    %3430 = vmatpush.msra.mxu0 %v3203
    %3431 = vmatmul.f32.gmra.mxu0 %v3181
    %v3432 = vpop.f32.mrf.mxu0
    %v3433 = vadd.f32 0.0, %v3432
    %3434 = vdwg.mxu0
    %3435 = vmatpush.msra.mxu0 0.0
    %3436 = vmatpush.msra.mxu0 0.0
    %3437 = vmatpush.msra.mxu0 0.0
    %3438 = vmatpush.msra.mxu0 0.0
    %3439 = vmatpush.msra.mxu0 0.0
    %3440 = vmatpush.msra.mxu0 0.0
    %3441 = vmatpush.msra.mxu0 0.0
    %3442 = vmatpush.msra.mxu0 0.0
    %3443 = vmatpush.msra.mxu0 0.0
    %3444 = vmatpush.msra.mxu0 0.0
    %3445 = vmatpush.msra.mxu0 0.0
    %3446 = vmatpush.msra.mxu0 0.0
    %3447 = vmatpush.msra.mxu0 0.0
    %3448 = vmatpush.msra.mxu0 0.0
    %3449 = vmatpush.msra.mxu0 0.0
    %3450 = vmatpush.msra.mxu0 %v3205
    %3451 = vmatmul.f32.gmra.mxu0 %v3181
    %v3452 = vpop.f32.mrf.mxu0
    %v3453 = vadd.f32 0.0, %v3452
    %3454 = vdwg.mxu0
    %3455 = vmatpush.msra.mxu0 0.0
    %3456 = vmatpush.msra.mxu0 0.0
    %3457 = vmatpush.msra.mxu0 0.0
    %3458 = vmatpush.msra.mxu0 0.0
    %3459 = vmatpush.msra.mxu0 0.0
    %3460 = vmatpush.msra.mxu0 0.0
    %3461 = vmatpush.msra.mxu0 0.0
    %3462 = vmatpush.msra.mxu0 0.0
    %3463 = vmatpush.msra.mxu0 0.0
    %3464 = vmatpush.msra.mxu0 0.0
    %3465 = vmatpush.msra.mxu0 0.0
    %3466 = vmatpush.msra.mxu0 0.0
    %3467 = vmatpush.msra.mxu0 0.0
    %3468 = vmatpush.msra.mxu0 0.0
    %3469 = vmatpush.msra.mxu0 0.0
    %3470 = vmatpush.msra.mxu0 %v3207
    %3471 = vmatmul.f32.gmra.mxu0 %v3181
    %v3472 = vpop.f32.mrf.mxu0
    %v3473 = vadd.f32 0.0, %v3472
    %3474 = vdwg.mxu0
    %3475 = vmatpush.msra.mxu0 0.0
    %3476 = vmatpush.msra.mxu0 0.0
    %3477 = vmatpush.msra.mxu0 0.0
    %3478 = vmatpush.msra.mxu0 0.0
    %3479 = vmatpush.msra.mxu0 0.0
    %3480 = vmatpush.msra.mxu0 0.0
    %3481 = vmatpush.msra.mxu0 0.0
    %3482 = vmatpush.msra.mxu0 0.0
    %3483 = vmatpush.msra.mxu0 0.0
    %3484 = vmatpush.msra.mxu0 0.0
    %3485 = vmatpush.msra.mxu0 0.0
    %3486 = vmatpush.msra.mxu0 0.0
    %3487 = vmatpush.msra.mxu0 0.0
    %3488 = vmatpush.msra.mxu0 0.0
    %3489 = vmatpush.msra.mxu0 0.0
    %3490 = vmatpush.msra.mxu0 %v3209
    %3491 = vmatmul.f32.gmra.mxu0 %v3181
    %v3492 = vpop.f32.mrf.mxu0
    %v3493 = vadd.f32 0.0, %v3492
    %3494 = vdwg.mxu0
    %3495 = vmatpush.msra.mxu0 0.0
    %3496 = vmatpush.msra.mxu0 0.0
    %3497 = vmatpush.msra.mxu0 0.0
    %3498 = vmatpush.msra.mxu0 0.0
    %3499 = vmatpush.msra.mxu0 0.0
    %3500 = vmatpush.msra.mxu0 0.0
    %3501 = vmatpush.msra.mxu0 0.0
    %3502 = vmatpush.msra.mxu0 0.0
    %3503 = vmatpush.msra.mxu0 0.0
    %3504 = vmatpush.msra.mxu0 0.0
    %3505 = vmatpush.msra.mxu0 0.0
    %3506 = vmatpush.msra.mxu0 0.0
    %3507 = vmatpush.msra.mxu0 0.0
    %3508 = vmatpush.msra.mxu0 0.0
    %3509 = vmatpush.msra.mxu0 0.0
    %3510 = vmatpush.msra.mxu0 %v3211
    %3511 = vmatmul.f32.gmra.mxu0 %v3181
    %v3512 = vpop.f32.mrf.mxu0
    %v3513 = vadd.f32 0.0, %v3512
    %3514 = vdwg.mxu0
    %3515 = vmatpush.msra.mxu0 0.0
    %3516 = vmatpush.msra.mxu0 0.0
    %3517 = vmatpush.msra.mxu0 0.0
    %3518 = vmatpush.msra.mxu0 0.0
    %3519 = vmatpush.msra.mxu0 0.0
    %3520 = vmatpush.msra.mxu0 0.0
    %3521 = vmatpush.msra.mxu0 0.0
    %3522 = vmatpush.msra.mxu0 0.0
    %3523 = vmatpush.msra.mxu0 0.0
    %3524 = vmatpush.msra.mxu0 0.0
    %3525 = vmatpush.msra.mxu0 0.0
    %3526 = vmatpush.msra.mxu0 0.0
    %3527 = vmatpush.msra.mxu0 0.0
    %3528 = vmatpush.msra.mxu0 0.0
    %3529 = vmatpush.msra.mxu0 0.0
    %3530 = vmatpush.msra.mxu0 %v3213
    %3531 = vmatmul.f32.gmra.mxu0 %v3181
    %v3532 = vpop.f32.mrf.mxu0
    %v3533 = vadd.f32 0.0, %v3532
    %3534 = vdwg.mxu0
    %v3535 = vadd.f32 %v3087, %v3233
    %v3536 = vadd.f32 %v3088, %v3253
    %v3537 = vadd.f32 %v3089, %v3273
    %v3538 = vadd.f32 %v3090, %v3293
    %v3539 = vadd.f32 %v3091, %v3313
    %v3540 = vadd.f32 %v3092, %v3333
    %v3541 = vadd.f32 %v3093, %v3353
    %v3542 = vadd.f32 %v3094, %v3373
    %v3543 = vadd.f32 %v3095, %v3393
    %v3544 = vadd.f32 %v3096, %v3413
    %v3545 = vadd.f32 %v3097, %v3433
    %v3546 = vadd.f32 %v3098, %v3453
    %v3547 = vadd.f32 %v3099, %v3473
    %v3548 = vadd.f32 %v3100, %v3493
    %v3549 = vadd.f32 %v3101, %v3513
    %v3550 = vadd.f32 %v3102, %v3533
    %s3551 = scalar_lea.vmem %s1, 64
    %v3552 = vld [vmem:[%s3551] sm:$0xff]
    %3553 = vst [vmem:[#allocation1] ss:$2 sm:$0xff] %v30
    %s3554 = scalar_lea.vmem [#allocation1], 16
    %3555 = vst [vmem:[%s3554] ss:$2 sm:$0xff] %v31
    %s3556 = scalar_lea.vmem [#allocation1], 32
    %3557 = vst [vmem:[%s3556] ss:$2 sm:$0xff] %v32
    %s3558 = scalar_lea.vmem [#allocation1], 48
    %3559 = vst [vmem:[%s3558] ss:$2 sm:$0xff] %v33
    %v3560 = vld.sshfl [vmem:[#allocation1] sm:$0xff pattern:$0x75316420]
    %v3561 = vld.sshfl [vmem:[#allocation1 + $0x8] sm:$0xff pattern:$0x75316420]
    %v3562 = vld.sshfl [vmem:[#allocation1 + $0x10] sm:$0xff pattern:$0x75316420]
    %v3563 = vld.sshfl [vmem:[#allocation1 + $0x18] sm:$0xff pattern:$0x75316420]
    %v3564 = vld.sshfl [vmem:[#allocation1 + $0x20] sm:$0xff pattern:$0x75316420]
    %v3565 = vld.sshfl [vmem:[#allocation1 + $0x28] sm:$0xff pattern:$0x75316420]
    %v3566 = vld.sshfl [vmem:[#allocation1 + $0x30] sm:$0xff pattern:$0x75316420]
    %v3567 = vld.sshfl [vmem:[#allocation1 + $0x38] sm:$0xff pattern:$0x75316420]
    %3568 = vst [vmem:[#allocation1] ss:$2 sm:$0xff] %v34
    %3569 = vst [vmem:[%s3554] ss:$2 sm:$0xff] %v35
    %3570 = vst [vmem:[%s3556] ss:$2 sm:$0xff] %v36
    %3571 = vst [vmem:[%s3558] ss:$2 sm:$0xff] %v37
    %v3572 = vld.sshfl [vmem:[#allocation1] sm:$0xff pattern:$0x75316420]
    %v3573 = vld.sshfl [vmem:[#allocation1 + $0x8] sm:$0xff pattern:$0x75316420]
    %v3574 = vld.sshfl [vmem:[#allocation1 + $0x10] sm:$0xff pattern:$0x75316420]
    %v3575 = vld.sshfl [vmem:[#allocation1 + $0x18] sm:$0xff pattern:$0x75316420]
    %v3576 = vld.sshfl [vmem:[#allocation1 + $0x20] sm:$0xff pattern:$0x75316420]
    %v3577 = vld.sshfl [vmem:[#allocation1 + $0x28] sm:$0xff pattern:$0x75316420]
    %v3578 = vld.sshfl [vmem:[#allocation1 + $0x30] sm:$0xff pattern:$0x75316420]
    %v3579 = vld.sshfl [vmem:[#allocation1 + $0x38] sm:$0xff pattern:$0x75316420]
    %3580 = vrot.lane.b32.xlu0 %v3560, 90
    %v3581 = vpop.permute.xlu0 %3580
    %3582 = vrot.lane.b32.xlu0 %v3561, 90
    %v3583 = vpop.permute.xlu0 %3582
    %3584 = vrot.lane.b32.xlu0 %v3562, 90
    %v3585 = vpop.permute.xlu0 %3584
    %3586 = vrot.lane.b32.xlu0 %v3563, 90
    %v3587 = vpop.permute.xlu0 %3586
    %3588 = vrot.lane.b32.xlu0 %v3564, 90
    %v3589 = vpop.permute.xlu0 %3588
    %3590 = vrot.lane.b32.xlu0 %v3565, 90
    %v3591 = vpop.permute.xlu0 %3590
    %3592 = vrot.lane.b32.xlu0 %v3566, 90
    %v3593 = vpop.permute.xlu0 %3592
    %3594 = vrot.lane.b32.xlu0 %v3567, 90
    %v3595 = vpop.permute.xlu0 %3594
    %3596 = vrot.lane.b32.xlu0 %v3572, 90
    %v3597 = vpop.permute.xlu0 %3596
    %3598 = vrot.lane.b32.xlu0 %v3573, 90
    %v3599 = vpop.permute.xlu0 %3598
    %3600 = vrot.lane.b32.xlu0 %v3574, 90
    %v3601 = vpop.permute.xlu0 %3600
    %3602 = vrot.lane.b32.xlu0 %v3575, 90
    %v3603 = vpop.permute.xlu0 %3602
    %3604 = vrot.lane.b32.xlu0 %v3576, 90
    %v3605 = vpop.permute.xlu0 %3604
    %3606 = vrot.lane.b32.xlu0 %v3577, 90
    %v3607 = vpop.permute.xlu0 %3606
    %3608 = vrot.lane.b32.xlu0 %v3578, 90
    %v3609 = vpop.permute.xlu0 %3608
    %3610 = vrot.lane.b32.xlu0 %v3579, 90
    %v3611 = vpop.permute.xlu0 %3610
    %vm3612 = vcmask 736256
    %v3613 = vsel %vm3612, %v3581, %v3583
    %v3614 = vsel %vm3612, %v3583, %v3585
    %v3615 = vsel %vm3612, %v3585, %v3587
    %v3616 = vsel %vm3612, %v3587, %v3589
    %v3617 = vsel %vm3612, %v3589, %v3591
    %v3618 = vsel %vm3612, %v3591, %v3593
    %v3619 = vsel %vm3612, %v3593, %v3595
    %v3620 = vsel %vm3612, %v3595, %v3597
    %v3621 = vsel %vm3612, %v3597, %v3599
    %v3622 = vsel %vm3612, %v3599, %v3601
    %v3623 = vsel %vm3612, %v3601, %v3603
    %v3624 = vsel %vm3612, %v3603, %v3605
    %v3625 = vsel %vm3612, %v3605, %v3607
    %v3626 = vsel %vm3612, %v3607, %v3609
    %v3627 = vsel %vm3612, %v3609, %v3611
    %v3629 = vsel %vm124, %v3552, 0
    %v3631 = vsel %vm128, %v3613, 0
    %v3633 = vsel %vm128, %v3614, 0
    %v3635 = vsel %vm128, %v3615, 0
    %v3637 = vsel %vm128, %v3616, 0
    %v3639 = vsel %vm128, %v3617, 0
    %v3641 = vsel %vm128, %v3618, 0
    %v3643 = vsel %vm128, %v3619, 0
    %v3645 = vsel %vm128, %v3620, 0
    %v3647 = vsel %vm128, %v3621, 0
    %v3649 = vsel %vm128, %v3622, 0
    %v3651 = vsel %vm128, %v3623, 0
    %v3653 = vsel %vm128, %v3624, 0
    %v3655 = vsel %vm128, %v3625, 0
    %v3657 = vsel %vm128, %v3626, 0
    %v3659 = vsel %vm128, %v3627, 0
    %v3661 = vsel %vm128, %v3611, 0
    %3663 = vmatpush.msra.mxu0 0.0
    %3664 = vmatpush.msra.mxu0 0.0
    %3665 = vmatpush.msra.mxu0 0.0
    %3666 = vmatpush.msra.mxu0 0.0
    %3667 = vmatpush.msra.mxu0 0.0
    %3668 = vmatpush.msra.mxu0 0.0
    %3669 = vmatpush.msra.mxu0 0.0
    %3670 = vmatpush.msra.mxu0 0.0
    %3671 = vmatpush.msra.mxu0 0.0
    %3672 = vmatpush.msra.mxu0 0.0
    %3673 = vmatpush.msra.mxu0 0.0
    %3674 = vmatpush.msra.mxu0 0.0
    %3675 = vmatpush.msra.mxu0 0.0
    %3676 = vmatpush.msra.mxu0 0.0
    %3677 = vmatpush.msra.mxu0 0.0
    %3678 = vmatpush.msra.mxu0 %v3631
    %3679 = vmatmul.f32.gmra.mxu0 %v3629
    %v3680 = vpop.f32.mrf.mxu0
    %v3681 = vadd.f32 0.0, %v3680
    %3682 = vdwg.mxu0
    %3683 = vmatpush.msra.mxu0 0.0
    %3684 = vmatpush.msra.mxu0 0.0
    %3685 = vmatpush.msra.mxu0 0.0
    %3686 = vmatpush.msra.mxu0 0.0
    %3687 = vmatpush.msra.mxu0 0.0
    %3688 = vmatpush.msra.mxu0 0.0
    %3689 = vmatpush.msra.mxu0 0.0
    %3690 = vmatpush.msra.mxu0 0.0
    %3691 = vmatpush.msra.mxu0 0.0
    %3692 = vmatpush.msra.mxu0 0.0
    %3693 = vmatpush.msra.mxu0 0.0
    %3694 = vmatpush.msra.mxu0 0.0
    %3695 = vmatpush.msra.mxu0 0.0
    %3696 = vmatpush.msra.mxu0 0.0
    %3697 = vmatpush.msra.mxu0 0.0
    %3698 = vmatpush.msra.mxu0 %v3633
    %3699 = vmatmul.f32.gmra.mxu0 %v3629
    %v3700 = vpop.f32.mrf.mxu0
    %v3701 = vadd.f32 0.0, %v3700
    %3702 = vdwg.mxu0
    %3703 = vmatpush.msra.mxu0 0.0
    %3704 = vmatpush.msra.mxu0 0.0
    %3705 = vmatpush.msra.mxu0 0.0
    %3706 = vmatpush.msra.mxu0 0.0
    %3707 = vmatpush.msra.mxu0 0.0
    %3708 = vmatpush.msra.mxu0 0.0
    %3709 = vmatpush.msra.mxu0 0.0
    %3710 = vmatpush.msra.mxu0 0.0
    %3711 = vmatpush.msra.mxu0 0.0
    %3712 = vmatpush.msra.mxu0 0.0
    %3713 = vmatpush.msra.mxu0 0.0
    %3714 = vmatpush.msra.mxu0 0.0
    %3715 = vmatpush.msra.mxu0 0.0
    %3716 = vmatpush.msra.mxu0 0.0
    %3717 = vmatpush.msra.mxu0 0.0
    %3718 = vmatpush.msra.mxu0 %v3635
    %3719 = vmatmul.f32.gmra.mxu0 %v3629
    %v3720 = vpop.f32.mrf.mxu0
    %v3721 = vadd.f32 0.0, %v3720
    %3722 = vdwg.mxu0
    %3723 = vmatpush.msra.mxu0 0.0
    %3724 = vmatpush.msra.mxu0 0.0
    %3725 = vmatpush.msra.mxu0 0.0
    %3726 = vmatpush.msra.mxu0 0.0
    %3727 = vmatpush.msra.mxu0 0.0
    %3728 = vmatpush.msra.mxu0 0.0
    %3729 = vmatpush.msra.mxu0 0.0
    %3730 = vmatpush.msra.mxu0 0.0
    %3731 = vmatpush.msra.mxu0 0.0
    %3732 = vmatpush.msra.mxu0 0.0
    %3733 = vmatpush.msra.mxu0 0.0
    %3734 = vmatpush.msra.mxu0 0.0
    %3735 = vmatpush.msra.mxu0 0.0
    %3736 = vmatpush.msra.mxu0 0.0
    %3737 = vmatpush.msra.mxu0 0.0
    %3738 = vmatpush.msra.mxu0 %v3637
    %3739 = vmatmul.f32.gmra.mxu0 %v3629
    %v3740 = vpop.f32.mrf.mxu0
    %v3741 = vadd.f32 0.0, %v3740
    %3742 = vdwg.mxu0
    %3743 = vmatpush.msra.mxu0 0.0
    %3744 = vmatpush.msra.mxu0 0.0
    %3745 = vmatpush.msra.mxu0 0.0
    %3746 = vmatpush.msra.mxu0 0.0
    %3747 = vmatpush.msra.mxu0 0.0
    %3748 = vmatpush.msra.mxu0 0.0
    %3749 = vmatpush.msra.mxu0 0.0
    %3750 = vmatpush.msra.mxu0 0.0
    %3751 = vmatpush.msra.mxu0 0.0
    %3752 = vmatpush.msra.mxu0 0.0
    %3753 = vmatpush.msra.mxu0 0.0
    %3754 = vmatpush.msra.mxu0 0.0
    %3755 = vmatpush.msra.mxu0 0.0
    %3756 = vmatpush.msra.mxu0 0.0
    %3757 = vmatpush.msra.mxu0 0.0
    %3758 = vmatpush.msra.mxu0 %v3639
    %3759 = vmatmul.f32.gmra.mxu0 %v3629
    %v3760 = vpop.f32.mrf.mxu0
    %v3761 = vadd.f32 0.0, %v3760
    %3762 = vdwg.mxu0
    %3763 = vmatpush.msra.mxu0 0.0
    %3764 = vmatpush.msra.mxu0 0.0
    %3765 = vmatpush.msra.mxu0 0.0
    %3766 = vmatpush.msra.mxu0 0.0
    %3767 = vmatpush.msra.mxu0 0.0
    %3768 = vmatpush.msra.mxu0 0.0
    %3769 = vmatpush.msra.mxu0 0.0
    %3770 = vmatpush.msra.mxu0 0.0
    %3771 = vmatpush.msra.mxu0 0.0
    %3772 = vmatpush.msra.mxu0 0.0
    %3773 = vmatpush.msra.mxu0 0.0
    %3774 = vmatpush.msra.mxu0 0.0
    %3775 = vmatpush.msra.mxu0 0.0
    %3776 = vmatpush.msra.mxu0 0.0
    %3777 = vmatpush.msra.mxu0 0.0
    %3778 = vmatpush.msra.mxu0 %v3641
    %3779 = vmatmul.f32.gmra.mxu0 %v3629
    %v3780 = vpop.f32.mrf.mxu0
    %v3781 = vadd.f32 0.0, %v3780
    %3782 = vdwg.mxu0
    %3783 = vmatpush.msra.mxu0 0.0
    %3784 = vmatpush.msra.mxu0 0.0
    %3785 = vmatpush.msra.mxu0 0.0
    %3786 = vmatpush.msra.mxu0 0.0
    %3787 = vmatpush.msra.mxu0 0.0
    %3788 = vmatpush.msra.mxu0 0.0
    %3789 = vmatpush.msra.mxu0 0.0
    %3790 = vmatpush.msra.mxu0 0.0
    %3791 = vmatpush.msra.mxu0 0.0
    %3792 = vmatpush.msra.mxu0 0.0
    %3793 = vmatpush.msra.mxu0 0.0
    %3794 = vmatpush.msra.mxu0 0.0
    %3795 = vmatpush.msra.mxu0 0.0
    %3796 = vmatpush.msra.mxu0 0.0
    %3797 = vmatpush.msra.mxu0 0.0
    %3798 = vmatpush.msra.mxu0 %v3643
    %3799 = vmatmul.f32.gmra.mxu0 %v3629
    %v3800 = vpop.f32.mrf.mxu0
    %v3801 = vadd.f32 0.0, %v3800
    %3802 = vdwg.mxu0
    %3803 = vmatpush.msra.mxu0 0.0
    %3804 = vmatpush.msra.mxu0 0.0
    %3805 = vmatpush.msra.mxu0 0.0
    %3806 = vmatpush.msra.mxu0 0.0
    %3807 = vmatpush.msra.mxu0 0.0
    %3808 = vmatpush.msra.mxu0 0.0
    %3809 = vmatpush.msra.mxu0 0.0
    %3810 = vmatpush.msra.mxu0 0.0
    %3811 = vmatpush.msra.mxu0 0.0
    %3812 = vmatpush.msra.mxu0 0.0
    %3813 = vmatpush.msra.mxu0 0.0
    %3814 = vmatpush.msra.mxu0 0.0
    %3815 = vmatpush.msra.mxu0 0.0
    %3816 = vmatpush.msra.mxu0 0.0
    %3817 = vmatpush.msra.mxu0 0.0
    %3818 = vmatpush.msra.mxu0 %v3645
    %3819 = vmatmul.f32.gmra.mxu0 %v3629
    %v3820 = vpop.f32.mrf.mxu0
    %v3821 = vadd.f32 0.0, %v3820
    %3822 = vdwg.mxu0
    %3823 = vmatpush.msra.mxu0 0.0
    %3824 = vmatpush.msra.mxu0 0.0
    %3825 = vmatpush.msra.mxu0 0.0
    %3826 = vmatpush.msra.mxu0 0.0
    %3827 = vmatpush.msra.mxu0 0.0
    %3828 = vmatpush.msra.mxu0 0.0
    %3829 = vmatpush.msra.mxu0 0.0
    %3830 = vmatpush.msra.mxu0 0.0
    %3831 = vmatpush.msra.mxu0 0.0
    %3832 = vmatpush.msra.mxu0 0.0
    %3833 = vmatpush.msra.mxu0 0.0
    %3834 = vmatpush.msra.mxu0 0.0
    %3835 = vmatpush.msra.mxu0 0.0
    %3836 = vmatpush.msra.mxu0 0.0
    %3837 = vmatpush.msra.mxu0 0.0
    %3838 = vmatpush.msra.mxu0 %v3647
    %3839 = vmatmul.f32.gmra.mxu0 %v3629
    %v3840 = vpop.f32.mrf.mxu0
    %v3841 = vadd.f32 0.0, %v3840
    %3842 = vdwg.mxu0
    %3843 = vmatpush.msra.mxu0 0.0
    %3844 = vmatpush.msra.mxu0 0.0
    %3845 = vmatpush.msra.mxu0 0.0
    %3846 = vmatpush.msra.mxu0 0.0
    %3847 = vmatpush.msra.mxu0 0.0
    %3848 = vmatpush.msra.mxu0 0.0
    %3849 = vmatpush.msra.mxu0 0.0
    %3850 = vmatpush.msra.mxu0 0.0
    %3851 = vmatpush.msra.mxu0 0.0
    %3852 = vmatpush.msra.mxu0 0.0
    %3853 = vmatpush.msra.mxu0 0.0
    %3854 = vmatpush.msra.mxu0 0.0
    %3855 = vmatpush.msra.mxu0 0.0
    %3856 = vmatpush.msra.mxu0 0.0
    %3857 = vmatpush.msra.mxu0 0.0
    %3858 = vmatpush.msra.mxu0 %v3649
    %3859 = vmatmul.f32.gmra.mxu0 %v3629
    %v3860 = vpop.f32.mrf.mxu0
    %v3861 = vadd.f32 0.0, %v3860
    %3862 = vdwg.mxu0
    %3863 = vmatpush.msra.mxu0 0.0
    %3864 = vmatpush.msra.mxu0 0.0
    %3865 = vmatpush.msra.mxu0 0.0
    %3866 = vmatpush.msra.mxu0 0.0
    %3867 = vmatpush.msra.mxu0 0.0
    %3868 = vmatpush.msra.mxu0 0.0
    %3869 = vmatpush.msra.mxu0 0.0
    %3870 = vmatpush.msra.mxu0 0.0
    %3871 = vmatpush.msra.mxu0 0.0
    %3872 = vmatpush.msra.mxu0 0.0
    %3873 = vmatpush.msra.mxu0 0.0
    %3874 = vmatpush.msra.mxu0 0.0
    %3875 = vmatpush.msra.mxu0 0.0
    %3876 = vmatpush.msra.mxu0 0.0
    %3877 = vmatpush.msra.mxu0 0.0
    %3878 = vmatpush.msra.mxu0 %v3651
    %3879 = vmatmul.f32.gmra.mxu0 %v3629
    %v3880 = vpop.f32.mrf.mxu0
    %v3881 = vadd.f32 0.0, %v3880
    %3882 = vdwg.mxu0
    %3883 = vmatpush.msra.mxu0 0.0
    %3884 = vmatpush.msra.mxu0 0.0
    %3885 = vmatpush.msra.mxu0 0.0
    %3886 = vmatpush.msra.mxu0 0.0
    %3887 = vmatpush.msra.mxu0 0.0
    %3888 = vmatpush.msra.mxu0 0.0
    %3889 = vmatpush.msra.mxu0 0.0
    %3890 = vmatpush.msra.mxu0 0.0
    %3891 = vmatpush.msra.mxu0 0.0
    %3892 = vmatpush.msra.mxu0 0.0
    %3893 = vmatpush.msra.mxu0 0.0
    %3894 = vmatpush.msra.mxu0 0.0
    %3895 = vmatpush.msra.mxu0 0.0
    %3896 = vmatpush.msra.mxu0 0.0
    %3897 = vmatpush.msra.mxu0 0.0
    %3898 = vmatpush.msra.mxu0 %v3653
    %3899 = vmatmul.f32.gmra.mxu0 %v3629
    %v3900 = vpop.f32.mrf.mxu0
    %v3901 = vadd.f32 0.0, %v3900
    %3902 = vdwg.mxu0
    %3903 = vmatpush.msra.mxu0 0.0
    %3904 = vmatpush.msra.mxu0 0.0
    %3905 = vmatpush.msra.mxu0 0.0
    %3906 = vmatpush.msra.mxu0 0.0
    %3907 = vmatpush.msra.mxu0 0.0
    %3908 = vmatpush.msra.mxu0 0.0
    %3909 = vmatpush.msra.mxu0 0.0
    %3910 = vmatpush.msra.mxu0 0.0
    %3911 = vmatpush.msra.mxu0 0.0
    %3912 = vmatpush.msra.mxu0 0.0
    %3913 = vmatpush.msra.mxu0 0.0
    %3914 = vmatpush.msra.mxu0 0.0
    %3915 = vmatpush.msra.mxu0 0.0
    %3916 = vmatpush.msra.mxu0 0.0
    %3917 = vmatpush.msra.mxu0 0.0
    %3918 = vmatpush.msra.mxu0 %v3655
    %3919 = vmatmul.f32.gmra.mxu0 %v3629
    %v3920 = vpop.f32.mrf.mxu0
    %v3921 = vadd.f32 0.0, %v3920
    %3922 = vdwg.mxu0
    %3923 = vmatpush.msra.mxu0 0.0
    %3924 = vmatpush.msra.mxu0 0.0
    %3925 = vmatpush.msra.mxu0 0.0
    %3926 = vmatpush.msra.mxu0 0.0
    %3927 = vmatpush.msra.mxu0 0.0
    %3928 = vmatpush.msra.mxu0 0.0
    %3929 = vmatpush.msra.mxu0 0.0
    %3930 = vmatpush.msra.mxu0 0.0
    %3931 = vmatpush.msra.mxu0 0.0
    %3932 = vmatpush.msra.mxu0 0.0
    %3933 = vmatpush.msra.mxu0 0.0
    %3934 = vmatpush.msra.mxu0 0.0
    %3935 = vmatpush.msra.mxu0 0.0
    %3936 = vmatpush.msra.mxu0 0.0
    %3937 = vmatpush.msra.mxu0 0.0
    %3938 = vmatpush.msra.mxu0 %v3657
    %3939 = vmatmul.f32.gmra.mxu0 %v3629
    %v3940 = vpop.f32.mrf.mxu0
    %v3941 = vadd.f32 0.0, %v3940
    %3942 = vdwg.mxu0
    %3943 = vmatpush.msra.mxu0 0.0
    %3944 = vmatpush.msra.mxu0 0.0
    %3945 = vmatpush.msra.mxu0 0.0
    %3946 = vmatpush.msra.mxu0 0.0
    %3947 = vmatpush.msra.mxu0 0.0
    %3948 = vmatpush.msra.mxu0 0.0
    %3949 = vmatpush.msra.mxu0 0.0
    %3950 = vmatpush.msra.mxu0 0.0
    %3951 = vmatpush.msra.mxu0 0.0
    %3952 = vmatpush.msra.mxu0 0.0
    %3953 = vmatpush.msra.mxu0 0.0
    %3954 = vmatpush.msra.mxu0 0.0
    %3955 = vmatpush.msra.mxu0 0.0
    %3956 = vmatpush.msra.mxu0 0.0
    %3957 = vmatpush.msra.mxu0 0.0
    %3958 = vmatpush.msra.mxu0 %v3659
    %3959 = vmatmul.f32.gmra.mxu0 %v3629
    %v3960 = vpop.f32.mrf.mxu0
    %v3961 = vadd.f32 0.0, %v3960
    %3962 = vdwg.mxu0
    %3963 = vmatpush.msra.mxu0 0.0
    %3964 = vmatpush.msra.mxu0 0.0
    %3965 = vmatpush.msra.mxu0 0.0
    %3966 = vmatpush.msra.mxu0 0.0
    %3967 = vmatpush.msra.mxu0 0.0
    %3968 = vmatpush.msra.mxu0 0.0
    %3969 = vmatpush.msra.mxu0 0.0
    %3970 = vmatpush.msra.mxu0 0.0
    %3971 = vmatpush.msra.mxu0 0.0
    %3972 = vmatpush.msra.mxu0 0.0
    %3973 = vmatpush.msra.mxu0 0.0
    %3974 = vmatpush.msra.mxu0 0.0
    %3975 = vmatpush.msra.mxu0 0.0
    %3976 = vmatpush.msra.mxu0 0.0
    %3977 = vmatpush.msra.mxu0 0.0
    %3978 = vmatpush.msra.mxu0 %v3661
    %3979 = vmatmul.f32.gmra.mxu0 %v3629
    %v3980 = vpop.f32.mrf.mxu0
    %v3981 = vadd.f32 0.0, %v3980
    %3982 = vdwg.mxu0
    %v3983 = vadd.f32 %v3535, %v3681
    %v3984 = vadd.f32 %v3536, %v3701
    %v3985 = vadd.f32 %v3537, %v3721
    %v3986 = vadd.f32 %v3538, %v3741
    %v3987 = vadd.f32 %v3539, %v3761
    %v3988 = vadd.f32 %v3540, %v3781
    %v3989 = vadd.f32 %v3541, %v3801
    %v3990 = vadd.f32 %v3542, %v3821
    %v3991 = vadd.f32 %v3543, %v3841
    %v3992 = vadd.f32 %v3544, %v3861
    %v3993 = vadd.f32 %v3545, %v3881
    %v3994 = vadd.f32 %v3546, %v3901
    %v3995 = vadd.f32 %v3547, %v3921
    %v3996 = vadd.f32 %v3548, %v3941
    %v3997 = vadd.f32 %v3549, %v3961
    %v3998 = vadd.f32 %v3550, %v3981
    %v3999 = vld [vmem:[%s2] sm:$0xff]
    %4001 = vset.pattern.permute.xlu0 0
    %4002 = vperm.xlu0 %4001, %v3999
    %v4003 = vpop.permute.xlu0 %4002
    %v4005 = vadd.f32 %v3983, %v4003
    %v4006 = vadd.f32 %v3984, %v4003
    %v4007 = vadd.f32 %v3985, %v4003
    %v4008 = vadd.f32 %v3986, %v4003
    %v4009 = vadd.f32 %v3987, %v4003
    %v4010 = vadd.f32 %v3988, %v4003
    %v4011 = vadd.f32 %v3989, %v4003
    %v4012 = vadd.f32 %v3990, %v4003
    %v4013 = vadd.f32 %v3991, %v4003
    %v4014 = vadd.f32 %v3992, %v4003
    %v4015 = vadd.f32 %v3993, %v4003
    %v4016 = vadd.f32 %v3994, %v4003
    %v4017 = vadd.f32 %v3995, %v4003
    %v4018 = vadd.f32 %v3996, %v4003
    %v4019 = vadd.f32 %v3997, %v4003
    %v4020 = vadd.f32 %v3998, %v4003
    %v4021 = vmax.f32 %v4005, 0.0
    %v4022 = vmax.f32 %v4006, 0.0
    %v4023 = vmax.f32 %v4007, 0.0
    %v4024 = vmax.f32 %v4008, 0.0
    %v4025 = vmax.f32 %v4009, 0.0
    %v4026 = vmax.f32 %v4010, 0.0
    %v4027 = vmax.f32 %v4011, 0.0
    %v4028 = vmax.f32 %v4012, 0.0
    %v4029 = vmax.f32 %v4013, 0.0
    %v4030 = vmax.f32 %v4014, 0.0
    %v4031 = vmax.f32 %v4015, 0.0
    %v4032 = vmax.f32 %v4016, 0.0
    %v4033 = vmax.f32 %v4017, 0.0
    %v4034 = vmax.f32 %v4018, 0.0
    %v4035 = vmax.f32 %v4019, 0.0
    %v4036 = vmax.f32 %v4020, 0.0
    %v4037 = vld [vmem:[%s3] sm:$0x3f]
    %v4038 = vld [vmem:[%s3 + $0x8] sm:$0x3f]
    %v4039 = vld [vmem:[%s3 + $0x10] sm:$0x3f]
    %v4040 = vld [vmem:[%s3 + $0x18] sm:$0x3f]
    %v4041 = vld [vmem:[%s3 + $0x20] sm:$0x3f]
    %v4042 = vld [vmem:[%s3 + $0x28] sm:$0x3f]
    %v4043 = vld [vmem:[%s3 + $0x30] sm:$0x3f]
    %v4044 = vld [vmem:[%s3 + $0x38] sm:$0x3f]
    %v4045 = vld [vmem:[%s3 + $0x40] sm:$0x3f]
    %v4046 = vld [vmem:[%s3 + $0x48] sm:$0x3f]
    %v4047 = vld [vmem:[%s3 + $0x50] sm:$0x3f]
    %v4048 = vld [vmem:[%s3 + $0x58] sm:$0x3f]
    %v4049 = vld [vmem:[%s3 + $0x60] sm:$0x3f]
    %v4050 = vld [vmem:[%s3 + $0x68] sm:$0x3f]
    %v4051 = vld [vmem:[%s3 + $0x70] sm:$0x3f]
    %v4052 = vld [vmem:[%s3 + $0x78] sm:$0x3f]
    %vm4053 = vcmask 195584
    %v4055 = vsel %vm4053, %v4052, 0
    %v4058 = vsel %vm4053, %v4036, 0
    %4060 = vmatpush.xpose.msra.mxu0 0.0
    %4061 = vmatpush.xpose.msra.mxu0 0.0
    %4062 = vmatpush.xpose.msra.mxu0 0.0
    %4063 = vmatpush.xpose.msra.mxu0 0.0
    %4064 = vmatpush.xpose.msra.mxu0 0.0
    %4065 = vmatpush.xpose.msra.mxu0 0.0
    %4066 = vmatpush.xpose.msra.mxu0 0.0
    %4067 = vmatpush.xpose.msra.mxu0 0.0
    %4068 = vmatpush.xpose.msra.mxu0 0.0
    %4069 = vmatpush.xpose.msra.mxu0 0.0
    %4070 = vmatpush.xpose.msra.mxu0 0.0
    %4071 = vmatpush.xpose.msra.mxu0 0.0
    %4072 = vmatpush.xpose.msra.mxu0 0.0
    %4073 = vmatpush.xpose.msra.mxu0 0.0
    %4074 = vmatpush.xpose.msra.mxu0 0.0
    %4075 = vmatpush.xpose.msra.mxu0 %v4021
    %4076 = vmatmul.f32.gmra.mxu0 %v4037
    %v4077 = vpop.f32.mrf.mxu0
    %v4078 = vadd.f32 0.0, %v4077
    %4079 = vdwg.mxu0
    %4080 = vmatpush.xpose.msra.mxu0 0.0
    %4081 = vmatpush.xpose.msra.mxu0 0.0
    %4082 = vmatpush.xpose.msra.mxu0 0.0
    %4083 = vmatpush.xpose.msra.mxu0 0.0
    %4084 = vmatpush.xpose.msra.mxu0 0.0
    %4085 = vmatpush.xpose.msra.mxu0 0.0
    %4086 = vmatpush.xpose.msra.mxu0 0.0
    %4087 = vmatpush.xpose.msra.mxu0 0.0
    %4088 = vmatpush.xpose.msra.mxu0 0.0
    %4089 = vmatpush.xpose.msra.mxu0 0.0
    %4090 = vmatpush.xpose.msra.mxu0 0.0
    %4091 = vmatpush.xpose.msra.mxu0 0.0
    %4092 = vmatpush.xpose.msra.mxu0 0.0
    %4093 = vmatpush.xpose.msra.mxu0 0.0
    %4094 = vmatpush.xpose.msra.mxu0 0.0
    %4095 = vmatpush.xpose.msra.mxu0 %v4022
    %4096 = vmatmul.f32.gmra.mxu0 %v4038
    %v4097 = vpop.f32.mrf.mxu0
    %v4098 = vadd.f32 %v4078, %v4097
    %4099 = vdwg.mxu0
    %4100 = vmatpush.xpose.msra.mxu0 0.0
    %4101 = vmatpush.xpose.msra.mxu0 0.0
    %4102 = vmatpush.xpose.msra.mxu0 0.0
    %4103 = vmatpush.xpose.msra.mxu0 0.0
    %4104 = vmatpush.xpose.msra.mxu0 0.0
    %4105 = vmatpush.xpose.msra.mxu0 0.0
    %4106 = vmatpush.xpose.msra.mxu0 0.0
    %4107 = vmatpush.xpose.msra.mxu0 0.0
    %4108 = vmatpush.xpose.msra.mxu0 0.0
    %4109 = vmatpush.xpose.msra.mxu0 0.0
    %4110 = vmatpush.xpose.msra.mxu0 0.0
    %4111 = vmatpush.xpose.msra.mxu0 0.0
    %4112 = vmatpush.xpose.msra.mxu0 0.0
    %4113 = vmatpush.xpose.msra.mxu0 0.0
    %4114 = vmatpush.xpose.msra.mxu0 0.0
    %4115 = vmatpush.xpose.msra.mxu0 %v4023
    %4116 = vmatmul.f32.gmra.mxu0 %v4039
    %v4117 = vpop.f32.mrf.mxu0
    %v4118 = vadd.f32 %v4098, %v4117
    %4119 = vdwg.mxu0
    %4120 = vmatpush.xpose.msra.mxu0 0.0
    %4121 = vmatpush.xpose.msra.mxu0 0.0
    %4122 = vmatpush.xpose.msra.mxu0 0.0
    %4123 = vmatpush.xpose.msra.mxu0 0.0
    %4124 = vmatpush.xpose.msra.mxu0 0.0
    %4125 = vmatpush.xpose.msra.mxu0 0.0
    %4126 = vmatpush.xpose.msra.mxu0 0.0
    %4127 = vmatpush.xpose.msra.mxu0 0.0
    %4128 = vmatpush.xpose.msra.mxu0 0.0
    %4129 = vmatpush.xpose.msra.mxu0 0.0
    %4130 = vmatpush.xpose.msra.mxu0 0.0
    %4131 = vmatpush.xpose.msra.mxu0 0.0
    %4132 = vmatpush.xpose.msra.mxu0 0.0
    %4133 = vmatpush.xpose.msra.mxu0 0.0
    %4134 = vmatpush.xpose.msra.mxu0 0.0
    %4135 = vmatpush.xpose.msra.mxu0 %v4024
    %4136 = vmatmul.f32.gmra.mxu0 %v4040
    %v4137 = vpop.f32.mrf.mxu0
    %v4138 = vadd.f32 %v4118, %v4137
    %4139 = vdwg.mxu0
    %4140 = vmatpush.xpose.msra.mxu0 0.0
    %4141 = vmatpush.xpose.msra.mxu0 0.0
    %4142 = vmatpush.xpose.msra.mxu0 0.0
    %4143 = vmatpush.xpose.msra.mxu0 0.0
    %4144 = vmatpush.xpose.msra.mxu0 0.0
    %4145 = vmatpush.xpose.msra.mxu0 0.0
    %4146 = vmatpush.xpose.msra.mxu0 0.0
    %4147 = vmatpush.xpose.msra.mxu0 0.0
    %4148 = vmatpush.xpose.msra.mxu0 0.0
    %4149 = vmatpush.xpose.msra.mxu0 0.0
    %4150 = vmatpush.xpose.msra.mxu0 0.0
    %4151 = vmatpush.xpose.msra.mxu0 0.0
    %4152 = vmatpush.xpose.msra.mxu0 0.0
    %4153 = vmatpush.xpose.msra.mxu0 0.0
    %4154 = vmatpush.xpose.msra.mxu0 0.0
    %4155 = vmatpush.xpose.msra.mxu0 %v4025
    %4156 = vmatmul.f32.gmra.mxu0 %v4041
    %v4157 = vpop.f32.mrf.mxu0
    %v4158 = vadd.f32 %v4138, %v4157
    %4159 = vdwg.mxu0
    %4160 = vmatpush.xpose.msra.mxu0 0.0
    %4161 = vmatpush.xpose.msra.mxu0 0.0
    %4162 = vmatpush.xpose.msra.mxu0 0.0
    %4163 = vmatpush.xpose.msra.mxu0 0.0
    %4164 = vmatpush.xpose.msra.mxu0 0.0
    %4165 = vmatpush.xpose.msra.mxu0 0.0
    %4166 = vmatpush.xpose.msra.mxu0 0.0
    %4167 = vmatpush.xpose.msra.mxu0 0.0
    %4168 = vmatpush.xpose.msra.mxu0 0.0
    %4169 = vmatpush.xpose.msra.mxu0 0.0
    %4170 = vmatpush.xpose.msra.mxu0 0.0
    %4171 = vmatpush.xpose.msra.mxu0 0.0
    %4172 = vmatpush.xpose.msra.mxu0 0.0
    %4173 = vmatpush.xpose.msra.mxu0 0.0
    %4174 = vmatpush.xpose.msra.mxu0 0.0
    %4175 = vmatpush.xpose.msra.mxu0 %v4026
    %4176 = vmatmul.f32.gmra.mxu0 %v4042
    %v4177 = vpop.f32.mrf.mxu0
    %v4178 = vadd.f32 %v4158, %v4177
    %4179 = vdwg.mxu0
    %4180 = vmatpush.xpose.msra.mxu0 0.0
    %4181 = vmatpush.xpose.msra.mxu0 0.0
    %4182 = vmatpush.xpose.msra.mxu0 0.0
    %4183 = vmatpush.xpose.msra.mxu0 0.0
    %4184 = vmatpush.xpose.msra.mxu0 0.0
    %4185 = vmatpush.xpose.msra.mxu0 0.0
    %4186 = vmatpush.xpose.msra.mxu0 0.0
    %4187 = vmatpush.xpose.msra.mxu0 0.0
    %4188 = vmatpush.xpose.msra.mxu0 0.0
    %4189 = vmatpush.xpose.msra.mxu0 0.0
    %4190 = vmatpush.xpose.msra.mxu0 0.0
    %4191 = vmatpush.xpose.msra.mxu0 0.0
    %4192 = vmatpush.xpose.msra.mxu0 0.0
    %4193 = vmatpush.xpose.msra.mxu0 0.0
    %4194 = vmatpush.xpose.msra.mxu0 0.0
    %4195 = vmatpush.xpose.msra.mxu0 %v4027
    %4196 = vmatmul.f32.gmra.mxu0 %v4043
    %v4197 = vpop.f32.mrf.mxu0
    %v4198 = vadd.f32 %v4178, %v4197
    %4199 = vdwg.mxu0
    %4200 = vmatpush.xpose.msra.mxu0 0.0
    %4201 = vmatpush.xpose.msra.mxu0 0.0
    %4202 = vmatpush.xpose.msra.mxu0 0.0
    %4203 = vmatpush.xpose.msra.mxu0 0.0
    %4204 = vmatpush.xpose.msra.mxu0 0.0
    %4205 = vmatpush.xpose.msra.mxu0 0.0
    %4206 = vmatpush.xpose.msra.mxu0 0.0
    %4207 = vmatpush.xpose.msra.mxu0 0.0
    %4208 = vmatpush.xpose.msra.mxu0 0.0
    %4209 = vmatpush.xpose.msra.mxu0 0.0
    %4210 = vmatpush.xpose.msra.mxu0 0.0
    %4211 = vmatpush.xpose.msra.mxu0 0.0
    %4212 = vmatpush.xpose.msra.mxu0 0.0
    %4213 = vmatpush.xpose.msra.mxu0 0.0
    %4214 = vmatpush.xpose.msra.mxu0 0.0
    %4215 = vmatpush.xpose.msra.mxu0 %v4028
    %4216 = vmatmul.f32.gmra.mxu0 %v4044
    %v4217 = vpop.f32.mrf.mxu0
    %v4218 = vadd.f32 %v4198, %v4217
    %4219 = vdwg.mxu0
    %4220 = vmatpush.xpose.msra.mxu0 0.0
    %4221 = vmatpush.xpose.msra.mxu0 0.0
    %4222 = vmatpush.xpose.msra.mxu0 0.0
    %4223 = vmatpush.xpose.msra.mxu0 0.0
    %4224 = vmatpush.xpose.msra.mxu0 0.0
    %4225 = vmatpush.xpose.msra.mxu0 0.0
    %4226 = vmatpush.xpose.msra.mxu0 0.0
    %4227 = vmatpush.xpose.msra.mxu0 0.0
    %4228 = vmatpush.xpose.msra.mxu0 0.0
    %4229 = vmatpush.xpose.msra.mxu0 0.0
    %4230 = vmatpush.xpose.msra.mxu0 0.0
    %4231 = vmatpush.xpose.msra.mxu0 0.0
    %4232 = vmatpush.xpose.msra.mxu0 0.0
    %4233 = vmatpush.xpose.msra.mxu0 0.0
    %4234 = vmatpush.xpose.msra.mxu0 0.0
    %4235 = vmatpush.xpose.msra.mxu0 %v4029
    %4236 = vmatmul.f32.gmra.mxu0 %v4045
    %v4237 = vpop.f32.mrf.mxu0
    %v4238 = vadd.f32 %v4218, %v4237
    %4239 = vdwg.mxu0
    %4240 = vmatpush.xpose.msra.mxu0 0.0
    %4241 = vmatpush.xpose.msra.mxu0 0.0
    %4242 = vmatpush.xpose.msra.mxu0 0.0
    %4243 = vmatpush.xpose.msra.mxu0 0.0
    %4244 = vmatpush.xpose.msra.mxu0 0.0
    %4245 = vmatpush.xpose.msra.mxu0 0.0
    %4246 = vmatpush.xpose.msra.mxu0 0.0
    %4247 = vmatpush.xpose.msra.mxu0 0.0
    %4248 = vmatpush.xpose.msra.mxu0 0.0
    %4249 = vmatpush.xpose.msra.mxu0 0.0
    %4250 = vmatpush.xpose.msra.mxu0 0.0
    %4251 = vmatpush.xpose.msra.mxu0 0.0
    %4252 = vmatpush.xpose.msra.mxu0 0.0
    %4253 = vmatpush.xpose.msra.mxu0 0.0
    %4254 = vmatpush.xpose.msra.mxu0 0.0
    %4255 = vmatpush.xpose.msra.mxu0 %v4030
    %4256 = vmatmul.f32.gmra.mxu0 %v4046
    %v4257 = vpop.f32.mrf.mxu0
    %v4258 = vadd.f32 %v4238, %v4257
    %4259 = vdwg.mxu0
    %4260 = vmatpush.xpose.msra.mxu0 0.0
    %4261 = vmatpush.xpose.msra.mxu0 0.0
    %4262 = vmatpush.xpose.msra.mxu0 0.0
    %4263 = vmatpush.xpose.msra.mxu0 0.0
    %4264 = vmatpush.xpose.msra.mxu0 0.0
    %4265 = vmatpush.xpose.msra.mxu0 0.0
    %4266 = vmatpush.xpose.msra.mxu0 0.0
    %4267 = vmatpush.xpose.msra.mxu0 0.0
    %4268 = vmatpush.xpose.msra.mxu0 0.0
    %4269 = vmatpush.xpose.msra.mxu0 0.0
    %4270 = vmatpush.xpose.msra.mxu0 0.0
    %4271 = vmatpush.xpose.msra.mxu0 0.0
    %4272 = vmatpush.xpose.msra.mxu0 0.0
    %4273 = vmatpush.xpose.msra.mxu0 0.0
    %4274 = vmatpush.xpose.msra.mxu0 0.0
    %4275 = vmatpush.xpose.msra.mxu0 %v4031
    %4276 = vmatmul.f32.gmra.mxu0 %v4047
    %v4277 = vpop.f32.mrf.mxu0
    %v4278 = vadd.f32 %v4258, %v4277
    %4279 = vdwg.mxu0
    %4280 = vmatpush.xpose.msra.mxu0 0.0
    %4281 = vmatpush.xpose.msra.mxu0 0.0
    %4282 = vmatpush.xpose.msra.mxu0 0.0
    %4283 = vmatpush.xpose.msra.mxu0 0.0
    %4284 = vmatpush.xpose.msra.mxu0 0.0
    %4285 = vmatpush.xpose.msra.mxu0 0.0
    %4286 = vmatpush.xpose.msra.mxu0 0.0
    %4287 = vmatpush.xpose.msra.mxu0 0.0
    %4288 = vmatpush.xpose.msra.mxu0 0.0
    %4289 = vmatpush.xpose.msra.mxu0 0.0
    %4290 = vmatpush.xpose.msra.mxu0 0.0
    %4291 = vmatpush.xpose.msra.mxu0 0.0
    %4292 = vmatpush.xpose.msra.mxu0 0.0
    %4293 = vmatpush.xpose.msra.mxu0 0.0
    %4294 = vmatpush.xpose.msra.mxu0 0.0
    %4295 = vmatpush.xpose.msra.mxu0 %v4032
    %4296 = vmatmul.f32.gmra.mxu0 %v4048
    %v4297 = vpop.f32.mrf.mxu0
    %v4298 = vadd.f32 %v4278, %v4297
    %4299 = vdwg.mxu0
    %4300 = vmatpush.xpose.msra.mxu0 0.0
    %4301 = vmatpush.xpose.msra.mxu0 0.0
    %4302 = vmatpush.xpose.msra.mxu0 0.0
    %4303 = vmatpush.xpose.msra.mxu0 0.0
    %4304 = vmatpush.xpose.msra.mxu0 0.0
    %4305 = vmatpush.xpose.msra.mxu0 0.0
    %4306 = vmatpush.xpose.msra.mxu0 0.0
    %4307 = vmatpush.xpose.msra.mxu0 0.0
    %4308 = vmatpush.xpose.msra.mxu0 0.0
    %4309 = vmatpush.xpose.msra.mxu0 0.0
    %4310 = vmatpush.xpose.msra.mxu0 0.0
    %4311 = vmatpush.xpose.msra.mxu0 0.0
    %4312 = vmatpush.xpose.msra.mxu0 0.0
    %4313 = vmatpush.xpose.msra.mxu0 0.0
    %4314 = vmatpush.xpose.msra.mxu0 0.0
    %4315 = vmatpush.xpose.msra.mxu0 %v4033
    %4316 = vmatmul.f32.gmra.mxu0 %v4049
    %v4317 = vpop.f32.mrf.mxu0
    %v4318 = vadd.f32 %v4298, %v4317
    %4319 = vdwg.mxu0
    %4320 = vmatpush.xpose.msra.mxu0 0.0
    %4321 = vmatpush.xpose.msra.mxu0 0.0
    %4322 = vmatpush.xpose.msra.mxu0 0.0
    %4323 = vmatpush.xpose.msra.mxu0 0.0
    %4324 = vmatpush.xpose.msra.mxu0 0.0
    %4325 = vmatpush.xpose.msra.mxu0 0.0
    %4326 = vmatpush.xpose.msra.mxu0 0.0
    %4327 = vmatpush.xpose.msra.mxu0 0.0
    %4328 = vmatpush.xpose.msra.mxu0 0.0
    %4329 = vmatpush.xpose.msra.mxu0 0.0
    %4330 = vmatpush.xpose.msra.mxu0 0.0
    %4331 = vmatpush.xpose.msra.mxu0 0.0
    %4332 = vmatpush.xpose.msra.mxu0 0.0
    %4333 = vmatpush.xpose.msra.mxu0 0.0
    %4334 = vmatpush.xpose.msra.mxu0 0.0
    %4335 = vmatpush.xpose.msra.mxu0 %v4034
    %4336 = vmatmul.f32.gmra.mxu0 %v4050
    %v4337 = vpop.f32.mrf.mxu0
    %v4338 = vadd.f32 %v4318, %v4337
    %4339 = vdwg.mxu0
    %4340 = vmatpush.xpose.msra.mxu0 0.0
    %4341 = vmatpush.xpose.msra.mxu0 0.0
    %4342 = vmatpush.xpose.msra.mxu0 0.0
    %4343 = vmatpush.xpose.msra.mxu0 0.0
    %4344 = vmatpush.xpose.msra.mxu0 0.0
    %4345 = vmatpush.xpose.msra.mxu0 0.0
    %4346 = vmatpush.xpose.msra.mxu0 0.0
    %4347 = vmatpush.xpose.msra.mxu0 0.0
    %4348 = vmatpush.xpose.msra.mxu0 0.0
    %4349 = vmatpush.xpose.msra.mxu0 0.0
    %4350 = vmatpush.xpose.msra.mxu0 0.0
    %4351 = vmatpush.xpose.msra.mxu0 0.0
    %4352 = vmatpush.xpose.msra.mxu0 0.0
    %4353 = vmatpush.xpose.msra.mxu0 0.0
    %4354 = vmatpush.xpose.msra.mxu0 0.0
    %4355 = vmatpush.xpose.msra.mxu0 %v4035
    %4356 = vmatmul.f32.gmra.mxu0 %v4051
    %v4357 = vpop.f32.mrf.mxu0
    %v4358 = vadd.f32 %v4338, %v4357
    %4359 = vdwg.mxu0
    %4360 = vmatpush.xpose.msra.mxu0 0.0
    %4361 = vmatpush.xpose.msra.mxu0 0.0
    %4362 = vmatpush.xpose.msra.mxu0 0.0
    %4363 = vmatpush.xpose.msra.mxu0 0.0
    %4364 = vmatpush.xpose.msra.mxu0 0.0
    %4365 = vmatpush.xpose.msra.mxu0 0.0
    %4366 = vmatpush.xpose.msra.mxu0 0.0
    %4367 = vmatpush.xpose.msra.mxu0 0.0
    %4368 = vmatpush.xpose.msra.mxu0 0.0
    %4369 = vmatpush.xpose.msra.mxu0 0.0
    %4370 = vmatpush.xpose.msra.mxu0 0.0
    %4371 = vmatpush.xpose.msra.mxu0 0.0
    %4372 = vmatpush.xpose.msra.mxu0 0.0
    %4373 = vmatpush.xpose.msra.mxu0 0.0
    %4374 = vmatpush.xpose.msra.mxu0 0.0
    %4375 = vmatpush.xpose.msra.mxu0 %v4058
    %4376 = vmatmul.f32.gmra.mxu0 %v4055
    %v4377 = vpop.f32.mrf.mxu0
    %v4378 = vadd.f32 %v4358, %v4377
    %4379 = vdwg.mxu0
    %v4380 = vld [vmem:[%s4] sm:$0xf]
    %v4381 = vld [vmem:[%s5] sm:$0x1]
    %v4383 = vperm.slane %v4381, 0
    %vm4385 = vcmask 64512
    %v4387 = vsel %vm4385, %v4378, 0
    %v4390 = vsel %vm4385, %v4380, 0
    %4392 = vmatpush.xpose.msra.mxu0 0.0
    %4393 = vmatpush.xpose.msra.mxu0 0.0
    %4394 = vmatpush.xpose.msra.mxu0 0.0
    %4395 = vmatpush.xpose.msra.mxu0 0.0
    %4396 = vmatpush.xpose.msra.mxu0 0.0
    %4397 = vmatpush.xpose.msra.mxu0 0.0
    %4398 = vmatpush.xpose.msra.mxu0 0.0
    %4399 = vmatpush.xpose.msra.mxu0 0.0
    %4400 = vmatpush.xpose.msra.mxu0 0.0
    %4401 = vmatpush.xpose.msra.mxu0 0.0
    %4402 = vmatpush.xpose.msra.mxu0 0.0
    %4403 = vmatpush.xpose.msra.mxu0 0.0
    %4404 = vmatpush.xpose.msra.mxu0 0.0
    %4405 = vmatpush.xpose.msra.mxu0 0.0
    %4406 = vmatpush.xpose.msra.mxu0 0.0
    %4407 = vmatpush.xpose.msra.mxu0 %v4390
    %4408 = vmatmul.f32.gmra.mxu0 %v4387
    %v4409 = vpop.f32.mrf.mxu0
    %v4410 = vadd.f32 %v4383, %v4409
    %4411 = vdwg.mxu0
    %v4412 = vmax.f32 %v4410, 0.0
    %v4414 = vrot.slane %v4412, 2
    %4415 = vrot.lane.b32.xlu0 %v4414, 4
    %v4416 = vpop.permute.xlu0 %4415
    %v4418 = vrot.slane %v4412, 4
    %4419 = vrot.lane.b32.xlu0 %v4418, 8
    %v4420 = vpop.permute.xlu0 %4419
    %v4422 = vsel %vm124, %v4412, %v4416
    %v4423 = vsel %vm4385, %v4422, %v4420
    %v4424 = vld [vmem:[%s6] sm:$0xf]
    %v4425 = vld [vmem:[%s7] sm:$0x1]
    %v4427 = vperm.slane %v4425, 0
    %vm4429 = vcmask 97280
    %v4431 = vsel %vm4429, %v4423, 0
    %v4434 = vsel %vm4429, %v4424, 0
    %4436 = vmatpush.xpose.msra.mxu0 0.0
    %4437 = vmatpush.xpose.msra.mxu0 0.0
    %4438 = vmatpush.xpose.msra.mxu0 0.0
    %4439 = vmatpush.xpose.msra.mxu0 0.0
    %4440 = vmatpush.xpose.msra.mxu0 0.0
    %4441 = vmatpush.xpose.msra.mxu0 0.0
    %4442 = vmatpush.xpose.msra.mxu0 0.0
    %4443 = vmatpush.xpose.msra.mxu0 0.0
    %4444 = vmatpush.xpose.msra.mxu0 0.0
    %4445 = vmatpush.xpose.msra.mxu0 0.0
    %4446 = vmatpush.xpose.msra.mxu0 0.0
    %4447 = vmatpush.xpose.msra.mxu0 0.0
    %4448 = vmatpush.xpose.msra.mxu0 0.0
    %4449 = vmatpush.xpose.msra.mxu0 0.0
    %4450 = vmatpush.xpose.msra.mxu0 0.0
    %4451 = vmatpush.xpose.msra.mxu0 %v4434
    %4452 = vmatmul.f32.gmra.mxu0 %v4431
    %v4453 = vpop.f32.mrf.mxu0
    %v4454 = vadd.f32 %v4427, %v4453
    %4455 = vdwg.mxu0
    %vm4456 = vcmask 25600
    %4457 = vst.msk [vmem:[#allocation2] sm:$0x3] %vm4456, %v4454
    // Predicated region
    $region34: #{ms_no_flow_shared_forward.1} parent=1 // pred_check
      _
    $region35: #{ms_no_flow_shared_forward.1} parent=1 // pred_check_branch
      %4459 = sbr.rel (0) target = $region37
    $region36: #{ms_no_flow_shared_forward.1} parent=1 // pred_region
      %4461 = vsyncadd [#allocation3], 0
      %s4463 = sshll.u32 [#allocation2], 4
      %s4464 = int_to_ptr.vmem [resolvable:$true] %s4463
      %s4465 = sshll.u32 %s8, 4
      %s4466 = int_to_ptr.hbm [resolvable:$true] %s4465
      %4468 = dma.vmem_to_hbm [thread:$0]  %s4464, 32, %s4466, [#allocation3]
    $region37: #{ms_no_flow_shared_forward.1} parent=1 // pred_fallthru
      _
    // Predicated region
    $region38: #{ms_no_flow_shared_forward.1} parent=1 // pred_check
      _
    $region39: #{ms_no_flow_shared_forward.1} parent=1 // pred_check_branch
      %4470 = sbr.rel (0) target = $region41
    $region40: #{ms_no_flow_shared_forward.1} parent=1 // pred_region
      %4472 = dma.done [#allocation3], 32
    $region41: #{ms_no_flow_shared_forward.1} parent=1 // pred_fallthru
      _
    %4473 = vsyncpa [#allocation3], 1

</llo_original>
